<compile_context>
chip_gen: v7x
topology: tpu7x:2x2x1
jax: 0.10.0
libtpu: 0.0.40
codegen_flags: <defaults>
</compile_context>

<pallas_src>
import math
from functools import partial

import jax
import jax.numpy as jnp
from jax import lax
from jax.experimental import pallas as pl
from jax.experimental.pallas import tpu as pltpu


CFG = dict(
    vocab_size=64,
    context_length=16,
    emb_dim=32,
    n_heads=4,
    n_layers=3,
    drop_rate=0.1,
    qkv_bias=False,
    select_dim=16,
    select_heads=2,
    temperature=0.0,
    n_iter=2,
)

_GELU_C = math.sqrt(2.0 / math.pi)


# ----------------------------- in-kernel helpers -----------------------------

def _gelu(x):
    # tanh-approximate GELU (matches the GPT-from-scratch GELU module)
    return 0.5 * x * (1.0 + jnp.tanh(_GELU_C * (x + 0.044715 * x ** 3)))


def _layernorm(x, g, b, eps=1e-5):
    mu = jnp.mean(x, axis=-1, keepdims=True)
    var = jnp.mean((x - mu) ** 2, axis=-1, keepdims=True)
    return (x - mu) * lax.rsqrt(var + eps) * g + b


# --------------------------------- fused kernel -------------------------------

def fused_forward_kernel(idx_ref, emb_ref, wqkv_ref, wo_ref, w1_ref, w2_ref,
                         vecs_ref, misc_ref, wout_ref,
                         logits_ref, hist_ref,
                         *, batch, seq, num_heads, n_iter):
    B, S, H = batch, seq, num_heads
    BS = B * S
    E, V = wout_ref.shape
    L = wqkv_ref.shape[0]
    CTX = emb_ref.shape[0] - V
    dh = E // H
    scale = 1.0 / math.sqrt(dh)
    neg_inf = jnp.finfo(jnp.float32).min

    # ---- fused embedding gather + positional add (one-hot matmul on the MXU) ----
    col = lax.broadcasted_iota(jnp.int32, (BS, V + CTX), 1)
    pos_row = lax.broadcasted_iota(jnp.int32, (B, S, V + CTX), 1).reshape(BS, V + CTX)
    oh = jnp.logical_or(col == idx_ref[...], col == (V + pos_row)).astype(jnp.float32)
    x2d = jnp.dot(oh, emb_ref[...], preferred_element_type=jnp.float32)   # (BS, E)
    # TODO(synk): drop_emb / dropout layers are identity (inference semantics).

    # causal mask built ONCE, broadcast over all (head, batch) pairs
    rowm = lax.broadcasted_iota(jnp.int32, (S, S), 0)
    colm = lax.broadcasted_iota(jnp.int32, (S, S), 1)
    causal = (rowm >= colm)[None]                                          # (1, S, S)

    lane_idx = lax.broadcasted_iota(jnp.int32, (1, E), 1)                  # (1, E)

    # misc pack: [wpa | wpb | sw1(pad) | sw2(pad) | sb1 | sb2 | final_g | final_b]
    wpa = misc_ref[0:E, :]
    wpb = misc_ref[E:2 * E, :]
    sw1 = misc_ref[2 * E:3 * E, :]
    sw2 = misc_ref[3 * E:4 * E, :]
    sb1 = misc_ref[4 * E:4 * E + 1, :]
    sb2 = misc_ref[4 * E + 1:4 * E + 2, :]
    fg = misc_ref[4 * E + 2:4 * E + 3, :]
    fb = misc_ref[4 * E + 3:4 * E + 4, :]

    initial_x = x2d                                                        # (BS, E)
    x_block = x2d
    hist = jnp.zeros((1, E), jnp.int32)

    for it in range(n_iter):                      # static unroll (n_iter = 2)
        # ---------------- selector -> deterministic argmax block choice -------
        # TODO(synk): BlockSelector assumed = mean-pooled 2-layer MLP (see header).
        pooled = jnp.mean(initial_x, axis=0, keepdims=True)                # (1, E)
        hsel = _gelu(jnp.dot(pooled, sw1, preferred_element_type=jnp.float32) + sb1)
        sel = jnp.dot(hsel, sw2, preferred_element_type=jnp.float32) + sb2  # (1, E)
        # softmax omitted: argmax(softmax(z)) == argmax(z); temperature == 0.0
        sel = jnp.where(lane_idx < L, sel, neg_inf)    # mask padding lanes
        mx = jnp.max(sel, axis=-1, keepdims=True)
        cand = jnp.where(sel >= mx, lane_idx, E)
        chosen = jnp.min(cand, axis=-1, keepdims=True)                     # (1,1) i32
        hist = hist + (lane_idx == chosen).astype(jnp.int32)

        # -------- select chosen layer's weights (hoisted one-hot masks) -------
        sel_masks = [chosen == l for l in range(1, L)]   # 2 compares / iteration

        def pick(ref):
            w = ref[0]
            for l in range(1, L):
                w = jnp.where(sel_masks[l - 1], ref[l], w)
            return w

        wqkv = pick(wqkv_ref)
        wo = pick(wo_ref)
        w1 = pick(w1_ref)
        w2 = pick(w2_ref)
        vec = pick(vecs_ref)                       # (8, F) packed per-layer vectors

        ln1_g, ln1_b = vec[0:1, :E], vec[1:2, :E]
        bo = vec[2:3, :E]
        ln2_g, ln2_b = vec[3:4, :E], vec[4:5, :E]
        b2 = vec[5:6, :E]
        b1 = vec[6:7, :]                           # full FFN width

        # ---------------- pre-LN causal multi-head attention ------------------
        h1 = _layernorm(initial_x, ln1_g, ln1_b)                           # (BS, E)
        qkv = jnp.dot(h1, wqkv, preferred_element_type=jnp.float32)        # (BS, 3E)
        qkv3 = qkv.reshape(B, S, 3 * E)

        def split_heads(off):                      # -> (H*B, S, dh), n = h*B + b
            return jnp.concatenate(
                [qkv3[:, :, off + h * dh: off + (h + 1) * dh] for h in range(H)],
                axis=0)

        q = split_heads(0)
        k = split_heads(E)
        v = split_heads(2 * E)

        s = jnp.einsum('nqd,nkd->nqk', q, k,
                       preferred_element_type=jnp.float32) * scale         # (HB,S,S)
        s = jnp.where(causal, s, neg_inf)
        mxs = jnp.max(s, axis=-1, keepdims=True)
        p = jnp.exp(s - mxs)
        p = p * pl.reciprocal(jnp.sum(p, axis=-1, keepdims=True), approx=True)
        ctx = jnp.einsum('nqk,nkd->nqd', p, v,
                         preferred_element_type=jnp.float32)               # (HB,S,dh)

        # merge heads (lane concat) and apply Wo as ONE (BS,E)@(E,E) matmul
        ctx2d = jnp.concatenate([ctx[h * B:(h + 1) * B] for h in range(H)],
                                axis=-1).reshape(BS, E)
        att = jnp.dot(ctx2d, wo, preferred_element_type=jnp.float32)
        x1 = initial_x + att + bo                                          # residual 1

        # ---------------- pre-LN FFN ------------------------------------------
        h2 = _layernorm(x1, ln2_g, ln2_b)
        ff = _gelu(jnp.dot(h2, w1, preferred_element_type=jnp.float32) + b1)
        ff = jnp.dot(ff, w2, preferred_element_type=jnp.float32) + b2
        x_block = x1 + ff                                                  # residual 2

        # ------- fused projection(cat([initial_x, x_block], -1)) --------------
        # The last iteration's projection is never consumed (reference computes it
        # and discards it); skip the dead compute.
        if it < n_iter - 1:
            initial_x = (jnp.dot(initial_x, wpa, preferred_element_type=jnp.float32)
                         + jnp.dot(x_block, wpb, preferred_element_type=jnp.float32))

    # ---------------- final LayerNorm + (bias-free) vocab head ----------------
    hfin = _layernorm(x_block, fg, fb)
    logits = jnp.dot(hfin, wout_ref[...], preferred_element_type=jnp.float32)
    logits_ref[...] = logits.reshape(B, S, V).astype(logits_ref.dtype)
    hist_ref[...] = hist[:, :L]


# --------------------------------- wrapper ------------------------------------

def make_forward(cfg):
    H, n_iter = cfg['n_heads'], cfg['n_iter']

    @jax.jit
    def forward(packed, in_idx):
        B, S = in_idx.shape
        E, V = packed['wout'].shape
        L = packed['wqkv'].shape[0]
        idx2d = in_idx.reshape(B * S, 1).astype(jnp.int32)

        kernel = partial(fused_forward_kernel, batch=B, seq=S,
                         num_heads=H, n_iter=n_iter)
        vm = pl.BlockSpec(memory_space=pltpu.MemorySpace.VMEM)
        logits, hist = pl.pallas_call(
            kernel,
            out_shape=(jax.ShapeDtypeStruct((B, S, V), jnp.float32),
                       jax.ShapeDtypeStruct((1, L), jnp.int32)),
            in_specs=[vm] * 9,
            out_specs=(vm, vm),
        )(idx2d, packed['emb'], packed['wqkv'], packed['wo'],
          packed['w1'], packed['w2'], packed['vecs'], packed['misc'],
          packed['wout'])
        return logits, hist

    return forward


# ------------------------------ parameter init / packing -----------------------

def init_params(key, cfg):
    E, V = cfg['emb_dim'], cfg['vocab_size']
    F, Ds, L = 4 * E, cfg['select_dim'], cfg['n_layers']
    ks = iter(jax.random.split(key, 32))

    def nrm(shape, scale=0.02):
        return (scale * jax.random.normal(next(ks), shape)).astype(jnp.float32)

    return dict(
        tok_emb=nrm((V, E)),
        pos_emb=nrm((cfg['context_length'], E)),
        # stacked per-layer block weights, [L, ...]; Q/K/V fused into one (E, 3E)
        ln1_g=jnp.ones((L, 1, E), jnp.float32),
        ln1_b=jnp.zeros((L, 1, E), jnp.float32),
        wqkv=jnp.concatenate([nrm((L, E, E)), nrm((L, E, E)), nrm((L, E, E))],
                             axis=-1),
        wo=nrm((L, E, E)),
        bo=jnp.zeros((L, 1, E), jnp.float32),
        ln2_g=jnp.ones((L, 1, E), jnp.float32),
        ln2_b=jnp.zeros((L, 1, E), jnp.float32),
        w1=nrm((L, E, F)),
        b1=jnp.zeros((L, 1, F), jnp.float32),
        w2=nrm((L, F, E)),
        b2=jnp.zeros((L, 1, E), jnp.float32),
        # TODO(synk): BlockSelector internals unspecified; mean-pooled 2-layer MLP.
        sw1=nrm((E, Ds)), sb1=jnp.zeros((1, Ds), jnp.float32),
        sw2=nrm((Ds, L)), sb2=jnp.zeros((1, L), jnp.float32),
        # projection(cat([a, b], -1)) split into the two (E, E) halves of (2E, E)
        wpa=nrm((E, E)), wpb=nrm((E, E)),
        final_g=jnp.ones((1, E), jnp.float32),
        final_b=jnp.zeros((1, E), jnp.float32),
        w_out=nrm((E, V)),
    )


def pack_params(p, cfg):
    """Pack 21 logical parameters into 8 kernel inputs (done once, outside jit)."""
    E, L = cfg['emb_dim'], cfg['n_layers']
    F = 4 * E

    def row(v, width):
        r = jnp.zeros((1, width), jnp.float32)
        return r.at[:, :v.shape[-1]].set(v.reshape(1, -1))

    def pad2d(w, rows, cols):
        out = jnp.zeros((rows, cols), jnp.float32)
        return out.at[:w.shape[0], :w.shape[1]].set(w)

    # embedding table: [tok_emb ; pos_emb] -> (V + CTX, E)
    emb = jnp.concatenate([p['tok_emb'], p['pos_emb']], axis=0)

    # per-layer vectors: rows = ln1_g, ln1_b, bo, ln2_g, ln2_b, b2, b1, 0  -> (L, 8, F)
    vecs = jnp.stack([
        jnp.concatenate([row(p['ln1_g'][l], F), row(p['ln1_b'][l], F),
                         row(p['bo'][l], F), row(p['ln2_g'][l], F),
                         row(p['ln2_b'][l], F), row(p['b2'][l], F),
                         row(p['b1'][l], F), jnp.zeros((1, F), jnp.float32)],
                        axis=0)
        for l in range(L)], axis=0)

    # misc: [wpa ; wpb ; sw1(pad to E x E) ; sw2(pad) ; sb1 ; sb2 ; final_g ; final_b]
    misc = jnp.concatenate([
        p['wpa'], p['wpb'],
        pad2d(p['sw1'], E, E), pad2d(p['sw2'], E, E),
        row(p['sb1'], E), row(p['sb2'], E),
        row(p['final_g'], E), row(p['final_b'], E)], axis=0)      # (4E + 4, E)

    return dict(emb=emb, wqkv=p['wqkv'], wo=p['wo'], w1=p['w1'], w2=p['w2'],
                vecs=vecs, misc=misc, wout=p['w_out'])


# ----------------------------------- main --------------------------------------

if __name__ == "__main__":
    key = jax.random.PRNGKey(0)
    k_param, k_idx = jax.random.split(key)
    params = init_params(k_param, CFG)
    packed = pack_params(params, CFG)

    B, S = 2, 8
    in_idx = jax.random.randint(k_idx, (B, S), 0, CFG['vocab_size'],
                                dtype=jnp.int32)

    forward = make_forward(CFG)
    logits, hist_arr = forward(packed, in_idx)
    logits = jax.block_until_ready(logits)

    # one host transfer at the very end for the histogram of chosen blocks
    hist = {i: int(c) for i, c in enumerate(jax.device_get(hist_arr)[0])}

    assert logits.shape == (B, S, CFG['vocab_size'])
    assert bool(jnp.all(jnp.isfinite(logits)))
    assert sum(hist.values()) == CFG['n_iter']
    print("KERNEL_OK")
</pallas_src>

<mosaic_0001>
module attributes {stable_mosaic.version = 11 : i64} {
  func.func @fused_forward_kernel(%arg0: memref<16x1xi32, #tpu.memory_space<vmem>>, %arg1: memref<80x32xf32, #tpu.memory_space<vmem>>, %arg2: memref<3x32x96xf32, #tpu.memory_space<vmem>>, %arg3: memref<3x32x32xf32, #tpu.memory_space<vmem>>, %arg4: memref<3x32x128xf32, #tpu.memory_space<vmem>>, %arg5: memref<3x128x32xf32, #tpu.memory_space<vmem>>, %arg6: memref<3x8x128xf32, #tpu.memory_space<vmem>>, %arg7: memref<132x32xf32, #tpu.memory_space<vmem>>, %arg8: memref<32x64xf32, #tpu.memory_space<vmem>>, %arg9: memref<2x8x64xf32, #tpu.memory_space<vmem>>, %arg10: memref<1x3xi32, #tpu.memory_space<vmem>>) attributes {dimension_semantics = [], scalar_prefetch = 0 : i64, scratch_operands = 0 : i64, tpu.core_type = #tpu.core_type<tc>} {
    %0 = tpu.iota {dimensions = array<i32: 1>} : vector<16x80xi32>
    %1 = tpu.iota {dimensions = array<i32: 1>} : vector<2x8x80xi32>
    %2 = vector.shape_cast %1 : vector<2x8x80xi32> to vector<16x80xi32>
    %c0 = arith.constant 0 : index
    %c0_0 = arith.constant 0 : index
    %3 = vector.load %arg0[%c0, %c0_0] : memref<16x1xi32, #tpu.memory_space<vmem>>, vector<16x1xi32>
    %4 = vector.broadcast %3 : vector<16x1xi32> to vector<16x80xi32>
    %5 = arith.cmpi eq, %0, %4 : vector<16x80xi32>
    %c64_i32 = arith.constant 64 : i32
    %6 = vector.broadcast %c64_i32 : i32 to vector<16x80xi32>
    %7 = arith.addi %6, %2 : vector<16x80xi32>
    %8 = arith.cmpi eq, %0, %7 : vector<16x80xi32>
    %9 = arith.ori %5, %8 : vector<16x80xi1>
    %10 = arith.extui %9 : vector<16x80xi1> to vector<16x80xi32>
    %11 = arith.sitofp %10 : vector<16x80xi32> to vector<16x80xf32>
    %c0_1 = arith.constant 0 : index
    %c0_2 = arith.constant 0 : index
    %12 = vector.load %arg1[%c0_1, %c0_2] : memref<80x32xf32, #tpu.memory_space<vmem>>, vector<80x32xf32>
    %cst = arith.constant dense<0.000000e+00> : vector<16x32xf32>
    %13 = tpu.matmul %11, %12, %cst {dimension_numbers = #tpu.dot_dimension_numbers<[1], [0], [0], [1], [0, 0, 1, 1], [], []>} : vector<16x80xf32>, vector<80x32xf32>, vector<16x32xf32> -> vector<16x32xf32>
    %14 = tpu.iota {dimensions = array<i32: 0>} : vector<8x8xi32>
    %15 = tpu.iota {dimensions = array<i32: 1>} : vector<8x8xi32>
    %16 = arith.cmpi sge, %14, %15 : vector<8x8xi32>
    %17 = vector.shape_cast %16 : vector<8x8xi1> to vector<1x8x8xi1>
    %18 = tpu.iota {dimensions = array<i32: 1>} : vector<1x32xi32>
    %c0_3 = arith.constant 0 : index
    %c0_4 = arith.constant 0 : index
    %19 = vector.load %arg7[%c0_3, %c0_4] : memref<132x32xf32, #tpu.memory_space<vmem>>, vector<32x32xf32>
    %c32 = arith.constant 32 : index
    %c0_5 = arith.constant 0 : index
    %20 = vector.load %arg7[%c32, %c0_5] : memref<132x32xf32, #tpu.memory_space<vmem>>, vector<32x32xf32>
    %c64 = arith.constant 64 : index
    %c0_6 = arith.constant 0 : index
    %21 = vector.load %arg7[%c64, %c0_6] : memref<132x32xf32, #tpu.memory_space<vmem>>, vector<32x32xf32>
    %c96 = arith.constant 96 : index
    %c0_7 = arith.constant 0 : index
    %22 = vector.load %arg7[%c96, %c0_7] : memref<132x32xf32, #tpu.memory_space<vmem>>, vector<32x32xf32>
    %c128 = arith.constant 128 : index
    %c0_8 = arith.constant 0 : index
    %23 = vector.load %arg7[%c128, %c0_8] : memref<132x32xf32, #tpu.memory_space<vmem>>, vector<1x32xf32>
    %c129 = arith.constant 129 : index
    %c0_9 = arith.constant 0 : index
    %24 = vector.load %arg7[%c129, %c0_9] : memref<132x32xf32, #tpu.memory_space<vmem>>, vector<1x32xf32>
    %c130 = arith.constant 130 : index
    %c0_10 = arith.constant 0 : index
    %25 = vector.load %arg7[%c130, %c0_10] : memref<132x32xf32, #tpu.memory_space<vmem>>, vector<1x32xf32>
    %c131 = arith.constant 131 : index
    %c0_11 = arith.constant 0 : index
    %26 = vector.load %arg7[%c131, %c0_11] : memref<132x32xf32, #tpu.memory_space<vmem>>, vector<1x32xf32>
    %c0_i32 = arith.constant 0 : i32
    %27 = vector.broadcast %c0_i32 : i32 to vector<1x32xi32>
    %cst_12 = arith.constant dense<0.000000e+00> : vector<32xf32>
    %28 = vector.multi_reduction <add>, %13, %cst_12 [0] : vector<16x32xf32> to vector<32xf32>
    %29 = vector.shape_cast %28 : vector<32xf32> to vector<1x32xf32>
    %cst_13 = arith.constant 1.600000e+01 : f32
    %30 = vector.broadcast %cst_13 : f32 to vector<1x32xf32>
    %31 = arith.divf %29, %30 : vector<1x32xf32>
    %cst_14 = arith.constant dense<0.000000e+00> : vector<1x32xf32>
    %32 = tpu.matmul %31, %21, %cst_14 {dimension_numbers = #tpu.dot_dimension_numbers<[1], [0], [0], [1], [0, 0, 1, 1], [], []>} : vector<1x32xf32>, vector<32x32xf32>, vector<1x32xf32> -> vector<1x32xf32>
    %33 = arith.addf %32, %23 : vector<1x32xf32>
    %cst_15 = arith.constant 5.000000e-01 : f32
    %34 = vector.broadcast %cst_15 : f32 to vector<1x32xf32>
    %35 = arith.mulf %34, %33 : vector<1x32xf32>
    %36 = arith.mulf %33, %33 : vector<1x32xf32>
    %37 = arith.mulf %33, %36 : vector<1x32xf32>
    %cst_16 = arith.constant 4.471500e-02 : f32
    %38 = vector.broadcast %cst_16 : f32 to vector<1x32xf32>
    %39 = arith.mulf %38, %37 : vector<1x32xf32>
    %40 = arith.addf %33, %39 : vector<1x32xf32>
    %cst_17 = arith.constant 0.797884583 : f32
    %41 = vector.broadcast %cst_17 : f32 to vector<1x32xf32>
    %42 = arith.mulf %41, %40 : vector<1x32xf32>
    %43 = math.tanh %42 : vector<1x32xf32>
    %cst_18 = arith.constant 1.000000e+00 : f32
    %44 = vector.broadcast %cst_18 : f32 to vector<1x32xf32>
    %45 = arith.addf %44, %43 : vector<1x32xf32>
    %46 = arith.mulf %35, %45 : vector<1x32xf32>
    %cst_19 = arith.constant dense<0.000000e+00> : vector<1x32xf32>
    %47 = tpu.matmul %46, %22, %cst_19 {dimension_numbers = #tpu.dot_dimension_numbers<[1], [0], [0], [1], [0, 0, 1, 1], [], []>} : vector<1x32xf32>, vector<32x32xf32>, vector<1x32xf32> -> vector<1x32xf32>
    %48 = arith.addf %47, %24 : vector<1x32xf32>
    %c3_i32 = arith.constant 3 : i32
    %49 = vector.broadcast %c3_i32 : i32 to vector<1x32xi32>
    %50 = arith.cmpi slt, %18, %49 : vector<1x32xi32>
    %cst_20 = arith.constant -3.40282347E+38 : f32
    %51 = vector.broadcast %cst_20 : f32 to vector<1x32xf32>
    %52 = arith.select %50, %48, %51 : vector<1x32xi1>, vector<1x32xf32>
    %cst_21 = arith.constant dense<0xFF800000> : vector<1xf32>
    %53 = vector.multi_reduction <maximumf>, %52, %cst_21 [1] : vector<1x32xf32> to vector<1xf32>
    %54 = vector.shape_cast %53 : vector<1xf32> to vector<1x1xf32>
    %55 = vector.broadcast %54 : vector<1x1xf32> to vector<1x32xf32>
    %56 = arith.cmpf oge, %52, %55 : vector<1x32xf32>
    %c32_i32 = arith.constant 32 : i32
    %57 = vector.broadcast %c32_i32 : i32 to vector<1x32xi32>
    %58 = arith.select %56, %18, %57 : vector<1x32xi1>, vector<1x32xi32>
    %cst_22 = arith.constant dense<2147483647> : vector<1xi32>
    %59 = vector.multi_reduction <minsi>, %58, %cst_22 [1] : vector<1x32xi32> to vector<1xi32>
    %60 = vector.shape_cast %59 : vector<1xi32> to vector<1x1xi32>
    %61 = vector.broadcast %60 : vector<1x1xi32> to vector<1x32xi32>
    %62 = arith.cmpi eq, %18, %61 : vector<1x32xi32>
    %63 = arith.extui %62 : vector<1x32xi1> to vector<1x32xi32>
    %64 = arith.addi %27, %63 : vector<1x32xi32>
    %c1_i32 = arith.constant 1 : i32
    %65 = vector.broadcast %c1_i32 : i32 to vector<1x1xi32>
    %66 = arith.cmpi eq, %60, %65 : vector<1x1xi32>
    %c2_i32 = arith.constant 2 : i32
    %67 = vector.broadcast %c2_i32 : i32 to vector<1x1xi32>
    %68 = arith.cmpi eq, %60, %67 : vector<1x1xi32>
    %c0_23 = arith.constant 0 : index
    %c0_24 = arith.constant 0 : index
    %c0_25 = arith.constant 0 : index
    %69 = vector.load %arg2[%c0_23, %c0_24, %c0_25] : memref<3x32x96xf32, #tpu.memory_space<vmem>>, vector<1x32x96xf32>
    %70 = vector.shape_cast %69 : vector<1x32x96xf32> to vector<32x96xf32>
    %c1 = arith.constant 1 : index
    %c0_26 = arith.constant 0 : index
    %c0_27 = arith.constant 0 : index
    %71 = vector.load %arg2[%c1, %c0_26, %c0_27] : memref<3x32x96xf32, #tpu.memory_space<vmem>>, vector<1x32x96xf32>
    %72 = vector.shape_cast %71 : vector<1x32x96xf32> to vector<32x96xf32>
    %73 = vector.shape_cast %66 : vector<1x1xi1> to vector<1x1xi1>
    %74 = vector.broadcast %73 : vector<1x1xi1> to vector<32x96xi1>
    %75 = arith.select %74, %72, %70 : vector<32x96xi1>, vector<32x96xf32>
    %c2 = arith.constant 2 : index
    %c0_28 = arith.constant 0 : index
    %c0_29 = arith.constant 0 : index
    %76 = vector.load %arg2[%c2, %c0_28, %c0_29] : memref<3x32x96xf32, #tpu.memory_space<vmem>>, vector<1x32x96xf32>
    %77 = vector.shape_cast %76 : vector<1x32x96xf32> to vector<32x96xf32>
    %78 = vector.shape_cast %68 : vector<1x1xi1> to vector<1x1xi1>
    %79 = vector.broadcast %78 : vector<1x1xi1> to vector<32x96xi1>
    %80 = arith.select %79, %77, %75 : vector<32x96xi1>, vector<32x96xf32>
    %c0_30 = arith.constant 0 : index
    %c0_31 = arith.constant 0 : index
    %c0_32 = arith.constant 0 : index
    %81 = vector.load %arg3[%c0_30, %c0_31, %c0_32] : memref<3x32x32xf32, #tpu.memory_space<vmem>>, vector<1x32x32xf32>
    %82 = vector.shape_cast %81 : vector<1x32x32xf32> to vector<32x32xf32>
    %c1_33 = arith.constant 1 : index
    %c0_34 = arith.constant 0 : index
    %c0_35 = arith.constant 0 : index
    %83 = vector.load %arg3[%c1_33, %c0_34, %c0_35] : memref<3x32x32xf32, #tpu.memory_space<vmem>>, vector<1x32x32xf32>
    %84 = vector.shape_cast %83 : vector<1x32x32xf32> to vector<32x32xf32>
    %85 = vector.shape_cast %66 : vector<1x1xi1> to vector<1x1xi1>
    %86 = vector.broadcast %85 : vector<1x1xi1> to vector<32x32xi1>
    %87 = arith.select %86, %84, %82 : vector<32x32xi1>, vector<32x32xf32>
    %c2_36 = arith.constant 2 : index
    %c0_37 = arith.constant 0 : index
    %c0_38 = arith.constant 0 : index
    %88 = vector.load %arg3[%c2_36, %c0_37, %c0_38] : memref<3x32x32xf32, #tpu.memory_space<vmem>>, vector<1x32x32xf32>
    %89 = vector.shape_cast %88 : vector<1x32x32xf32> to vector<32x32xf32>
    %90 = vector.shape_cast %68 : vector<1x1xi1> to vector<1x1xi1>
    %91 = vector.broadcast %90 : vector<1x1xi1> to vector<32x32xi1>
    %92 = arith.select %91, %89, %87 : vector<32x32xi1>, vector<32x32xf32>
    %c0_39 = arith.constant 0 : index
    %c0_40 = arith.constant 0 : index
    %c0_41 = arith.constant 0 : index
    %93 = vector.load %arg4[%c0_39, %c0_40, %c0_41] : memref<3x32x128xf32, #tpu.memory_space<vmem>>, vector<1x32x128xf32>
    %94 = vector.shape_cast %93 : vector<1x32x128xf32> to vector<32x128xf32>
    %c1_42 = arith.constant 1 : index
    %c0_43 = arith.constant 0 : index
    %c0_44 = arith.constant 0 : index
    %95 = vector.load %arg4[%c1_42, %c0_43, %c0_44] : memref<3x32x128xf32, #tpu.memory_space<vmem>>, vector<1x32x128xf32>
    %96 = vector.shape_cast %95 : vector<1x32x128xf32> to vector<32x128xf32>
    %97 = vector.shape_cast %66 : vector<1x1xi1> to vector<1x1xi1>
    %98 = vector.broadcast %97 : vector<1x1xi1> to vector<32x128xi1>
    %99 = arith.select %98, %96, %94 : vector<32x128xi1>, vector<32x128xf32>
    %c2_45 = arith.constant 2 : index
    %c0_46 = arith.constant 0 : index
    %c0_47 = arith.constant 0 : index
    %100 = vector.load %arg4[%c2_45, %c0_46, %c0_47] : memref<3x32x128xf32, #tpu.memory_space<vmem>>, vector<1x32x128xf32>
    %101 = vector.shape_cast %100 : vector<1x32x128xf32> to vector<32x128xf32>
    %102 = vector.shape_cast %68 : vector<1x1xi1> to vector<1x1xi1>
    %103 = vector.broadcast %102 : vector<1x1xi1> to vector<32x128xi1>
    %104 = arith.select %103, %101, %99 : vector<32x128xi1>, vector<32x128xf32>
    %c0_48 = arith.constant 0 : index
    %c0_49 = arith.constant 0 : index
    %c0_50 = arith.constant 0 : index
    %105 = vector.load %arg5[%c0_48, %c0_49, %c0_50] : memref<3x128x32xf32, #tpu.memory_space<vmem>>, vector<1x128x32xf32>
    %106 = vector.shape_cast %105 : vector<1x128x32xf32> to vector<128x32xf32>
    %c1_51 = arith.constant 1 : index
    %c0_52 = arith.constant 0 : index
    %c0_53 = arith.constant 0 : index
    %107 = vector.load %arg5[%c1_51, %c0_52, %c0_53] : memref<3x128x32xf32, #tpu.memory_space<vmem>>, vector<1x128x32xf32>
    %108 = vector.shape_cast %107 : vector<1x128x32xf32> to vector<128x32xf32>
    %109 = vector.shape_cast %66 : vector<1x1xi1> to vector<1x1xi1>
    %110 = vector.broadcast %109 : vector<1x1xi1> to vector<128x32xi1>
    %111 = arith.select %110, %108, %106 : vector<128x32xi1>, vector<128x32xf32>
    %c2_54 = arith.constant 2 : index
    %c0_55 = arith.constant 0 : index
    %c0_56 = arith.constant 0 : index
    %112 = vector.load %arg5[%c2_54, %c0_55, %c0_56] : memref<3x128x32xf32, #tpu.memory_space<vmem>>, vector<1x128x32xf32>
    %113 = vector.shape_cast %112 : vector<1x128x32xf32> to vector<128x32xf32>
    %114 = vector.shape_cast %68 : vector<1x1xi1> to vector<1x1xi1>
    %115 = vector.broadcast %114 : vector<1x1xi1> to vector<128x32xi1>
    %116 = arith.select %115, %113, %111 : vector<128x32xi1>, vector<128x32xf32>
    %c0_57 = arith.constant 0 : index
    %c0_58 = arith.constant 0 : index
    %c0_59 = arith.constant 0 : index
    %117 = vector.load %arg6[%c0_57, %c0_58, %c0_59] : memref<3x8x128xf32, #tpu.memory_space<vmem>>, vector<1x8x128xf32>
    %118 = vector.shape_cast %117 : vector<1x8x128xf32> to vector<8x128xf32>
    %c1_60 = arith.constant 1 : index
    %c0_61 = arith.constant 0 : index
    %c0_62 = arith.constant 0 : index
    %119 = vector.load %arg6[%c1_60, %c0_61, %c0_62] : memref<3x8x128xf32, #tpu.memory_space<vmem>>, vector<1x8x128xf32>
    %120 = vector.shape_cast %119 : vector<1x8x128xf32> to vector<8x128xf32>
    %121 = vector.shape_cast %66 : vector<1x1xi1> to vector<1x1xi1>
    %122 = vector.broadcast %121 : vector<1x1xi1> to vector<8x128xi1>
    %123 = arith.select %122, %120, %118 : vector<8x128xi1>, vector<8x128xf32>
    %c2_63 = arith.constant 2 : index
    %c0_64 = arith.constant 0 : index
    %c0_65 = arith.constant 0 : index
    %124 = vector.load %arg6[%c2_63, %c0_64, %c0_65] : memref<3x8x128xf32, #tpu.memory_space<vmem>>, vector<1x8x128xf32>
    %125 = vector.shape_cast %124 : vector<1x8x128xf32> to vector<8x128xf32>
    %126 = vector.shape_cast %68 : vector<1x1xi1> to vector<1x1xi1>
    %127 = vector.broadcast %126 : vector<1x1xi1> to vector<8x128xi1>
    %128 = arith.select %127, %125, %123 : vector<8x128xi1>, vector<8x128xf32>
    %129 = vector.extract_strided_slice %128 {offsets = [0, 0], sizes = [1, 32], strides = [1, 1]} : vector<8x128xf32> to vector<1x32xf32>
    %130 = vector.extract_strided_slice %128 {offsets = [1, 0], sizes = [1, 32], strides = [1, 1]} : vector<8x128xf32> to vector<1x32xf32>
    %131 = vector.extract_strided_slice %128 {offsets = [2, 0], sizes = [1, 32], strides = [1, 1]} : vector<8x128xf32> to vector<1x32xf32>
    %132 = vector.extract_strided_slice %128 {offsets = [3, 0], sizes = [1, 32], strides = [1, 1]} : vector<8x128xf32> to vector<1x32xf32>
    %133 = vector.extract_strided_slice %128 {offsets = [4, 0], sizes = [1, 32], strides = [1, 1]} : vector<8x128xf32> to vector<1x32xf32>
    %134 = vector.extract_strided_slice %128 {offsets = [5, 0], sizes = [1, 32], strides = [1, 1]} : vector<8x128xf32> to vector<1x32xf32>
    %135 = vector.extract_strided_slice %128 {offsets = [6, 0], sizes = [1, 128], strides = [1, 1]} : vector<8x128xf32> to vector<1x128xf32>
    %cst_66 = arith.constant dense<0.000000e+00> : vector<16xf32>
    %136 = vector.multi_reduction <add>, %13, %cst_66 [1] : vector<16x32xf32> to vector<16xf32>
    %137 = vector.shape_cast %136 : vector<16xf32> to vector<16x1xf32>
    %cst_67 = arith.constant 3.200000e+01 : f32
    %138 = vector.broadcast %cst_67 : f32 to vector<16x1xf32>
    %139 = arith.divf %137, %138 : vector<16x1xf32>
    %140 = vector.broadcast %139 : vector<16x1xf32> to vector<16x32xf32>
    %141 = arith.subf %13, %140 : vector<16x32xf32>
    %142 = arith.mulf %141, %141 : vector<16x32xf32>
    %cst_68 = arith.constant dense<0.000000e+00> : vector<16xf32>
    %143 = vector.multi_reduction <add>, %142, %cst_68 [1] : vector<16x32xf32> to vector<16xf32>
    %144 = vector.shape_cast %143 : vector<16xf32> to vector<16x1xf32>
    %cst_69 = arith.constant 3.200000e+01 : f32
    %145 = vector.broadcast %cst_69 : f32 to vector<16x1xf32>
    %146 = arith.divf %144, %145 : vector<16x1xf32>
    %147 = vector.broadcast %139 : vector<16x1xf32> to vector<16x32xf32>
    %148 = arith.subf %13, %147 : vector<16x32xf32>
    %cst_70 = arith.constant 9.99999974E-6 : f32
    %149 = vector.broadcast %cst_70 : f32 to vector<16x1xf32>
    %150 = arith.addf %146, %149 : vector<16x1xf32>
    %151 = math.rsqrt %150 : vector<16x1xf32>
    %152 = vector.broadcast %151 : vector<16x1xf32> to vector<16x32xf32>
    %153 = arith.mulf %148, %152 : vector<16x32xf32>
    %154 = vector.broadcast %129 : vector<1x32xf32> to vector<16x32xf32>
    %155 = arith.mulf %153, %154 : vector<16x32xf32>
    %156 = vector.broadcast %130 : vector<1x32xf32> to vector<16x32xf32>
    %157 = arith.addf %155, %156 : vector<16x32xf32>
    %cst_71 = arith.constant dense<0.000000e+00> : vector<16x96xf32>
    %158 = tpu.matmul %157, %80, %cst_71 {dimension_numbers = #tpu.dot_dimension_numbers<[1], [0], [0], [1], [0, 0, 1, 1], [], []>} : vector<16x32xf32>, vector<32x96xf32>, vector<16x96xf32> -> vector<16x96xf32>
    %159 = vector.shape_cast %158 : vector<16x96xf32> to vector<2x8x96xf32>
    %160 = vector.extract_strided_slice %159 {offsets = [0, 0, 0], sizes = [2, 8, 8], strides = [1, 1, 1]} : vector<2x8x96xf32> to vector<2x8x8xf32>
    %161 = vector.extract_strided_slice %159 {offsets = [0, 0, 8], sizes = [2, 8, 8], strides = [1, 1, 1]} : vector<2x8x96xf32> to vector<2x8x8xf32>
    %162 = vector.extract_strided_slice %159 {offsets = [0, 0, 16], sizes = [2, 8, 8], strides = [1, 1, 1]} : vector<2x8x96xf32> to vector<2x8x8xf32>
    %163 = vector.extract_strided_slice %159 {offsets = [0, 0, 24], sizes = [2, 8, 8], strides = [1, 1, 1]} : vector<2x8x96xf32> to vector<2x8x8xf32>
    %164 = tpu.concatenate %160, %161, %162, %163 in 0 : vector<2x8x8xf32>, vector<2x8x8xf32>, vector<2x8x8xf32>, vector<2x8x8xf32> -> vector<8x8x8xf32>
    %165 = vector.extract_strided_slice %159 {offsets = [0, 0, 32], sizes = [2, 8, 8], strides = [1, 1, 1]} : vector<2x8x96xf32> to vector<2x8x8xf32>
    %166 = vector.extract_strided_slice %159 {offsets = [0, 0, 40], sizes = [2, 8, 8], strides = [1, 1, 1]} : vector<2x8x96xf32> to vector<2x8x8xf32>
    %167 = vector.extract_strided_slice %159 {offsets = [0, 0, 48], sizes = [2, 8, 8], strides = [1, 1, 1]} : vector<2x8x96xf32> to vector<2x8x8xf32>
    %168 = vector.extract_strided_slice %159 {offsets = [0, 0, 56], sizes = [2, 8, 8], strides = [1, 1, 1]} : vector<2x8x96xf32> to vector<2x8x8xf32>
    %169 = tpu.concatenate %165, %166, %167, %168 in 0 : vector<2x8x8xf32>, vector<2x8x8xf32>, vector<2x8x8xf32>, vector<2x8x8xf32> -> vector<8x8x8xf32>
    %170 = vector.extract_strided_slice %159 {offsets = [0, 0, 64], sizes = [2, 8, 8], strides = [1, 1, 1]} : vector<2x8x96xf32> to vector<2x8x8xf32>
    %171 = vector.extract_strided_slice %159 {offsets = [0, 0, 72], sizes = [2, 8, 8], strides = [1, 1, 1]} : vector<2x8x96xf32> to vector<2x8x8xf32>
    %172 = vector.extract_strided_slice %159 {offsets = [0, 0, 80], sizes = [2, 8, 8], strides = [1, 1, 1]} : vector<2x8x96xf32> to vector<2x8x8xf32>
    %173 = vector.extract_strided_slice %159 {offsets = [0, 0, 88], sizes = [2, 8, 8], strides = [1, 1, 1]} : vector<2x8x96xf32> to vector<2x8x8xf32>
    %174 = tpu.concatenate %170, %171, %172, %173 in 0 : vector<2x8x8xf32>, vector<2x8x8xf32>, vector<2x8x8xf32>, vector<2x8x8xf32> -> vector<8x8x8xf32>
    "tpu.trace_start"() <{level = 10 : i32, message = "nqd,nkd->nqk"}> : () -> ()
    %cst_72 = arith.constant dense<0.000000e+00> : vector<8x8x8xf32>
    %175 = tpu.matmul %164, %169, %cst_72 {dimension_numbers = #tpu.dot_dimension_numbers<[2], [2], [1], [1], [0, 0, 0, 1, 1, 1], [0], [0]>} : vector<8x8x8xf32>, vector<8x8x8xf32>, vector<8x8x8xf32> -> vector<8x8x8xf32>
    "tpu.trace_stop"() : () -> ()
    %cst_73 = arith.constant 0.353553385 : f32
    %176 = vector.broadcast %cst_73 : f32 to vector<8x8x8xf32>
    %177 = arith.mulf %175, %176 : vector<8x8x8xf32>
    %cst_74 = arith.constant -3.40282347E+38 : f32
    %178 = vector.shape_cast %17 : vector<1x8x8xi1> to vector<1x8x8xi1>
    %179 = vector.broadcast %178 : vector<1x8x8xi1> to vector<8x8x8xi1>
    %180 = vector.broadcast %cst_74 : f32 to vector<8x8x8xf32>
    %181 = arith.select %179, %177, %180 : vector<8x8x8xi1>, vector<8x8x8xf32>
    %cst_75 = arith.constant dense<0xFF800000> : vector<8x8xf32>
    %182 = vector.multi_reduction <maximumf>, %181, %cst_75 [2] : vector<8x8x8xf32> to vector<8x8xf32>
    %183 = vector.shape_cast %182 : vector<8x8xf32> to vector<8x8x1xf32>
    %184 = vector.broadcast %183 : vector<8x8x1xf32> to vector<8x8x8xf32>
    %185 = arith.subf %181, %184 : vector<8x8x8xf32>
    %186 = math.exp %185 : vector<8x8x8xf32>
    %cst_76 = arith.constant dense<0.000000e+00> : vector<8x8xf32>
    %187 = vector.multi_reduction <add>, %186, %cst_76 [2] : vector<8x8x8xf32> to vector<8x8xf32>
    %188 = vector.shape_cast %187 : vector<8x8xf32> to vector<8x8x1xf32>
    %189 = tpu.reciprocal %188 {approx = true} : vector<8x8x1xf32> -> vector<8x8x1xf32>
    %190 = vector.broadcast %189 : vector<8x8x1xf32> to vector<8x8x8xf32>
    %191 = arith.mulf %186, %190 : vector<8x8x8xf32>
    "tpu.trace_start"() <{level = 10 : i32, message = "nqk,nkd->nqd"}> : () -> ()
    %cst_77 = arith.constant dense<0.000000e+00> : vector<8x8x8xf32>
    %192 = tpu.matmul %191, %174, %cst_77 {dimension_numbers = #tpu.dot_dimension_numbers<[2], [1], [1], [2], [0, 0, 0, 1, 1, 2], [0], [0]>} : vector<8x8x8xf32>, vector<8x8x8xf32>, vector<8x8x8xf32> -> vector<8x8x8xf32>
    "tpu.trace_stop"() : () -> ()
    %193 = vector.extract_strided_slice %192 {offsets = [0, 0, 0], sizes = [2, 8, 8], strides = [1, 1, 1]} : vector<8x8x8xf32> to vector<2x8x8xf32>
    %194 = vector.extract_strided_slice %192 {offsets = [2, 0, 0], sizes = [2, 8, 8], strides = [1, 1, 1]} : vector<8x8x8xf32> to vector<2x8x8xf32>
    %195 = vector.extract_strided_slice %192 {offsets = [4, 0, 0], sizes = [2, 8, 8], strides = [1, 1, 1]} : vector<8x8x8xf32> to vector<2x8x8xf32>
    %196 = vector.extract_strided_slice %192 {offsets = [6, 0, 0], sizes = [2, 8, 8], strides = [1, 1, 1]} : vector<8x8x8xf32> to vector<2x8x8xf32>
    %197 = tpu.concatenate %193, %194, %195, %196 in 2 : vector<2x8x8xf32>, vector<2x8x8xf32>, vector<2x8x8xf32>, vector<2x8x8xf32> -> vector<2x8x32xf32>
    %198 = vector.shape_cast %197 : vector<2x8x32xf32> to vector<16x32xf32>
    %cst_78 = arith.constant dense<0.000000e+00> : vector<16x32xf32>
    %199 = tpu.matmul %198, %92, %cst_78 {dimension_numbers = #tpu.dot_dimension_numbers<[1], [0], [0], [1], [0, 0, 1, 1], [], []>} : vector<16x32xf32>, vector<32x32xf32>, vector<16x32xf32> -> vector<16x32xf32>
    %200 = arith.addf %13, %199 : vector<16x32xf32>
    %201 = vector.broadcast %131 : vector<1x32xf32> to vector<16x32xf32>
    %202 = arith.addf %200, %201 : vector<16x32xf32>
    %cst_79 = arith.constant dense<0.000000e+00> : vector<16xf32>
    %203 = vector.multi_reduction <add>, %202, %cst_79 [1] : vector<16x32xf32> to vector<16xf32>
    %204 = vector.shape_cast %203 : vector<16xf32> to vector<16x1xf32>
    %cst_80 = arith.constant 3.200000e+01 : f32
    %205 = vector.broadcast %cst_80 : f32 to vector<16x1xf32>
    %206 = arith.divf %204, %205 : vector<16x1xf32>
    %207 = vector.broadcast %206 : vector<16x1xf32> to vector<16x32xf32>
    %208 = arith.subf %202, %207 : vector<16x32xf32>
    %209 = arith.mulf %208, %208 : vector<16x32xf32>
    %cst_81 = arith.constant dense<0.000000e+00> : vector<16xf32>
    %210 = vector.multi_reduction <add>, %209, %cst_81 [1] : vector<16x32xf32> to vector<16xf32>
    %211 = vector.shape_cast %210 : vector<16xf32> to vector<16x1xf32>
    %cst_82 = arith.constant 3.200000e+01 : f32
    %212 = vector.broadcast %cst_82 : f32 to vector<16x1xf32>
    %213 = arith.divf %211, %212 : vector<16x1xf32>
    %214 = vector.broadcast %206 : vector<16x1xf32> to vector<16x32xf32>
    %215 = arith.subf %202, %214 : vector<16x32xf32>
    %cst_83 = arith.constant 9.99999974E-6 : f32
    %216 = vector.broadcast %cst_83 : f32 to vector<16x1xf32>
    %217 = arith.addf %213, %216 : vector<16x1xf32>
    %218 = math.rsqrt %217 : vector<16x1xf32>
    %219 = vector.broadcast %218 : vector<16x1xf32> to vector<16x32xf32>
    %220 = arith.mulf %215, %219 : vector<16x32xf32>
    %221 = vector.broadcast %132 : vector<1x32xf32> to vector<16x32xf32>
    %222 = arith.mulf %220, %221 : vector<16x32xf32>
    %223 = vector.broadcast %133 : vector<1x32xf32> to vector<16x32xf32>
    %224 = arith.addf %222, %223 : vector<16x32xf32>
    %cst_84 = arith.constant dense<0.000000e+00> : vector<16x128xf32>
    %225 = tpu.matmul %224, %104, %cst_84 {dimension_numbers = #tpu.dot_dimension_numbers<[1], [0], [0], [1], [0, 0, 1, 1], [], []>} : vector<16x32xf32>, vector<32x128xf32>, vector<16x128xf32> -> vector<16x128xf32>
    %226 = vector.broadcast %135 : vector<1x128xf32> to vector<16x128xf32>
    %227 = arith.addf %225, %226 : vector<16x128xf32>
    %cst_85 = arith.constant 5.000000e-01 : f32
    %228 = vector.broadcast %cst_85 : f32 to vector<16x128xf32>
    %229 = arith.mulf %228, %227 : vector<16x128xf32>
    %230 = arith.mulf %227, %227 : vector<16x128xf32>
    %231 = arith.mulf %227, %230 : vector<16x128xf32>
    %cst_86 = arith.constant 4.471500e-02 : f32
    %232 = vector.broadcast %cst_86 : f32 to vector<16x128xf32>
    %233 = arith.mulf %232, %231 : vector<16x128xf32>
    %234 = arith.addf %227, %233 : vector<16x128xf32>
    %cst_87 = arith.constant 0.797884583 : f32
    %235 = vector.broadcast %cst_87 : f32 to vector<16x128xf32>
    %236 = arith.mulf %235, %234 : vector<16x128xf32>
    %237 = math.tanh %236 : vector<16x128xf32>
    %cst_88 = arith.constant 1.000000e+00 : f32
    %238 = vector.broadcast %cst_88 : f32 to vector<16x128xf32>
    %239 = arith.addf %238, %237 : vector<16x128xf32>
    %240 = arith.mulf %229, %239 : vector<16x128xf32>
    %cst_89 = arith.constant dense<0.000000e+00> : vector<16x32xf32>
    %241 = tpu.matmul %240, %116, %cst_89 {dimension_numbers = #tpu.dot_dimension_numbers<[1], [0], [0], [1], [0, 0, 1, 1], [], []>} : vector<16x128xf32>, vector<128x32xf32>, vector<16x32xf32> -> vector<16x32xf32>
    %242 = vector.broadcast %134 : vector<1x32xf32> to vector<16x32xf32>
    %243 = arith.addf %241, %242 : vector<16x32xf32>
    %244 = arith.addf %202, %243 : vector<16x32xf32>
    %cst_90 = arith.constant dense<0.000000e+00> : vector<16x32xf32>
    %245 = tpu.matmul %13, %19, %cst_90 {dimension_numbers = #tpu.dot_dimension_numbers<[1], [0], [0], [1], [0, 0, 1, 1], [], []>} : vector<16x32xf32>, vector<32x32xf32>, vector<16x32xf32> -> vector<16x32xf32>
    %cst_91 = arith.constant dense<0.000000e+00> : vector<16x32xf32>
    %246 = tpu.matmul %244, %20, %cst_91 {dimension_numbers = #tpu.dot_dimension_numbers<[1], [0], [0], [1], [0, 0, 1, 1], [], []>} : vector<16x32xf32>, vector<32x32xf32>, vector<16x32xf32> -> vector<16x32xf32>
    %247 = arith.addf %245, %246 : vector<16x32xf32>
    %cst_92 = arith.constant dense<0.000000e+00> : vector<32xf32>
    %248 = vector.multi_reduction <add>, %247, %cst_92 [0] : vector<16x32xf32> to vector<32xf32>
    %249 = vector.shape_cast %248 : vector<32xf32> to vector<1x32xf32>
    %cst_93 = arith.constant 1.600000e+01 : f32
    %250 = vector.broadcast %cst_93 : f32 to vector<1x32xf32>
    %251 = arith.divf %249, %250 : vector<1x32xf32>
    %cst_94 = arith.constant dense<0.000000e+00> : vector<1x32xf32>
    %252 = tpu.matmul %251, %21, %cst_94 {dimension_numbers = #tpu.dot_dimension_numbers<[1], [0], [0], [1], [0, 0, 1, 1], [], []>} : vector<1x32xf32>, vector<32x32xf32>, vector<1x32xf32> -> vector<1x32xf32>
    %253 = arith.addf %252, %23 : vector<1x32xf32>
    %cst_95 = arith.constant 5.000000e-01 : f32
    %254 = vector.broadcast %cst_95 : f32 to vector<1x32xf32>
    %255 = arith.mulf %254, %253 : vector<1x32xf32>
    %256 = arith.mulf %253, %253 : vector<1x32xf32>
    %257 = arith.mulf %253, %256 : vector<1x32xf32>
    %cst_96 = arith.constant 4.471500e-02 : f32
    %258 = vector.broadcast %cst_96 : f32 to vector<1x32xf32>
    %259 = arith.mulf %258, %257 : vector<1x32xf32>
    %260 = arith.addf %253, %259 : vector<1x32xf32>
    %cst_97 = arith.constant 0.797884583 : f32
    %261 = vector.broadcast %cst_97 : f32 to vector<1x32xf32>
    %262 = arith.mulf %261, %260 : vector<1x32xf32>
    %263 = math.tanh %262 : vector<1x32xf32>
    %cst_98 = arith.constant 1.000000e+00 : f32
    %264 = vector.broadcast %cst_98 : f32 to vector<1x32xf32>
    %265 = arith.addf %264, %263 : vector<1x32xf32>
    %266 = arith.mulf %255, %265 : vector<1x32xf32>
    %cst_99 = arith.constant dense<0.000000e+00> : vector<1x32xf32>
    %267 = tpu.matmul %266, %22, %cst_99 {dimension_numbers = #tpu.dot_dimension_numbers<[1], [0], [0], [1], [0, 0, 1, 1], [], []>} : vector<1x32xf32>, vector<32x32xf32>, vector<1x32xf32> -> vector<1x32xf32>
    %268 = arith.addf %267, %24 : vector<1x32xf32>
    %c3_i32_100 = arith.constant 3 : i32
    %269 = vector.broadcast %c3_i32_100 : i32 to vector<1x32xi32>
    %270 = arith.cmpi slt, %18, %269 : vector<1x32xi32>
    %cst_101 = arith.constant -3.40282347E+38 : f32
    %271 = vector.broadcast %cst_101 : f32 to vector<1x32xf32>
    %272 = arith.select %270, %268, %271 : vector<1x32xi1>, vector<1x32xf32>
    %cst_102 = arith.constant dense<0xFF800000> : vector<1xf32>
    %273 = vector.multi_reduction <maximumf>, %272, %cst_102 [1] : vector<1x32xf32> to vector<1xf32>
    %274 = vector.shape_cast %273 : vector<1xf32> to vector<1x1xf32>
    %275 = vector.broadcast %274 : vector<1x1xf32> to vector<1x32xf32>
    %276 = arith.cmpf oge, %272, %275 : vector<1x32xf32>
    %c32_i32_103 = arith.constant 32 : i32
    %277 = vector.broadcast %c32_i32_103 : i32 to vector<1x32xi32>
    %278 = arith.select %276, %18, %277 : vector<1x32xi1>, vector<1x32xi32>
    %cst_104 = arith.constant dense<2147483647> : vector<1xi32>
    %279 = vector.multi_reduction <minsi>, %278, %cst_104 [1] : vector<1x32xi32> to vector<1xi32>
    %280 = vector.shape_cast %279 : vector<1xi32> to vector<1x1xi32>
    %281 = vector.broadcast %280 : vector<1x1xi32> to vector<1x32xi32>
    %282 = arith.cmpi eq, %18, %281 : vector<1x32xi32>
    %283 = arith.extui %282 : vector<1x32xi1> to vector<1x32xi32>
    %284 = arith.addi %64, %283 : vector<1x32xi32>
    %c1_i32_105 = arith.constant 1 : i32
    %285 = vector.broadcast %c1_i32_105 : i32 to vector<1x1xi32>
    %286 = arith.cmpi eq, %280, %285 : vector<1x1xi32>
    %c2_i32_106 = arith.constant 2 : i32
    %287 = vector.broadcast %c2_i32_106 : i32 to vector<1x1xi32>
    %288 = arith.cmpi eq, %280, %287 : vector<1x1xi32>
    %c0_107 = arith.constant 0 : index
    %c0_108 = arith.constant 0 : index
    %c0_109 = arith.constant 0 : index
    %289 = vector.load %arg2[%c0_107, %c0_108, %c0_109] : memref<3x32x96xf32, #tpu.memory_space<vmem>>, vector<1x32x96xf32>
    %290 = vector.shape_cast %289 : vector<1x32x96xf32> to vector<32x96xf32>
    %c1_110 = arith.constant 1 : index
    %c0_111 = arith.constant 0 : index
    %c0_112 = arith.constant 0 : index
    %291 = vector.load %arg2[%c1_110, %c0_111, %c0_112] : memref<3x32x96xf32, #tpu.memory_space<vmem>>, vector<1x32x96xf32>
    %292 = vector.shape_cast %291 : vector<1x32x96xf32> to vector<32x96xf32>
    %293 = vector.shape_cast %286 : vector<1x1xi1> to vector<1x1xi1>
    %294 = vector.broadcast %293 : vector<1x1xi1> to vector<32x96xi1>
    %295 = arith.select %294, %292, %290 : vector<32x96xi1>, vector<32x96xf32>
    %c2_113 = arith.constant 2 : index
    %c0_114 = arith.constant 0 : index
    %c0_115 = arith.constant 0 : index
    %296 = vector.load %arg2[%c2_113, %c0_114, %c0_115] : memref<3x32x96xf32, #tpu.memory_space<vmem>>, vector<1x32x96xf32>
    %297 = vector.shape_cast %296 : vector<1x32x96xf32> to vector<32x96xf32>
    %298 = vector.shape_cast %288 : vector<1x1xi1> to vector<1x1xi1>
    %299 = vector.broadcast %298 : vector<1x1xi1> to vector<32x96xi1>
    %300 = arith.select %299, %297, %295 : vector<32x96xi1>, vector<32x96xf32>
    %c0_116 = arith.constant 0 : index
    %c0_117 = arith.constant 0 : index
    %c0_118 = arith.constant 0 : index
    %301 = vector.load %arg3[%c0_116, %c0_117, %c0_118] : memref<3x32x32xf32, #tpu.memory_space<vmem>>, vector<1x32x32xf32>
    %302 = vector.shape_cast %301 : vector<1x32x32xf32> to vector<32x32xf32>
    %c1_119 = arith.constant 1 : index
    %c0_120 = arith.constant 0 : index
    %c0_121 = arith.constant 0 : index
    %303 = vector.load %arg3[%c1_119, %c0_120, %c0_121] : memref<3x32x32xf32, #tpu.memory_space<vmem>>, vector<1x32x32xf32>
    %304 = vector.shape_cast %303 : vector<1x32x32xf32> to vector<32x32xf32>
    %305 = vector.shape_cast %286 : vector<1x1xi1> to vector<1x1xi1>
    %306 = vector.broadcast %305 : vector<1x1xi1> to vector<32x32xi1>
    %307 = arith.select %306, %304, %302 : vector<32x32xi1>, vector<32x32xf32>
    %c2_122 = arith.constant 2 : index
    %c0_123 = arith.constant 0 : index
    %c0_124 = arith.constant 0 : index
    %308 = vector.load %arg3[%c2_122, %c0_123, %c0_124] : memref<3x32x32xf32, #tpu.memory_space<vmem>>, vector<1x32x32xf32>
    %309 = vector.shape_cast %308 : vector<1x32x32xf32> to vector<32x32xf32>
    %310 = vector.shape_cast %288 : vector<1x1xi1> to vector<1x1xi1>
    %311 = vector.broadcast %310 : vector<1x1xi1> to vector<32x32xi1>
    %312 = arith.select %311, %309, %307 : vector<32x32xi1>, vector<32x32xf32>
    %c0_125 = arith.constant 0 : index
    %c0_126 = arith.constant 0 : index
    %c0_127 = arith.constant 0 : index
    %313 = vector.load %arg4[%c0_125, %c0_126, %c0_127] : memref<3x32x128xf32, #tpu.memory_space<vmem>>, vector<1x32x128xf32>
    %314 = vector.shape_cast %313 : vector<1x32x128xf32> to vector<32x128xf32>
    %c1_128 = arith.constant 1 : index
    %c0_129 = arith.constant 0 : index
    %c0_130 = arith.constant 0 : index
    %315 = vector.load %arg4[%c1_128, %c0_129, %c0_130] : memref<3x32x128xf32, #tpu.memory_space<vmem>>, vector<1x32x128xf32>
    %316 = vector.shape_cast %315 : vector<1x32x128xf32> to vector<32x128xf32>
    %317 = vector.shape_cast %286 : vector<1x1xi1> to vector<1x1xi1>
    %318 = vector.broadcast %317 : vector<1x1xi1> to vector<32x128xi1>
    %319 = arith.select %318, %316, %314 : vector<32x128xi1>, vector<32x128xf32>
    %c2_131 = arith.constant 2 : index
    %c0_132 = arith.constant 0 : index
    %c0_133 = arith.constant 0 : index
    %320 = vector.load %arg4[%c2_131, %c0_132, %c0_133] : memref<3x32x128xf32, #tpu.memory_space<vmem>>, vector<1x32x128xf32>
    %321 = vector.shape_cast %320 : vector<1x32x128xf32> to vector<32x128xf32>
    %322 = vector.shape_cast %288 : vector<1x1xi1> to vector<1x1xi1>
    %323 = vector.broadcast %322 : vector<1x1xi1> to vector<32x128xi1>
    %324 = arith.select %323, %321, %319 : vector<32x128xi1>, vector<32x128xf32>
    %c0_134 = arith.constant 0 : index
    %c0_135 = arith.constant 0 : index
    %c0_136 = arith.constant 0 : index
    %325 = vector.load %arg5[%c0_134, %c0_135, %c0_136] : memref<3x128x32xf32, #tpu.memory_space<vmem>>, vector<1x128x32xf32>
    %326 = vector.shape_cast %325 : vector<1x128x32xf32> to vector<128x32xf32>
    %c1_137 = arith.constant 1 : index
    %c0_138 = arith.constant 0 : index
    %c0_139 = arith.constant 0 : index
    %327 = vector.load %arg5[%c1_137, %c0_138, %c0_139] : memref<3x128x32xf32, #tpu.memory_space<vmem>>, vector<1x128x32xf32>
    %328 = vector.shape_cast %327 : vector<1x128x32xf32> to vector<128x32xf32>
    %329 = vector.shape_cast %286 : vector<1x1xi1> to vector<1x1xi1>
    %330 = vector.broadcast %329 : vector<1x1xi1> to vector<128x32xi1>
    %331 = arith.select %330, %328, %326 : vector<128x32xi1>, vector<128x32xf32>
    %c2_140 = arith.constant 2 : index
    %c0_141 = arith.constant 0 : index
    %c0_142 = arith.constant 0 : index
    %332 = vector.load %arg5[%c2_140, %c0_141, %c0_142] : memref<3x128x32xf32, #tpu.memory_space<vmem>>, vector<1x128x32xf32>
    %333 = vector.shape_cast %332 : vector<1x128x32xf32> to vector<128x32xf32>
    %334 = vector.shape_cast %288 : vector<1x1xi1> to vector<1x1xi1>
    %335 = vector.broadcast %334 : vector<1x1xi1> to vector<128x32xi1>
    %336 = arith.select %335, %333, %331 : vector<128x32xi1>, vector<128x32xf32>
    %c0_143 = arith.constant 0 : index
    %c0_144 = arith.constant 0 : index
    %c0_145 = arith.constant 0 : index
    %337 = vector.load %arg6[%c0_143, %c0_144, %c0_145] : memref<3x8x128xf32, #tpu.memory_space<vmem>>, vector<1x8x128xf32>
    %338 = vector.shape_cast %337 : vector<1x8x128xf32> to vector<8x128xf32>
    %c1_146 = arith.constant 1 : index
    %c0_147 = arith.constant 0 : index
    %c0_148 = arith.constant 0 : index
    %339 = vector.load %arg6[%c1_146, %c0_147, %c0_148] : memref<3x8x128xf32, #tpu.memory_space<vmem>>, vector<1x8x128xf32>
    %340 = vector.shape_cast %339 : vector<1x8x128xf32> to vector<8x128xf32>
    %341 = vector.shape_cast %286 : vector<1x1xi1> to vector<1x1xi1>
    %342 = vector.broadcast %341 : vector<1x1xi1> to vector<8x128xi1>
    %343 = arith.select %342, %340, %338 : vector<8x128xi1>, vector<8x128xf32>
    %c2_149 = arith.constant 2 : index
    %c0_150 = arith.constant 0 : index
    %c0_151 = arith.constant 0 : index
    %344 = vector.load %arg6[%c2_149, %c0_150, %c0_151] : memref<3x8x128xf32, #tpu.memory_space<vmem>>, vector<1x8x128xf32>
    %345 = vector.shape_cast %344 : vector<1x8x128xf32> to vector<8x128xf32>
    %346 = vector.shape_cast %288 : vector<1x1xi1> to vector<1x1xi1>
    %347 = vector.broadcast %346 : vector<1x1xi1> to vector<8x128xi1>
    %348 = arith.select %347, %345, %343 : vector<8x128xi1>, vector<8x128xf32>
    %349 = vector.extract_strided_slice %348 {offsets = [0, 0], sizes = [1, 32], strides = [1, 1]} : vector<8x128xf32> to vector<1x32xf32>
    %350 = vector.extract_strided_slice %348 {offsets = [1, 0], sizes = [1, 32], strides = [1, 1]} : vector<8x128xf32> to vector<1x32xf32>
    %351 = vector.extract_strided_slice %348 {offsets = [2, 0], sizes = [1, 32], strides = [1, 1]} : vector<8x128xf32> to vector<1x32xf32>
    %352 = vector.extract_strided_slice %348 {offsets = [3, 0], sizes = [1, 32], strides = [1, 1]} : vector<8x128xf32> to vector<1x32xf32>
    %353 = vector.extract_strided_slice %348 {offsets = [4, 0], sizes = [1, 32], strides = [1, 1]} : vector<8x128xf32> to vector<1x32xf32>
    %354 = vector.extract_strided_slice %348 {offsets = [5, 0], sizes = [1, 32], strides = [1, 1]} : vector<8x128xf32> to vector<1x32xf32>
    %355 = vector.extract_strided_slice %348 {offsets = [6, 0], sizes = [1, 128], strides = [1, 1]} : vector<8x128xf32> to vector<1x128xf32>
    %cst_152 = arith.constant dense<0.000000e+00> : vector<16xf32>
    %356 = vector.multi_reduction <add>, %247, %cst_152 [1] : vector<16x32xf32> to vector<16xf32>
    %357 = vector.shape_cast %356 : vector<16xf32> to vector<16x1xf32>
    %cst_153 = arith.constant 3.200000e+01 : f32
    %358 = vector.broadcast %cst_153 : f32 to vector<16x1xf32>
    %359 = arith.divf %357, %358 : vector<16x1xf32>
    %360 = vector.broadcast %359 : vector<16x1xf32> to vector<16x32xf32>
    %361 = arith.subf %247, %360 : vector<16x32xf32>
    %362 = arith.mulf %361, %361 : vector<16x32xf32>
    %cst_154 = arith.constant dense<0.000000e+00> : vector<16xf32>
    %363 = vector.multi_reduction <add>, %362, %cst_154 [1] : vector<16x32xf32> to vector<16xf32>
    %364 = vector.shape_cast %363 : vector<16xf32> to vector<16x1xf32>
    %cst_155 = arith.constant 3.200000e+01 : f32
    %365 = vector.broadcast %cst_155 : f32 to vector<16x1xf32>
    %366 = arith.divf %364, %365 : vector<16x1xf32>
    %367 = vector.broadcast %359 : vector<16x1xf32> to vector<16x32xf32>
    %368 = arith.subf %247, %367 : vector<16x32xf32>
    %cst_156 = arith.constant 9.99999974E-6 : f32
    %369 = vector.broadcast %cst_156 : f32 to vector<16x1xf32>
    %370 = arith.addf %366, %369 : vector<16x1xf32>
    %371 = math.rsqrt %370 : vector<16x1xf32>
    %372 = vector.broadcast %371 : vector<16x1xf32> to vector<16x32xf32>
    %373 = arith.mulf %368, %372 : vector<16x32xf32>
    %374 = vector.broadcast %349 : vector<1x32xf32> to vector<16x32xf32>
    %375 = arith.mulf %373, %374 : vector<16x32xf32>
    %376 = vector.broadcast %350 : vector<1x32xf32> to vector<16x32xf32>
    %377 = arith.addf %375, %376 : vector<16x32xf32>
    %cst_157 = arith.constant dense<0.000000e+00> : vector<16x96xf32>
    %378 = tpu.matmul %377, %300, %cst_157 {dimension_numbers = #tpu.dot_dimension_numbers<[1], [0], [0], [1], [0, 0, 1, 1], [], []>} : vector<16x32xf32>, vector<32x96xf32>, vector<16x96xf32> -> vector<16x96xf32>
    %379 = vector.shape_cast %378 : vector<16x96xf32> to vector<2x8x96xf32>
    %380 = vector.extract_strided_slice %379 {offsets = [0, 0, 0], sizes = [2, 8, 8], strides = [1, 1, 1]} : vector<2x8x96xf32> to vector<2x8x8xf32>
    %381 = vector.extract_strided_slice %379 {offsets = [0, 0, 8], sizes = [2, 8, 8], strides = [1, 1, 1]} : vector<2x8x96xf32> to vector<2x8x8xf32>
    %382 = vector.extract_strided_slice %379 {offsets = [0, 0, 16], sizes = [2, 8, 8], strides = [1, 1, 1]} : vector<2x8x96xf32> to vector<2x8x8xf32>
    %383 = vector.extract_strided_slice %379 {offsets = [0, 0, 24], sizes = [2, 8, 8], strides = [1, 1, 1]} : vector<2x8x96xf32> to vector<2x8x8xf32>
    %384 = tpu.concatenate %380, %381, %382, %383 in 0 : vector<2x8x8xf32>, vector<2x8x8xf32>, vector<2x8x8xf32>, vector<2x8x8xf32> -> vector<8x8x8xf32>
    %385 = vector.extract_strided_slice %379 {offsets = [0, 0, 32], sizes = [2, 8, 8], strides = [1, 1, 1]} : vector<2x8x96xf32> to vector<2x8x8xf32>
    %386 = vector.extract_strided_slice %379 {offsets = [0, 0, 40], sizes = [2, 8, 8], strides = [1, 1, 1]} : vector<2x8x96xf32> to vector<2x8x8xf32>
    %387 = vector.extract_strided_slice %379 {offsets = [0, 0, 48], sizes = [2, 8, 8], strides = [1, 1, 1]} : vector<2x8x96xf32> to vector<2x8x8xf32>
    %388 = vector.extract_strided_slice %379 {offsets = [0, 0, 56], sizes = [2, 8, 8], strides = [1, 1, 1]} : vector<2x8x96xf32> to vector<2x8x8xf32>
    %389 = tpu.concatenate %385, %386, %387, %388 in 0 : vector<2x8x8xf32>, vector<2x8x8xf32>, vector<2x8x8xf32>, vector<2x8x8xf32> -> vector<8x8x8xf32>
    %390 = vector.extract_strided_slice %379 {offsets = [0, 0, 64], sizes = [2, 8, 8], strides = [1, 1, 1]} : vector<2x8x96xf32> to vector<2x8x8xf32>
    %391 = vector.extract_strided_slice %379 {offsets = [0, 0, 72], sizes = [2, 8, 8], strides = [1, 1, 1]} : vector<2x8x96xf32> to vector<2x8x8xf32>
    %392 = vector.extract_strided_slice %379 {offsets = [0, 0, 80], sizes = [2, 8, 8], strides = [1, 1, 1]} : vector<2x8x96xf32> to vector<2x8x8xf32>
    %393 = vector.extract_strided_slice %379 {offsets = [0, 0, 88], sizes = [2, 8, 8], strides = [1, 1, 1]} : vector<2x8x96xf32> to vector<2x8x8xf32>
    %394 = tpu.concatenate %390, %391, %392, %393 in 0 : vector<2x8x8xf32>, vector<2x8x8xf32>, vector<2x8x8xf32>, vector<2x8x8xf32> -> vector<8x8x8xf32>
    "tpu.trace_start"() <{level = 10 : i32, message = "nqd,nkd->nqk"}> : () -> ()
    %cst_158 = arith.constant dense<0.000000e+00> : vector<8x8x8xf32>
    %395 = tpu.matmul %384, %389, %cst_158 {dimension_numbers = #tpu.dot_dimension_numbers<[2], [2], [1], [1], [0, 0, 0, 1, 1, 1], [0], [0]>} : vector<8x8x8xf32>, vector<8x8x8xf32>, vector<8x8x8xf32> -> vector<8x8x8xf32>
    "tpu.trace_stop"() : () -> ()
    %cst_159 = arith.constant 0.353553385 : f32
    %396 = vector.broadcast %cst_159 : f32 to vector<8x8x8xf32>
    %397 = arith.mulf %395, %396 : vector<8x8x8xf32>
    %cst_160 = arith.constant -3.40282347E+38 : f32
    %398 = vector.shape_cast %17 : vector<1x8x8xi1> to vector<1x8x8xi1>
    %399 = vector.broadcast %398 : vector<1x8x8xi1> to vector<8x8x8xi1>
    %400 = vector.broadcast %cst_160 : f32 to vector<8x8x8xf32>
    %401 = arith.select %399, %397, %400 : vector<8x8x8xi1>, vector<8x8x8xf32>
    %cst_161 = arith.constant dense<0xFF800000> : vector<8x8xf32>
    %402 = vector.multi_reduction <maximumf>, %401, %cst_161 [2] : vector<8x8x8xf32> to vector<8x8xf32>
    %403 = vector.shape_cast %402 : vector<8x8xf32> to vector<8x8x1xf32>
    %404 = vector.broadcast %403 : vector<8x8x1xf32> to vector<8x8x8xf32>
    %405 = arith.subf %401, %404 : vector<8x8x8xf32>
    %406 = math.exp %405 : vector<8x8x8xf32>
    %cst_162 = arith.constant dense<0.000000e+00> : vector<8x8xf32>
    %407 = vector.multi_reduction <add>, %406, %cst_162 [2] : vector<8x8x8xf32> to vector<8x8xf32>
    %408 = vector.shape_cast %407 : vector<8x8xf32> to vector<8x8x1xf32>
    %409 = tpu.reciprocal %408 {approx = true} : vector<8x8x1xf32> -> vector<8x8x1xf32>
    %410 = vector.broadcast %409 : vector<8x8x1xf32> to vector<8x8x8xf32>
    %411 = arith.mulf %406, %410 : vector<8x8x8xf32>
    "tpu.trace_start"() <{level = 10 : i32, message = "nqk,nkd->nqd"}> : () -> ()
    %cst_163 = arith.constant dense<0.000000e+00> : vector<8x8x8xf32>
    %412 = tpu.matmul %411, %394, %cst_163 {dimension_numbers = #tpu.dot_dimension_numbers<[2], [1], [1], [2], [0, 0, 0, 1, 1, 2], [0], [0]>} : vector<8x8x8xf32>, vector<8x8x8xf32>, vector<8x8x8xf32> -> vector<8x8x8xf32>
    "tpu.trace_stop"() : () -> ()
    %413 = vector.extract_strided_slice %412 {offsets = [0, 0, 0], sizes = [2, 8, 8], strides = [1, 1, 1]} : vector<8x8x8xf32> to vector<2x8x8xf32>
    %414 = vector.extract_strided_slice %412 {offsets = [2, 0, 0], sizes = [2, 8, 8], strides = [1, 1, 1]} : vector<8x8x8xf32> to vector<2x8x8xf32>
    %415 = vector.extract_strided_slice %412 {offsets = [4, 0, 0], sizes = [2, 8, 8], strides = [1, 1, 1]} : vector<8x8x8xf32> to vector<2x8x8xf32>
    %416 = vector.extract_strided_slice %412 {offsets = [6, 0, 0], sizes = [2, 8, 8], strides = [1, 1, 1]} : vector<8x8x8xf32> to vector<2x8x8xf32>
    %417 = tpu.concatenate %413, %414, %415, %416 in 2 : vector<2x8x8xf32>, vector<2x8x8xf32>, vector<2x8x8xf32>, vector<2x8x8xf32> -> vector<2x8x32xf32>
    %418 = vector.shape_cast %417 : vector<2x8x32xf32> to vector<16x32xf32>
    %cst_164 = arith.constant dense<0.000000e+00> : vector<16x32xf32>
    %419 = tpu.matmul %418, %312, %cst_164 {dimension_numbers = #tpu.dot_dimension_numbers<[1], [0], [0], [1], [0, 0, 1, 1], [], []>} : vector<16x32xf32>, vector<32x32xf32>, vector<16x32xf32> -> vector<16x32xf32>
    %420 = arith.addf %247, %419 : vector<16x32xf32>
    %421 = vector.broadcast %351 : vector<1x32xf32> to vector<16x32xf32>
    %422 = arith.addf %420, %421 : vector<16x32xf32>
    %cst_165 = arith.constant dense<0.000000e+00> : vector<16xf32>
    %423 = vector.multi_reduction <add>, %422, %cst_165 [1] : vector<16x32xf32> to vector<16xf32>
    %424 = vector.shape_cast %423 : vector<16xf32> to vector<16x1xf32>
    %cst_166 = arith.constant 3.200000e+01 : f32
    %425 = vector.broadcast %cst_166 : f32 to vector<16x1xf32>
    %426 = arith.divf %424, %425 : vector<16x1xf32>
    %427 = vector.broadcast %426 : vector<16x1xf32> to vector<16x32xf32>
    %428 = arith.subf %422, %427 : vector<16x32xf32>
    %429 = arith.mulf %428, %428 : vector<16x32xf32>
    %cst_167 = arith.constant dense<0.000000e+00> : vector<16xf32>
    %430 = vector.multi_reduction <add>, %429, %cst_167 [1] : vector<16x32xf32> to vector<16xf32>
    %431 = vector.shape_cast %430 : vector<16xf32> to vector<16x1xf32>
    %cst_168 = arith.constant 3.200000e+01 : f32
    %432 = vector.broadcast %cst_168 : f32 to vector<16x1xf32>
    %433 = arith.divf %431, %432 : vector<16x1xf32>
    %434 = vector.broadcast %426 : vector<16x1xf32> to vector<16x32xf32>
    %435 = arith.subf %422, %434 : vector<16x32xf32>
    %cst_169 = arith.constant 9.99999974E-6 : f32
    %436 = vector.broadcast %cst_169 : f32 to vector<16x1xf32>
    %437 = arith.addf %433, %436 : vector<16x1xf32>
    %438 = math.rsqrt %437 : vector<16x1xf32>
    %439 = vector.broadcast %438 : vector<16x1xf32> to vector<16x32xf32>
    %440 = arith.mulf %435, %439 : vector<16x32xf32>
    %441 = vector.broadcast %352 : vector<1x32xf32> to vector<16x32xf32>
    %442 = arith.mulf %440, %441 : vector<16x32xf32>
    %443 = vector.broadcast %353 : vector<1x32xf32> to vector<16x32xf32>
    %444 = arith.addf %442, %443 : vector<16x32xf32>
    %cst_170 = arith.constant dense<0.000000e+00> : vector<16x128xf32>
    %445 = tpu.matmul %444, %324, %cst_170 {dimension_numbers = #tpu.dot_dimension_numbers<[1], [0], [0], [1], [0, 0, 1, 1], [], []>} : vector<16x32xf32>, vector<32x128xf32>, vector<16x128xf32> -> vector<16x128xf32>
    %446 = vector.broadcast %355 : vector<1x128xf32> to vector<16x128xf32>
    %447 = arith.addf %445, %446 : vector<16x128xf32>
    %cst_171 = arith.constant 5.000000e-01 : f32
    %448 = vector.broadcast %cst_171 : f32 to vector<16x128xf32>
    %449 = arith.mulf %448, %447 : vector<16x128xf32>
    %450 = arith.mulf %447, %447 : vector<16x128xf32>
    %451 = arith.mulf %447, %450 : vector<16x128xf32>
    %cst_172 = arith.constant 4.471500e-02 : f32
    %452 = vector.broadcast %cst_172 : f32 to vector<16x128xf32>
    %453 = arith.mulf %452, %451 : vector<16x128xf32>
    %454 = arith.addf %447, %453 : vector<16x128xf32>
    %cst_173 = arith.constant 0.797884583 : f32
    %455 = vector.broadcast %cst_173 : f32 to vector<16x128xf32>
    %456 = arith.mulf %455, %454 : vector<16x128xf32>
    %457 = math.tanh %456 : vector<16x128xf32>
    %cst_174 = arith.constant 1.000000e+00 : f32
    %458 = vector.broadcast %cst_174 : f32 to vector<16x128xf32>
    %459 = arith.addf %458, %457 : vector<16x128xf32>
    %460 = arith.mulf %449, %459 : vector<16x128xf32>
    %cst_175 = arith.constant dense<0.000000e+00> : vector<16x32xf32>
    %461 = tpu.matmul %460, %336, %cst_175 {dimension_numbers = #tpu.dot_dimension_numbers<[1], [0], [0], [1], [0, 0, 1, 1], [], []>} : vector<16x128xf32>, vector<128x32xf32>, vector<16x32xf32> -> vector<16x32xf32>
    %462 = vector.broadcast %354 : vector<1x32xf32> to vector<16x32xf32>
    %463 = arith.addf %461, %462 : vector<16x32xf32>
    %464 = arith.addf %422, %463 : vector<16x32xf32>
    %cst_176 = arith.constant dense<0.000000e+00> : vector<16xf32>
    %465 = vector.multi_reduction <add>, %464, %cst_176 [1] : vector<16x32xf32> to vector<16xf32>
    %466 = vector.shape_cast %465 : vector<16xf32> to vector<16x1xf32>
    %cst_177 = arith.constant 3.200000e+01 : f32
    %467 = vector.broadcast %cst_177 : f32 to vector<16x1xf32>
    %468 = arith.divf %466, %467 : vector<16x1xf32>
    %469 = vector.broadcast %468 : vector<16x1xf32> to vector<16x32xf32>
    %470 = arith.subf %464, %469 : vector<16x32xf32>
    %471 = arith.mulf %470, %470 : vector<16x32xf32>
    %cst_178 = arith.constant dense<0.000000e+00> : vector<16xf32>
    %472 = vector.multi_reduction <add>, %471, %cst_178 [1] : vector<16x32xf32> to vector<16xf32>
    %473 = vector.shape_cast %472 : vector<16xf32> to vector<16x1xf32>
    %cst_179 = arith.constant 3.200000e+01 : f32
    %474 = vector.broadcast %cst_179 : f32 to vector<16x1xf32>
    %475 = arith.divf %473, %474 : vector<16x1xf32>
    %476 = vector.broadcast %468 : vector<16x1xf32> to vector<16x32xf32>
    %477 = arith.subf %464, %476 : vector<16x32xf32>
    %cst_180 = arith.constant 9.99999974E-6 : f32
    %478 = vector.broadcast %cst_180 : f32 to vector<16x1xf32>
    %479 = arith.addf %475, %478 : vector<16x1xf32>
    %480 = math.rsqrt %479 : vector<16x1xf32>
    %481 = vector.broadcast %480 : vector<16x1xf32> to vector<16x32xf32>
    %482 = arith.mulf %477, %481 : vector<16x32xf32>
    %483 = vector.broadcast %25 : vector<1x32xf32> to vector<16x32xf32>
    %484 = arith.mulf %482, %483 : vector<16x32xf32>
    %485 = vector.broadcast %26 : vector<1x32xf32> to vector<16x32xf32>
    %486 = arith.addf %484, %485 : vector<16x32xf32>
    %c0_181 = arith.constant 0 : index
    %c0_182 = arith.constant 0 : index
    %487 = vector.load %arg8[%c0_181, %c0_182] : memref<32x64xf32, #tpu.memory_space<vmem>>, vector<32x64xf32>
    %cst_183 = arith.constant dense<0.000000e+00> : vector<16x64xf32>
    %488 = tpu.matmul %486, %487, %cst_183 {dimension_numbers = #tpu.dot_dimension_numbers<[1], [0], [0], [1], [0, 0, 1, 1], [], []>} : vector<16x32xf32>, vector<32x64xf32>, vector<16x64xf32> -> vector<16x64xf32>
    %489 = vector.shape_cast %488 : vector<16x64xf32> to vector<2x8x64xf32>
    %c0_184 = arith.constant 0 : index
    %c0_185 = arith.constant 0 : index
    %c0_186 = arith.constant 0 : index
    %490 = vector.load %arg9[%c0_184, %c0_185, %c0_186] : memref<2x8x64xf32, #tpu.memory_space<vmem>>, vector<2x8x64xf32>
    tpu.vector_store %arg9[%c0_184, %c0_185, %c0_186], %489 {strides = array<i32>} : memref<2x8x64xf32, #tpu.memory_space<vmem>>, vector<2x8x64xf32>,
    %491 = vector.extract_strided_slice %284 {offsets = [0, 0], sizes = [1, 3], strides = [1, 1]} : vector<1x32xi32> to vector<1x3xi32>
    %c0_187 = arith.constant 0 : index
    %c0_188 = arith.constant 0 : index
    %492 = vector.load %arg10[%c0_187, %c0_188] : memref<1x3xi32, #tpu.memory_space<vmem>>, vector<1x3xi32>
    tpu.vector_store %arg10[%c0_187, %c0_188], %491 {strides = array<i32>} : memref<1x3xi32, #tpu.memory_space<vmem>>, vector<1x3xi32>,
    return
  }
}

</mosaic_0001>

<llo_original>
// kernel: forward.1
$region0: #{forward.1}
  #allocation0 [shape = 'u32[]', space=smem, size = 0x4, offset = 0x4, fixed_abs, tag = 'smem constant byte address 0x4 - core index']
  #allocation1 [shape = 'u32[144,128]{1,0:T(1,128)}', space=vmem, size = 0x12000, scoped, tag = 'internal scratch']
  %s0 = inlined_call_operand.vmem [shape: s32[16,1], index: 0, kind: input, shape index: {}]
  %s1 = inlined_call_operand.vmem [shape: f32[80,32], index: 1, kind: input, shape index: {}]
  %s2 = inlined_call_operand.vmem [shape: f32[3,32,96], index: 2, kind: input, shape index: {}]
  %s3 = inlined_call_operand.vmem [shape: f32[3,32,32], index: 3, kind: input, shape index: {}]
  %s4 = inlined_call_operand.vmem [shape: f32[3,32,128], index: 4, kind: input, shape index: {}]
  %s5 = inlined_call_operand.vmem [shape: f32[3,128,32], index: 5, kind: input, shape index: {}]
  %s6 = inlined_call_operand.vmem [shape: f32[3,8,128], index: 6, kind: input, shape index: {}]
  %s7 = inlined_call_operand.vmem [shape: f32[132,32], index: 7, kind: input, shape index: {}]
  %s8 = inlined_call_operand.vmem [shape: f32[32,64], index: 8, kind: input, shape index: {}]
  %s9 = inlined_call_operand.hbm [shape: f32[2,8,64], index: 9, kind: output, shape index: {0}]
  %s10 = inlined_call_operand.hbm [shape: s32[1,3], index: 10, kind: output, shape index: {1}]
  %11 = xla_tuple %s9, %s10
  %s12 = sld [smem:[#allocation0]]
  $region54: #{forward.1} parent=0
    _
  %s14 = ssub.s32 1, %s12
  %s15 = scalar_select 0, %s14, %s12
  $region1: #{forward.1} parent=0
    #allocation2 [shape = 'u8[8192]{0}', space=vmem, size = 0x2000, scoped, tag = 'output window, operand 0, single buffered']
    #allocation3 [shape = 's32[1]{0}', space=sflag, size = 0x4, scoped, tag = 'scoped memory for forward.1']
    #allocation4 [shape = 'u8[512]{0}', space=vmem, size = 0x400, scoped, tag = 'output window, operand 1, single buffered']
    #allocation5 [shape = 's32[1]{0}', space=sflag, size = 0x4, scoped, tag = 'scoped memory for forward.1']
    %16 = vsyncpa [#allocation3], 0
    %17 = vsyncpa [#allocation5], 0
    // Predicated region
    $region2: #{forward.1} parent=1 // pred_check
      _
    $region3: #{forward.1} parent=1 // pred_check_branch
      %19 = sbr.rel (0) target = $region5
    $region4: #{forward.1} parent=1 // pred_region
      _
    $region5: #{forward.1} parent=1 // pred_fallthru
      _
    // Predicated region
    $region6: #{forward.1} parent=1 // pred_check
      _
    $region7: #{forward.1} parent=1 // pred_check_branch
      %21 = sbr.rel (0) target = $region9
    $region8: #{forward.1} parent=1 // pred_region
      _
    $region9: #{forward.1} parent=1 // pred_fallthru
      _
    // Predicated region
    $region10: #{forward.1} parent=1 // pred_check
      _
    $region11: #{forward.1} parent=1 // pred_check_branch
      %23 = sbr.rel (0) target = $region13
    $region12: #{forward.1} parent=1 // pred_region
      _
    $region13: #{forward.1} parent=1 // pred_fallthru
      _
    // Predicated region
    $region14: #{forward.1} parent=1 // pred_check
      _
    $region15: #{forward.1} parent=1 // pred_check_branch
      %25 = sbr.rel (0) target = $region17
    $region16: #{forward.1} parent=1 // pred_region
      _
    $region17: #{forward.1} parent=1 // pred_fallthru
      _
    // Predicated region
    $region18: #{forward.1} parent=1 // pred_check
      _
    $region19: #{forward.1} parent=1 // pred_check_branch
      %27 = sbr.rel (0) target = $region21
    $region20: #{forward.1} parent=1 // pred_region
      _
    $region21: #{forward.1} parent=1 // pred_fallthru
      _
    // Predicated region
    $region22: #{forward.1} parent=1 // pred_check
      _
    $region23: #{forward.1} parent=1 // pred_check_branch
      %29 = sbr.rel (0) target = $region25
    $region24: #{forward.1} parent=1 // pred_region
      _
    $region25: #{forward.1} parent=1 // pred_fallthru
      _
    // Predicated region
    $region26: #{forward.1} parent=1 // pred_check
      _
    $region27: #{forward.1} parent=1 // pred_check_branch
      %31 = sbr.rel (0) target = $region29
    $region28: #{forward.1} parent=1 // pred_region
      _
    $region29: #{forward.1} parent=1 // pred_fallthru
      _
    // Predicated region
    $region30: #{forward.1} parent=1 // pred_check
      _
    $region31: #{forward.1} parent=1 // pred_check_branch
      %33 = sbr.rel (0) target = $region33
    $region32: #{forward.1} parent=1 // pred_region
      _
    $region33: #{forward.1} parent=1 // pred_fallthru
      _
    // Predicated region
    $region34: #{forward.1} parent=1 // pred_check
      _
    $region35: #{forward.1} parent=1 // pred_check_branch
      %35 = sbr.rel (0) target = $region37
    $region36: #{forward.1} parent=1 // pred_region
      _
    $region37: #{forward.1} parent=1 // pred_fallthru
      _
    %v36 = vlaneseq
    %v37 = vand.u32 %v36, 127
    %v38 = vlaneseq
    %v39 = vshrl.u32 %v38, 7
    %v40 = vld [vmem:[%s0] sm:$0xff]
    %v41 = vld [vmem:[%s0 + $0x8] sm:$0xff]
    %42 = vset.pattern.permute.xlu0 0
    %43 = vperm.xlu0 %42, %v40
    %v44 = vpop.permute.xlu0 %43
    %45 = vset.pattern.permute.xlu0 0
    %46 = vperm.xlu0 %45, %v41
    %v47 = vpop.permute.xlu0 %46
    %vm48 = vcmp.eq.s32.totalorder %v37, %v44
    %vm49 = vcmp.eq.s32.totalorder %v37, %v47
    %v50 = vadd.s32 %v39, 64
    %vm51 = vcmp.eq.s32.totalorder %v37, %v50
    %vm52 = vmor %vm48, %vm51
    %vm53 = vmor %vm49, %vm51
    %v54 = vsel %vm52, 1, 0
    %v55 = vsel %vm53, 1, 0
    %v56 = vcvt.s32.f32 %v54
    %v57 = vcvt.s32.f32 %v55
    %v58 = vld [vmem:[%s1] sm:$0xff]
    %v59 = vld [vmem:[%s1 + $0x8] sm:$0xff]
    %v60 = vld [vmem:[%s1 + $0x10] sm:$0xff]
    %v61 = vld [vmem:[%s1 + $0x18] sm:$0xff]
    %v62 = vld [vmem:[%s1 + $0x20] sm:$0xff]
    %v63 = vld [vmem:[%s1 + $0x28] sm:$0xff]
    %v64 = vld [vmem:[%s1 + $0x30] sm:$0xff]
    %v65 = vld [vmem:[%s1 + $0x38] sm:$0xff]
    %v66 = vld [vmem:[%s1 + $0x40] sm:$0xff]
    %v67 = vld [vmem:[%s1 + $0x48] sm:$0xff]
    %vm68 = vcmask 654336
    %v70 = vsel %vm68, %v56, 0
    %v73 = vsel %vm68, %v57, 0
    %75 = vmatprep.subr.mxu0 0.0
    %76 = vmatpush1.msra.mxu0 %v58
    %77 = vmatprep.subr.mxu0 0.0
    %78 = vmatpush1.msra.mxu0 %v59
    %79 = vmatprep.subr.mxu0 0.0
    %80 = vmatpush1.msra.mxu0 %v60
    %81 = vmatprep.subr.mxu0 0.0
    %82 = vmatpush1.msra.mxu0 %v61
    %83 = vmatprep.subr.mxu0 0.0
    %84 = vmatpush1.msra.mxu0 %v62
    %85 = vmatprep.subr.mxu0 0.0
    %86 = vmatpush1.msra.mxu0 %v63
    %87 = vmatprep.subr.mxu0 0.0
    %88 = vmatpush1.msra.mxu0 %v64
    %89 = vmatprep.subr.mxu0 0.0
    %90 = vmatpush1.msra.mxu0 %v65
    %91 = vmatprep.subr.mxu0 0.0
    %92 = vmatpush1.msra.mxu0 %v66
    %93 = vmatprep.subr.mxu0 0.0
    %94 = vmatpush1.msra.mxu0 %v67
    %95 = vmatprep.subr.mxu0 0.0
    %96 = vmatpush1.msra.mxu0 0.0
    %97 = vmatprep.subr.mxu0 0.0
    %98 = vmatpush1.msra.mxu0 0.0
    %99 = vmatprep.subr.mxu0 0.0
    %100 = vmatpush1.msra.mxu0 0.0
    %101 = vmatprep.subr.mxu0 0.0
    %102 = vmatpush1.msra.mxu0 0.0
    %103 = vmatprep.subr.mxu0 0.0
    %104 = vmatpush1.msra.mxu0 0.0
    %105 = vmatprep.subr.mxu0 0.0
    %106 = vmatpush1.msra.mxu0 0.0
    %107 = vmatprep.subr.mxu0 0.0
    %108 = vmatpush1.msra.mxu0 0.0
    %109 = vmatprep.subr.mxu0 0.0
    %110 = vmatpush1.msra.mxu0 0.0
    %111 = vmatprep.subr.mxu0 0.0
    %112 = vmatpush1.msra.mxu0 0.0
    %113 = vmatprep.subr.mxu0 0.0
    %114 = vmatpush1.msra.mxu0 0.0
    %115 = vmatprep.subr.mxu0 0.0
    %116 = vmatpush1.msra.mxu0 0.0
    %117 = vmatprep.subr.mxu0 0.0
    %118 = vmatpush1.msra.mxu0 0.0
    %119 = vmatprep.subr.mxu0 0.0
    %120 = vmatpush1.msra.mxu0 0.0
    %121 = vmatprep.subr.mxu0 0.0
    %122 = vmatpush1.msra.mxu0 0.0
    %123 = vmatprep.subr.mxu0 0.0
    %124 = vmatpush1.msra.mxu0 0.0
    %125 = vmatprep.subr.mxu0 0.0
    %126 = vmatpush1.msra.mxu0 0.0
    %127 = vmatprep.subr.mxu0 0.0
    %128 = vmatpush1.msra.mxu0 0.0
    %129 = vmatprep.subr.mxu0 0.0
    %130 = vmatpush1.msra.mxu0 0.0
    %131 = vmatprep.subr.mxu0 0.0
    %132 = vmatpush1.msra.mxu0 0.0
    %133 = vmatprep.subr.mxu0 0.0
    %134 = vmatpush1.msra.mxu0 0.0
    %135 = vmatprep.subr.mxu0 0.0
    %136 = vmatpush1.msra.mxu0 0.0
    %137 = vmatprep.subr.mxu0 0.0
    %138 = vmatpush1.msra.mxu0 0.0
    %139 = vmatprep.mubr.f32.mxu0 0.0
    %140 = vmatmul.mubr.f32.gmra.mrb[0].mxu0 %v70
    %v141 = vpop.f32.mrb[0].mxu0
    %v142 = vadd.f32 0.0, %v141
    %v143 = vpop.f32.mrb[0].mxu0
    %144 = vmatprep.mubr.f32.mxu0 0.0
    %145 = vmatmul.mubr.f32.gmra.mrb[0].mxu0 %v73
    %v146 = vpop.f32.mrb[0].mxu0
    %v147 = vadd.f32 0.0, %v146
    %v148 = vpop.f32.mrb[0].mxu0
    %149 = vdwg.mxu0
    %vm150 = vcmp.ge.s32.totalorder %v39, %v37
    %v151 = vld [vmem:[%s7] sm:$0xff]
    %v152 = vld [vmem:[%s7 + $0x8] sm:$0xff]
    %v153 = vld [vmem:[%s7 + $0x10] sm:$0xff]
    %v154 = vld [vmem:[%s7 + $0x18] sm:$0xff]
    %v155 = vld [vmem:[%s7 + $0x20] sm:$0xff]
    %v156 = vld [vmem:[%s7 + $0x28] sm:$0xff]
    %v157 = vld [vmem:[%s7 + $0x30] sm:$0xff]
    %v158 = vld [vmem:[%s7 + $0x38] sm:$0xff]
    %v159 = vld [vmem:[%s7 + $0x40] sm:$0xff]
    %v160 = vld [vmem:[%s7 + $0x48] sm:$0xff]
    %v161 = vld [vmem:[%s7 + $0x50] sm:$0xff]
    %v162 = vld [vmem:[%s7 + $0x58] sm:$0xff]
    %v163 = vld [vmem:[%s7 + $0x60] sm:$0xff]
    %v164 = vld [vmem:[%s7 + $0x68] sm:$0xff]
    %v165 = vld [vmem:[%s7 + $0x70] sm:$0xff]
    %v166 = vld [vmem:[%s7 + $0x78] sm:$0xff]
    %v167 = vld [vmem:[%s7 + $0x80] sm:$0x1]
    %v168 = vld [vmem:[%s7 + $0x81] sm:$0x1]
    %v169 = vld [vmem:[%s7 + $0x82] sm:$0x1]
    %v170 = vld [vmem:[%s7 + $0x83] sm:$0x1]
    %vm171 = vcmask 261120
    %v172 = vsel %vm171, %v142, 0.0
    %v173 = vsel %vm171, %v147, 0.0
    %v174 = vadd.f32 %v172, %v173
    %v175 = vrot.slane %v174, 4
    %v176 = vadd.f32 %v174, %v175
    %v177 = vrot.slane %v176, 2
    %v178 = vadd.f32 %v176, %v177
    %v179 = vrot.slane %v178, 1
    %v180 = vadd.f32 %v178, %v179
    %v181 = vrcp.pop 16.0
    %v182 = vmul.f32 %v180, %v181
    %v184 = vsel %vm171, %v182, 0
    %186 = vmatprep.subr.mxu0 0.0
    %187 = vmatpush1.msra.mxu0 %v159
    %188 = vmatprep.subr.mxu0 0.0
    %189 = vmatpush1.msra.mxu0 %v160
    %190 = vmatprep.subr.mxu0 0.0
    %191 = vmatpush1.msra.mxu0 %v161
    %192 = vmatprep.subr.mxu0 0.0
    %193 = vmatpush1.msra.mxu0 %v162
    %194 = vmatprep.subr.mxu0 0.0
    %195 = vmatpush1.msra.mxu0 0.0
    %196 = vmatprep.subr.mxu0 0.0
    %197 = vmatpush1.msra.mxu0 0.0
    %198 = vmatprep.subr.mxu0 0.0
    %199 = vmatpush1.msra.mxu0 0.0
    %200 = vmatprep.subr.mxu0 0.0
    %201 = vmatpush1.msra.mxu0 0.0
    %202 = vmatprep.subr.mxu0 0.0
    %203 = vmatpush1.msra.mxu0 0.0
    %204 = vmatprep.subr.mxu0 0.0
    %205 = vmatpush1.msra.mxu0 0.0
    %206 = vmatprep.subr.mxu0 0.0
    %207 = vmatpush1.msra.mxu0 0.0
    %208 = vmatprep.subr.mxu0 0.0
    %209 = vmatpush1.msra.mxu0 0.0
    %210 = vmatprep.subr.mxu0 0.0
    %211 = vmatpush1.msra.mxu0 0.0
    %212 = vmatprep.subr.mxu0 0.0
    %213 = vmatpush1.msra.mxu0 0.0
    %214 = vmatprep.subr.mxu0 0.0
    %215 = vmatpush1.msra.mxu0 0.0
    %216 = vmatprep.subr.mxu0 0.0
    %217 = vmatpush1.msra.mxu0 0.0
    %218 = vmatprep.subr.mxu0 0.0
    %219 = vmatpush1.msra.mxu0 0.0
    %220 = vmatprep.subr.mxu0 0.0
    %221 = vmatpush1.msra.mxu0 0.0
    %222 = vmatprep.subr.mxu0 0.0
    %223 = vmatpush1.msra.mxu0 0.0
    %224 = vmatprep.subr.mxu0 0.0
    %225 = vmatpush1.msra.mxu0 0.0
    %226 = vmatprep.subr.mxu0 0.0
    %227 = vmatpush1.msra.mxu0 0.0
    %228 = vmatprep.subr.mxu0 0.0
    %229 = vmatpush1.msra.mxu0 0.0
    %230 = vmatprep.subr.mxu0 0.0
    %231 = vmatpush1.msra.mxu0 0.0
    %232 = vmatprep.subr.mxu0 0.0
    %233 = vmatpush1.msra.mxu0 0.0
    %234 = vmatprep.subr.mxu0 0.0
    %235 = vmatpush1.msra.mxu0 0.0
    %236 = vmatprep.subr.mxu0 0.0
    %237 = vmatpush1.msra.mxu0 0.0
    %238 = vmatprep.subr.mxu0 0.0
    %239 = vmatpush1.msra.mxu0 0.0
    %240 = vmatprep.subr.mxu0 0.0
    %241 = vmatpush1.msra.mxu0 0.0
    %242 = vmatprep.subr.mxu0 0.0
    %243 = vmatpush1.msra.mxu0 0.0
    %244 = vmatprep.subr.mxu0 0.0
    %245 = vmatpush1.msra.mxu0 0.0
    %246 = vmatprep.subr.mxu0 0.0
    %247 = vmatpush1.msra.mxu0 0.0
    %248 = vmatprep.subr.mxu0 0.0
    %249 = vmatpush1.msra.mxu0 0.0
    %250 = vmatprep.mubr.f32.mxu0 0.0
    %251 = vmatmul.mubr.f32.gmra.mrb[0].mxu0 %v184
    %v252 = vpop.f32.mrb[0].mxu0
    %v253 = vadd.f32 %v167, %v252
    %v254 = vpop.f32.mrb[0].mxu0
    %255 = vdwg.mxu0
    %v256 = vmul.f32 %v253, 0.5
    %v257 = vmul.f32 %v253, %v253
    %v258 = vmul.f32 %v253, %v257
    %v259 = vmul.f32 %v258, 0.044715
    %v260 = vadd.f32 %v253, %v259
    %v261 = vmul.f32 %v260, 0.7978846
    %v262 = vtanh.pop %v261
    %v263 = vadd.f32 %v262, 1.0
    %v264 = vmul.f32 %v256, %v263
    %v266 = vsel %vm171, %v264, 0
    %268 = vmatprep.subr.mxu0 0.0
    %269 = vmatpush1.msra.mxu0 %v163
    %270 = vmatprep.subr.mxu0 0.0
    %271 = vmatpush1.msra.mxu0 %v164
    %272 = vmatprep.subr.mxu0 0.0
    %273 = vmatpush1.msra.mxu0 %v165
    %274 = vmatprep.subr.mxu0 0.0
    %275 = vmatpush1.msra.mxu0 %v166
    %276 = vmatprep.subr.mxu0 0.0
    %277 = vmatpush1.msra.mxu0 0.0
    %278 = vmatprep.subr.mxu0 0.0
    %279 = vmatpush1.msra.mxu0 0.0
    %280 = vmatprep.subr.mxu0 0.0
    %281 = vmatpush1.msra.mxu0 0.0
    %282 = vmatprep.subr.mxu0 0.0
    %283 = vmatpush1.msra.mxu0 0.0
    %284 = vmatprep.subr.mxu0 0.0
    %285 = vmatpush1.msra.mxu0 0.0
    %286 = vmatprep.subr.mxu0 0.0
    %287 = vmatpush1.msra.mxu0 0.0
    %288 = vmatprep.subr.mxu0 0.0
    %289 = vmatpush1.msra.mxu0 0.0
    %290 = vmatprep.subr.mxu0 0.0
    %291 = vmatpush1.msra.mxu0 0.0
    %292 = vmatprep.subr.mxu0 0.0
    %293 = vmatpush1.msra.mxu0 0.0
    %294 = vmatprep.subr.mxu0 0.0
    %295 = vmatpush1.msra.mxu0 0.0
    %296 = vmatprep.subr.mxu0 0.0
    %297 = vmatpush1.msra.mxu0 0.0
    %298 = vmatprep.subr.mxu0 0.0
    %299 = vmatpush1.msra.mxu0 0.0
    %300 = vmatprep.subr.mxu0 0.0
    %301 = vmatpush1.msra.mxu0 0.0
    %302 = vmatprep.subr.mxu0 0.0
    %303 = vmatpush1.msra.mxu0 0.0
    %304 = vmatprep.subr.mxu0 0.0
    %305 = vmatpush1.msra.mxu0 0.0
    %306 = vmatprep.subr.mxu0 0.0
    %307 = vmatpush1.msra.mxu0 0.0
    %308 = vmatprep.subr.mxu0 0.0
    %309 = vmatpush1.msra.mxu0 0.0
    %310 = vmatprep.subr.mxu0 0.0
    %311 = vmatpush1.msra.mxu0 0.0
    %312 = vmatprep.subr.mxu0 0.0
    %313 = vmatpush1.msra.mxu0 0.0
    %314 = vmatprep.subr.mxu0 0.0
    %315 = vmatpush1.msra.mxu0 0.0
    %316 = vmatprep.subr.mxu0 0.0
    %317 = vmatpush1.msra.mxu0 0.0
    %318 = vmatprep.subr.mxu0 0.0
    %319 = vmatpush1.msra.mxu0 0.0
    %320 = vmatprep.subr.mxu0 0.0
    %321 = vmatpush1.msra.mxu0 0.0
    %322 = vmatprep.subr.mxu0 0.0
    %323 = vmatpush1.msra.mxu0 0.0
    %324 = vmatprep.subr.mxu0 0.0
    %325 = vmatpush1.msra.mxu0 0.0
    %326 = vmatprep.subr.mxu0 0.0
    %327 = vmatpush1.msra.mxu0 0.0
    %328 = vmatprep.subr.mxu0 0.0
    %329 = vmatpush1.msra.mxu0 0.0
    %330 = vmatprep.subr.mxu0 0.0
    %331 = vmatpush1.msra.mxu0 0.0
    %332 = vmatprep.mubr.f32.mxu0 0.0
    %333 = vmatmul.mubr.f32.gmra.mrb[0].mxu0 %v266
    %v334 = vpop.f32.mrb[0].mxu0
    %v335 = vadd.f32 %v168, %v334
    %v336 = vpop.f32.mrb[0].mxu0
    %337 = vdwg.mxu0
    %vm338 = vcmp.lt.s32.totalorder %v37, 3
    %v339 = vsel %vm338, %v335, -3.4028235e+38
    %vm340 = vcmask 253952
    %v341 = vsel %vm340, %v339, -inf
    %342 = vmax.xlane.f32.xlu0 %v341
    %v343 = vpop.xlane.xlu0 %342
    %vm344 = vcmp.ge.f32.partialorder %v339, %v343
    %v345 = vsel %vm344, %v37, 32
    %v346 = vsel %vm340, %v345, 2147483647
    %v347 = vand.u32 %v346, 65535
    %v348 = vshra.s32 %v346, 16
    %v349 = vcvt.s32.f32 %v347
    %v350 = vcvt.s32.f32 %v348
    %351 = vmin.xlane.f32.xlu0 %v350
    %v352 = vpop.xlane.xlu0 %351
    %vm353 = vcmp.eq.f32.partialorder %v350, %v352
    %v354 = vsel %vm353, %v349, inf
    %355 = vmin.xlane.f32.xlu0 %v354
    %v356 = vpop.xlane.xlu0 %355
    %v357 = vcvt.f32.s32 %v356
    %v358 = vcvt.f32.s32 %v352
    %v359 = vshll.u32 %v358, 16
    %v360 = vadd.s32 %v359, %v357
    %vm361 = vcmp.eq.s32.totalorder %v37, %v360
    %v362 = vsel %vm361, 1, 0
    %vm363 = vcmp.eq.s32.totalorder %v360, 1
    %vm364 = vcmp.eq.s32.totalorder %v360, 2
    %v365 = vld [vmem:[%s2] sm:$0xff]
    %v366 = vld [vmem:[%s2 + $0x8] sm:$0xff]
    %v367 = vld [vmem:[%s2 + $0x10] sm:$0xff]
    %v368 = vld [vmem:[%s2 + $0x18] sm:$0xff]
    %s369 = scalar_lea.vmem %s2, 32
    %v370 = vld [vmem:[%s369] sm:$0xff]
    %v371 = vld [vmem:[%s369 + $0x8] sm:$0xff]
    %v372 = vld [vmem:[%s369 + $0x10] sm:$0xff]
    %v373 = vld [vmem:[%s369 + $0x18] sm:$0xff]
    %v374 = vsel %vm363, 1, 0
    %v375 = vlaneseq
    %v376 = vshrl.u32 %v375, 7
    %v377 = vsub.s32 0, %v376
    %v378 = vrot.slane %v374, %v377
    %vm379 = vcmp.eq.s32.totalorder %v378, 1
    %v380 = vsel %vm379, %v370, %v365
    %v381 = vsel %vm379, %v371, %v366
    %v382 = vsel %vm379, %v372, %v367
    %v383 = vsel %vm379, %v373, %v368
    %s384 = scalar_lea.vmem %s2, 64
    %v385 = vld [vmem:[%s384] sm:$0xff]
    %v386 = vld [vmem:[%s384 + $0x8] sm:$0xff]
    %v387 = vld [vmem:[%s384 + $0x10] sm:$0xff]
    %v388 = vld [vmem:[%s384 + $0x18] sm:$0xff]
    %v389 = vsel %vm364, 1, 0
    %v390 = vlaneseq
    %v391 = vshrl.u32 %v390, 7
    %v392 = vsub.s32 0, %v391
    %v393 = vrot.slane %v389, %v392
    %vm394 = vcmp.eq.s32.totalorder %v393, 1
    %v395 = vsel %vm394, %v385, %v380
    %v396 = vsel %vm394, %v386, %v381
    %v397 = vsel %vm394, %v387, %v382
    %v398 = vsel %vm394, %v388, %v383
    %v399 = vld [vmem:[%s3] sm:$0xff]
    %v400 = vld [vmem:[%s3 + $0x8] sm:$0xff]
    %v401 = vld [vmem:[%s3 + $0x10] sm:$0xff]
    %v402 = vld [vmem:[%s3 + $0x18] sm:$0xff]
    %s403 = scalar_lea.vmem %s3, 32
    %v404 = vld [vmem:[%s403] sm:$0xff]
    %v405 = vld [vmem:[%s403 + $0x8] sm:$0xff]
    %v406 = vld [vmem:[%s403 + $0x10] sm:$0xff]
    %v407 = vld [vmem:[%s403 + $0x18] sm:$0xff]
    %v408 = vsel %vm379, %v404, %v399
    %v409 = vsel %vm379, %v405, %v400
    %v410 = vsel %vm379, %v406, %v401
    %v411 = vsel %vm379, %v407, %v402
    %s412 = scalar_lea.vmem %s3, 64
    %v413 = vld [vmem:[%s412] sm:$0xff]
    %v414 = vld [vmem:[%s412 + $0x8] sm:$0xff]
    %v415 = vld [vmem:[%s412 + $0x10] sm:$0xff]
    %v416 = vld [vmem:[%s412 + $0x18] sm:$0xff]
    %v417 = vsel %vm394, %v413, %v408
    %v418 = vsel %vm394, %v414, %v409
    %v419 = vsel %vm394, %v415, %v410
    %v420 = vsel %vm394, %v416, %v411
    %v421 = vld [vmem:[%s4] sm:$0xff]
    %v422 = vld [vmem:[%s4 + $0x8] sm:$0xff]
    %v423 = vld [vmem:[%s4 + $0x10] sm:$0xff]
    %v424 = vld [vmem:[%s4 + $0x18] sm:$0xff]
    %s425 = scalar_lea.vmem %s4, 32
    %v426 = vld [vmem:[%s425] sm:$0xff]
    %v427 = vld [vmem:[%s425 + $0x8] sm:$0xff]
    %v428 = vld [vmem:[%s425 + $0x10] sm:$0xff]
    %v429 = vld [vmem:[%s425 + $0x18] sm:$0xff]
    %v430 = vsel %vm379, %v426, %v421
    %v431 = vsel %vm379, %v427, %v422
    %v432 = vsel %vm379, %v428, %v423
    %v433 = vsel %vm379, %v429, %v424
    %s434 = scalar_lea.vmem %s4, 64
    %v435 = vld [vmem:[%s434] sm:$0xff]
    %v436 = vld [vmem:[%s434 + $0x8] sm:$0xff]
    %v437 = vld [vmem:[%s434 + $0x10] sm:$0xff]
    %v438 = vld [vmem:[%s434 + $0x18] sm:$0xff]
    %v439 = vsel %vm394, %v435, %v430
    %v440 = vsel %vm394, %v436, %v431
    %v441 = vsel %vm394, %v437, %v432
    %v442 = vsel %vm394, %v438, %v433
    %v443 = vld [vmem:[%s5] sm:$0xff]
    %v444 = vld [vmem:[%s5 + $0x8] sm:$0xff]
    %v445 = vld [vmem:[%s5 + $0x10] sm:$0xff]
    %v446 = vld [vmem:[%s5 + $0x18] sm:$0xff]
    %v447 = vld [vmem:[%s5 + $0x20] sm:$0xff]
    %v448 = vld [vmem:[%s5 + $0x28] sm:$0xff]
    %v449 = vld [vmem:[%s5 + $0x30] sm:$0xff]
    %v450 = vld [vmem:[%s5 + $0x38] sm:$0xff]
    %v451 = vld [vmem:[%s5 + $0x40] sm:$0xff]
    %v452 = vld [vmem:[%s5 + $0x48] sm:$0xff]
    %v453 = vld [vmem:[%s5 + $0x50] sm:$0xff]
    %v454 = vld [vmem:[%s5 + $0x58] sm:$0xff]
    %v455 = vld [vmem:[%s5 + $0x60] sm:$0xff]
    %v456 = vld [vmem:[%s5 + $0x68] sm:$0xff]
    %v457 = vld [vmem:[%s5 + $0x70] sm:$0xff]
    %v458 = vld [vmem:[%s5 + $0x78] sm:$0xff]
    %s459 = scalar_lea.vmem %s5, 128
    %v460 = vld [vmem:[%s459] sm:$0xff]
    %v461 = vld [vmem:[%s459 + $0x8] sm:$0xff]
    %v462 = vld [vmem:[%s459 + $0x10] sm:$0xff]
    %v463 = vld [vmem:[%s459 + $0x18] sm:$0xff]
    %v464 = vld [vmem:[%s459 + $0x20] sm:$0xff]
    %v465 = vld [vmem:[%s459 + $0x28] sm:$0xff]
    %v466 = vld [vmem:[%s459 + $0x30] sm:$0xff]
    %v467 = vld [vmem:[%s459 + $0x38] sm:$0xff]
    %v468 = vld [vmem:[%s459 + $0x40] sm:$0xff]
    %v469 = vld [vmem:[%s459 + $0x48] sm:$0xff]
    %v470 = vld [vmem:[%s459 + $0x50] sm:$0xff]
    %v471 = vld [vmem:[%s459 + $0x58] sm:$0xff]
    %v472 = vld [vmem:[%s459 + $0x60] sm:$0xff]
    %v473 = vld [vmem:[%s459 + $0x68] sm:$0xff]
    %v474 = vld [vmem:[%s459 + $0x70] sm:$0xff]
    %v475 = vld [vmem:[%s459 + $0x78] sm:$0xff]
    %v476 = vsel %vm379, %v460, %v443
    %v477 = vsel %vm379, %v461, %v444
    %v478 = vsel %vm379, %v462, %v445
    %v479 = vsel %vm379, %v463, %v446
    %v480 = vsel %vm379, %v464, %v447
    %v481 = vsel %vm379, %v465, %v448
    %v482 = vsel %vm379, %v466, %v449
    %v483 = vsel %vm379, %v467, %v450
    %v484 = vsel %vm379, %v468, %v451
    %v485 = vsel %vm379, %v469, %v452
    %v486 = vsel %vm379, %v470, %v453
    %v487 = vsel %vm379, %v471, %v454
    %v488 = vsel %vm379, %v472, %v455
    %v489 = vsel %vm379, %v473, %v456
    %v490 = vsel %vm379, %v474, %v457
    %v491 = vsel %vm379, %v475, %v458
    %s492 = scalar_lea.vmem %s5, 256
    %v493 = vld [vmem:[%s492] sm:$0xff]
    %v494 = vld [vmem:[%s492 + $0x8] sm:$0xff]
    %v495 = vld [vmem:[%s492 + $0x10] sm:$0xff]
    %v496 = vld [vmem:[%s492 + $0x18] sm:$0xff]
    %v497 = vld [vmem:[%s492 + $0x20] sm:$0xff]
    %v498 = vld [vmem:[%s492 + $0x28] sm:$0xff]
    %v499 = vld [vmem:[%s492 + $0x30] sm:$0xff]
    %v500 = vld [vmem:[%s492 + $0x38] sm:$0xff]
    %v501 = vld [vmem:[%s492 + $0x40] sm:$0xff]
    %v502 = vld [vmem:[%s492 + $0x48] sm:$0xff]
    %v503 = vld [vmem:[%s492 + $0x50] sm:$0xff]
    %v504 = vld [vmem:[%s492 + $0x58] sm:$0xff]
    %v505 = vld [vmem:[%s492 + $0x60] sm:$0xff]
    %v506 = vld [vmem:[%s492 + $0x68] sm:$0xff]
    %v507 = vld [vmem:[%s492 + $0x70] sm:$0xff]
    %v508 = vld [vmem:[%s492 + $0x78] sm:$0xff]
    %v509 = vsel %vm394, %v493, %v476
    %v510 = vsel %vm394, %v494, %v477
    %v511 = vsel %vm394, %v495, %v478
    %v512 = vsel %vm394, %v496, %v479
    %v513 = vsel %vm394, %v497, %v480
    %v514 = vsel %vm394, %v498, %v481
    %v515 = vsel %vm394, %v499, %v482
    %v516 = vsel %vm394, %v500, %v483
    %v517 = vsel %vm394, %v501, %v484
    %v518 = vsel %vm394, %v502, %v485
    %v519 = vsel %vm394, %v503, %v486
    %v520 = vsel %vm394, %v504, %v487
    %v521 = vsel %vm394, %v505, %v488
    %v522 = vsel %vm394, %v506, %v489
    %v523 = vsel %vm394, %v507, %v490
    %v524 = vsel %vm394, %v508, %v491
    %v525 = vld [vmem:[%s6] sm:$0xff]
    %s526 = scalar_lea.vmem %s6, 8
    %v527 = vld [vmem:[%s526] sm:$0xff]
    %v528 = vsel %vm379, %v527, %v525
    %s529 = scalar_lea.vmem %s6, 16
    %v530 = vld [vmem:[%s529] sm:$0xff]
    %v531 = vsel %vm394, %v530, %v528
    %532 = vadd.xlane.f32.xlu0 %v172
    %v533 = vpop.xlane.xlu0 %532
    %534 = vadd.xlane.f32.xlu0 %v173
    %v535 = vpop.xlane.xlu0 %534
    %v536 = vrcp.pop 32.0
    %v537 = vmul.f32 %v533, %v536
    %v538 = vmul.f32 %v535, %v536
    %v539 = vsub.f32 %v142, %v537
    %v540 = vsub.f32 %v147, %v538
    %v541 = vmul.f32 %v539, %v539
    %v542 = vmul.f32 %v540, %v540
    %v543 = vsel %vm171, %v541, 0.0
    %544 = vadd.xlane.f32.xlu0 %v543
    %v545 = vpop.xlane.xlu0 %544
    %v546 = vsel %vm171, %v542, 0.0
    %547 = vadd.xlane.f32.xlu0 %v546
    %v548 = vpop.xlane.xlu0 %547
    %v549 = vmul.f32 %v545, %v536
    %v550 = vmul.f32 %v548, %v536
    %v551 = vadd.f32 %v549, 1e-05
    %v552 = vadd.f32 %v550, 1e-05
    %v553 = vrsqrt.pop %v551
    %v554 = vrsqrt.pop %v552
    %v555 = vmul.f32 %v539, %v553
    %v556 = vmul.f32 %v540, %v554
    %v557 = vlaneseq
    %v558 = vshrl.u32 %v557, 7
    %v559 = vsub.s32 0, %v558
    %v560 = vrot.slane %v531, %v559
    %v561 = vmul.f32 %v555, %v560
    %v562 = vmul.f32 %v556, %v560
    %v563 = vlaneseq
    %v564 = vshrl.u32 %v563, 7
    %v565 = vsub.s32 1, %v564
    %v566 = vrot.slane %v531, %v565
    %v567 = vadd.f32 %v561, %v566
    %v568 = vadd.f32 %v562, %v566
    %v570 = vsel %vm171, %v567, 0
    %v573 = vsel %vm171, %v568, 0
    %575 = vmatprep.subr.mxu0 0.0
    %576 = vmatpush1.msra.mxu0 %v395
    %577 = vmatprep.subr.mxu0 0.0
    %578 = vmatpush1.msra.mxu0 %v396
    %579 = vmatprep.subr.mxu0 0.0
    %580 = vmatpush1.msra.mxu0 %v397
    %581 = vmatprep.subr.mxu0 0.0
    %582 = vmatpush1.msra.mxu0 %v398
    %583 = vmatprep.subr.mxu0 0.0
    %584 = vmatpush1.msra.mxu0 0.0
    %585 = vmatprep.subr.mxu0 0.0
    %586 = vmatpush1.msra.mxu0 0.0
    %587 = vmatprep.subr.mxu0 0.0
    %588 = vmatpush1.msra.mxu0 0.0
    %589 = vmatprep.subr.mxu0 0.0
    %590 = vmatpush1.msra.mxu0 0.0
    %591 = vmatprep.subr.mxu0 0.0
    %592 = vmatpush1.msra.mxu0 0.0
    %593 = vmatprep.subr.mxu0 0.0
    %594 = vmatpush1.msra.mxu0 0.0
    %595 = vmatprep.subr.mxu0 0.0
    %596 = vmatpush1.msra.mxu0 0.0
    %597 = vmatprep.subr.mxu0 0.0
    %598 = vmatpush1.msra.mxu0 0.0
    %599 = vmatprep.subr.mxu0 0.0
    %600 = vmatpush1.msra.mxu0 0.0
    %601 = vmatprep.subr.mxu0 0.0
    %602 = vmatpush1.msra.mxu0 0.0
    %603 = vmatprep.subr.mxu0 0.0
    %604 = vmatpush1.msra.mxu0 0.0
    %605 = vmatprep.subr.mxu0 0.0
    %606 = vmatpush1.msra.mxu0 0.0
    %607 = vmatprep.subr.mxu0 0.0
    %608 = vmatpush1.msra.mxu0 0.0
    %609 = vmatprep.subr.mxu0 0.0
    %610 = vmatpush1.msra.mxu0 0.0
    %611 = vmatprep.subr.mxu0 0.0
    %612 = vmatpush1.msra.mxu0 0.0
    %613 = vmatprep.subr.mxu0 0.0
    %614 = vmatpush1.msra.mxu0 0.0
    %615 = vmatprep.subr.mxu0 0.0
    %616 = vmatpush1.msra.mxu0 0.0
    %617 = vmatprep.subr.mxu0 0.0
    %618 = vmatpush1.msra.mxu0 0.0
    %619 = vmatprep.subr.mxu0 0.0
    %620 = vmatpush1.msra.mxu0 0.0
    %621 = vmatprep.subr.mxu0 0.0
    %622 = vmatpush1.msra.mxu0 0.0
    %623 = vmatprep.subr.mxu0 0.0
    %624 = vmatpush1.msra.mxu0 0.0
    %625 = vmatprep.subr.mxu0 0.0
    %626 = vmatpush1.msra.mxu0 0.0
    %627 = vmatprep.subr.mxu0 0.0
    %628 = vmatpush1.msra.mxu0 0.0
    %629 = vmatprep.subr.mxu0 0.0
    %630 = vmatpush1.msra.mxu0 0.0
    %631 = vmatprep.subr.mxu0 0.0
    %632 = vmatpush1.msra.mxu0 0.0
    %633 = vmatprep.subr.mxu0 0.0
    %634 = vmatpush1.msra.mxu0 0.0
    %635 = vmatprep.subr.mxu0 0.0
    %636 = vmatpush1.msra.mxu0 0.0
    %637 = vmatprep.subr.mxu0 0.0
    %638 = vmatpush1.msra.mxu0 0.0
    %639 = vmatprep.mubr.f32.mxu0 0.0
    %640 = vmatmul.mubr.f32.gmra.mrb[0].mxu0 %v570
    %v641 = vpop.f32.mrb[0].mxu0
    %v642 = vadd.f32 0.0, %v641
    %v643 = vpop.f32.mrb[0].mxu0
    %644 = vmatprep.mubr.f32.mxu0 0.0
    %645 = vmatmul.mubr.f32.gmra.mrb[0].mxu0 %v573
    %v646 = vpop.f32.mrb[0].mxu0
    %v647 = vadd.f32 0.0, %v646
    %v648 = vpop.f32.mrb[0].mxu0
    %649 = vdwg.mxu0
    %652 = vrot.lane.b32.xlu0 %v642, 120
    %v653 = vpop.permute.xlu0 %652
    %654 = vrot.lane.b32.xlu0 %v647, 120
    %v655 = vpop.permute.xlu0 %654
    %656 = vrot.lane.b32.xlu0 %v642, 112
    %v657 = vpop.permute.xlu0 %656
    %658 = vrot.lane.b32.xlu0 %v647, 112
    %v659 = vpop.permute.xlu0 %658
    %660 = vrot.lane.b32.xlu0 %v642, 104
    %v661 = vpop.permute.xlu0 %660
    %662 = vrot.lane.b32.xlu0 %v647, 104
    %v663 = vpop.permute.xlu0 %662
    %664 = vrot.lane.b32.xlu0 %v642, 96
    %v665 = vpop.permute.xlu0 %664
    %vm666 = vcmask 64512
    %v667 = vsel %vm666, %v642, 0
    %v669 = vsel %vm666, %v665, 0
    %671 = vmatprep.subr.mxu0 0.0
    %672 = vmatpush1.xpose.msra.mxu0 %v669
    %673 = vmatprep.subr.mxu0 0.0
    %674 = vmatpush1.xpose.msra.mxu0 0.0
    %675 = vmatprep.subr.mxu0 0.0
    %676 = vmatpush1.xpose.msra.mxu0 0.0
    %677 = vmatprep.subr.mxu0 0.0
    %678 = vmatpush1.xpose.msra.mxu0 0.0
    %679 = vmatprep.subr.mxu0 0.0
    %680 = vmatpush1.xpose.msra.mxu0 0.0
    %681 = vmatprep.subr.mxu0 0.0
    %682 = vmatpush1.xpose.msra.mxu0 0.0
    %683 = vmatprep.subr.mxu0 0.0
    %684 = vmatpush1.xpose.msra.mxu0 0.0
    %685 = vmatprep.subr.mxu0 0.0
    %686 = vmatpush1.xpose.msra.mxu0 0.0
    %687 = vmatprep.subr.mxu0 0.0
    %688 = vmatpush1.xpose.msra.mxu0 0.0
    %689 = vmatprep.subr.mxu0 0.0
    %690 = vmatpush1.xpose.msra.mxu0 0.0
    %691 = vmatprep.subr.mxu0 0.0
    %692 = vmatpush1.xpose.msra.mxu0 0.0
    %693 = vmatprep.subr.mxu0 0.0
    %694 = vmatpush1.xpose.msra.mxu0 0.0
    %695 = vmatprep.subr.mxu0 0.0
    %696 = vmatpush1.xpose.msra.mxu0 0.0
    %697 = vmatprep.subr.mxu0 0.0
    %698 = vmatpush1.xpose.msra.mxu0 0.0
    %699 = vmatprep.subr.mxu0 0.0
    %700 = vmatpush1.xpose.msra.mxu0 0.0
    %701 = vmatprep.subr.mxu0 0.0
    %702 = vmatpush1.xpose.msra.mxu0 0.0
    %703 = vmatprep.subr.mxu0 0.0
    %704 = vmatpush1.xpose.msra.mxu0 0.0
    %705 = vmatprep.subr.mxu0 0.0
    %706 = vmatpush1.xpose.msra.mxu0 0.0
    %707 = vmatprep.subr.mxu0 0.0
    %708 = vmatpush1.xpose.msra.mxu0 0.0
    %709 = vmatprep.subr.mxu0 0.0
    %710 = vmatpush1.xpose.msra.mxu0 0.0
    %711 = vmatprep.subr.mxu0 0.0
    %712 = vmatpush1.xpose.msra.mxu0 0.0
    %713 = vmatprep.subr.mxu0 0.0
    %714 = vmatpush1.xpose.msra.mxu0 0.0
    %715 = vmatprep.subr.mxu0 0.0
    %716 = vmatpush1.xpose.msra.mxu0 0.0
    %717 = vmatprep.subr.mxu0 0.0
    %718 = vmatpush1.xpose.msra.mxu0 0.0
    %719 = vmatprep.subr.mxu0 0.0
    %720 = vmatpush1.xpose.msra.mxu0 0.0
    %721 = vmatprep.subr.mxu0 0.0
    %722 = vmatpush1.xpose.msra.mxu0 0.0
    %723 = vmatprep.subr.mxu0 0.0
    %724 = vmatpush1.xpose.msra.mxu0 0.0
    %725 = vmatprep.subr.mxu0 0.0
    %726 = vmatpush1.xpose.msra.mxu0 0.0
    %727 = vmatprep.subr.mxu0 0.0
    %728 = vmatpush1.xpose.msra.mxu0 0.0
    %729 = vmatprep.subr.mxu0 0.0
    %730 = vmatpush1.xpose.msra.mxu0 0.0
    %731 = vmatprep.subr.mxu0 0.0
    %732 = vmatpush1.xpose.msra.mxu0 0.0
    %733 = vmatprep.subr.mxu0 0.0
    %734 = vmatpush1.xpose.msra.mxu0 0.0
    %735 = vmatprep.mubr.f32.mxu0 0.0
    %736 = vmatmul.mubr.f32.gmra.mrb[0].mxu0 %v667
    %v737 = vpop.f32.mrb[0].mxu0
    %v738 = vadd.f32 0.0, %v737
    %v739 = vpop.f32.mrb[0].mxu0
    %740 = vdwg.mxu0
    %741 = vrot.lane.b32.xlu0 %v647, 96
    %v742 = vpop.permute.xlu0 %741
    %v743 = vsel %vm666, %v647, 0
    %v745 = vsel %vm666, %v742, 0
    %747 = vmatprep.subr.mxu0 0.0
    %748 = vmatpush1.xpose.msra.mxu0 %v745
    %749 = vmatprep.subr.mxu0 0.0
    %750 = vmatpush1.xpose.msra.mxu0 0.0
    %751 = vmatprep.subr.mxu0 0.0
    %752 = vmatpush1.xpose.msra.mxu0 0.0
    %753 = vmatprep.subr.mxu0 0.0
    %754 = vmatpush1.xpose.msra.mxu0 0.0
    %755 = vmatprep.subr.mxu0 0.0
    %756 = vmatpush1.xpose.msra.mxu0 0.0
    %757 = vmatprep.subr.mxu0 0.0
    %758 = vmatpush1.xpose.msra.mxu0 0.0
    %759 = vmatprep.subr.mxu0 0.0
    %760 = vmatpush1.xpose.msra.mxu0 0.0
    %761 = vmatprep.subr.mxu0 0.0
    %762 = vmatpush1.xpose.msra.mxu0 0.0
    %763 = vmatprep.subr.mxu0 0.0
    %764 = vmatpush1.xpose.msra.mxu0 0.0
    %765 = vmatprep.subr.mxu0 0.0
    %766 = vmatpush1.xpose.msra.mxu0 0.0
    %767 = vmatprep.subr.mxu0 0.0
    %768 = vmatpush1.xpose.msra.mxu0 0.0
    %769 = vmatprep.subr.mxu0 0.0
    %770 = vmatpush1.xpose.msra.mxu0 0.0
    %771 = vmatprep.subr.mxu0 0.0
    %772 = vmatpush1.xpose.msra.mxu0 0.0
    %773 = vmatprep.subr.mxu0 0.0
    %774 = vmatpush1.xpose.msra.mxu0 0.0
    %775 = vmatprep.subr.mxu0 0.0
    %776 = vmatpush1.xpose.msra.mxu0 0.0
    %777 = vmatprep.subr.mxu0 0.0
    %778 = vmatpush1.xpose.msra.mxu0 0.0
    %779 = vmatprep.subr.mxu0 0.0
    %780 = vmatpush1.xpose.msra.mxu0 0.0
    %781 = vmatprep.subr.mxu0 0.0
    %782 = vmatpush1.xpose.msra.mxu0 0.0
    %783 = vmatprep.subr.mxu0 0.0
    %784 = vmatpush1.xpose.msra.mxu0 0.0
    %785 = vmatprep.subr.mxu0 0.0
    %786 = vmatpush1.xpose.msra.mxu0 0.0
    %787 = vmatprep.subr.mxu0 0.0
    %788 = vmatpush1.xpose.msra.mxu0 0.0
    %789 = vmatprep.subr.mxu0 0.0
    %790 = vmatpush1.xpose.msra.mxu0 0.0
    %791 = vmatprep.subr.mxu0 0.0
    %792 = vmatpush1.xpose.msra.mxu0 0.0
    %793 = vmatprep.subr.mxu0 0.0
    %794 = vmatpush1.xpose.msra.mxu0 0.0
    %795 = vmatprep.subr.mxu0 0.0
    %796 = vmatpush1.xpose.msra.mxu0 0.0
    %797 = vmatprep.subr.mxu0 0.0
    %798 = vmatpush1.xpose.msra.mxu0 0.0
    %799 = vmatprep.subr.mxu0 0.0
    %800 = vmatpush1.xpose.msra.mxu0 0.0
    %801 = vmatprep.subr.mxu0 0.0
    %802 = vmatpush1.xpose.msra.mxu0 0.0
    %803 = vmatprep.subr.mxu0 0.0
    %804 = vmatpush1.xpose.msra.mxu0 0.0
    %805 = vmatprep.subr.mxu0 0.0
    %806 = vmatpush1.xpose.msra.mxu0 0.0
    %807 = vmatprep.subr.mxu0 0.0
    %808 = vmatpush1.xpose.msra.mxu0 0.0
    %809 = vmatprep.subr.mxu0 0.0
    %810 = vmatpush1.xpose.msra.mxu0 0.0
    %811 = vmatprep.mubr.f32.mxu0 0.0
    %812 = vmatmul.mubr.f32.gmra.mrb[0].mxu0 %v743
    %v813 = vpop.f32.mrb[0].mxu0
    %v814 = vadd.f32 0.0, %v813
    %v815 = vpop.f32.mrb[0].mxu0
    %816 = vdwg.mxu0
    %817 = vrot.lane.b32.xlu0 %v653, 96
    %v818 = vpop.permute.xlu0 %817
    %v819 = vsel %vm666, %v653, 0
    %v821 = vsel %vm666, %v818, 0
    %823 = vmatprep.subr.mxu0 0.0
    %824 = vmatpush1.xpose.msra.mxu0 %v821
    %825 = vmatprep.subr.mxu0 0.0
    %826 = vmatpush1.xpose.msra.mxu0 0.0
    %827 = vmatprep.subr.mxu0 0.0
    %828 = vmatpush1.xpose.msra.mxu0 0.0
    %829 = vmatprep.subr.mxu0 0.0
    %830 = vmatpush1.xpose.msra.mxu0 0.0
    %831 = vmatprep.subr.mxu0 0.0
    %832 = vmatpush1.xpose.msra.mxu0 0.0
    %833 = vmatprep.subr.mxu0 0.0
    %834 = vmatpush1.xpose.msra.mxu0 0.0
    %835 = vmatprep.subr.mxu0 0.0
    %836 = vmatpush1.xpose.msra.mxu0 0.0
    %837 = vmatprep.subr.mxu0 0.0
    %838 = vmatpush1.xpose.msra.mxu0 0.0
    %839 = vmatprep.subr.mxu0 0.0
    %840 = vmatpush1.xpose.msra.mxu0 0.0
    %841 = vmatprep.subr.mxu0 0.0
    %842 = vmatpush1.xpose.msra.mxu0 0.0
    %843 = vmatprep.subr.mxu0 0.0
    %844 = vmatpush1.xpose.msra.mxu0 0.0
    %845 = vmatprep.subr.mxu0 0.0
    %846 = vmatpush1.xpose.msra.mxu0 0.0
    %847 = vmatprep.subr.mxu0 0.0
    %848 = vmatpush1.xpose.msra.mxu0 0.0
    %849 = vmatprep.subr.mxu0 0.0
    %850 = vmatpush1.xpose.msra.mxu0 0.0
    %851 = vmatprep.subr.mxu0 0.0
    %852 = vmatpush1.xpose.msra.mxu0 0.0
    %853 = vmatprep.subr.mxu0 0.0
    %854 = vmatpush1.xpose.msra.mxu0 0.0
    %855 = vmatprep.subr.mxu0 0.0
    %856 = vmatpush1.xpose.msra.mxu0 0.0
    %857 = vmatprep.subr.mxu0 0.0
    %858 = vmatpush1.xpose.msra.mxu0 0.0
    %859 = vmatprep.subr.mxu0 0.0
    %860 = vmatpush1.xpose.msra.mxu0 0.0
    %861 = vmatprep.subr.mxu0 0.0
    %862 = vmatpush1.xpose.msra.mxu0 0.0
    %863 = vmatprep.subr.mxu0 0.0
    %864 = vmatpush1.xpose.msra.mxu0 0.0
    %865 = vmatprep.subr.mxu0 0.0
    %866 = vmatpush1.xpose.msra.mxu0 0.0
    %867 = vmatprep.subr.mxu0 0.0
    %868 = vmatpush1.xpose.msra.mxu0 0.0
    %869 = vmatprep.subr.mxu0 0.0
    %870 = vmatpush1.xpose.msra.mxu0 0.0
    %871 = vmatprep.subr.mxu0 0.0
    %872 = vmatpush1.xpose.msra.mxu0 0.0
    %873 = vmatprep.subr.mxu0 0.0
    %874 = vmatpush1.xpose.msra.mxu0 0.0
    %875 = vmatprep.subr.mxu0 0.0
    %876 = vmatpush1.xpose.msra.mxu0 0.0
    %877 = vmatprep.subr.mxu0 0.0
    %878 = vmatpush1.xpose.msra.mxu0 0.0
    %879 = vmatprep.subr.mxu0 0.0
    %880 = vmatpush1.xpose.msra.mxu0 0.0
    %881 = vmatprep.subr.mxu0 0.0
    %882 = vmatpush1.xpose.msra.mxu0 0.0
    %883 = vmatprep.subr.mxu0 0.0
    %884 = vmatpush1.xpose.msra.mxu0 0.0
    %885 = vmatprep.subr.mxu0 0.0
    %886 = vmatpush1.xpose.msra.mxu0 0.0
    %887 = vmatprep.mubr.f32.mxu0 0.0
    %888 = vmatmul.mubr.f32.gmra.mrb[0].mxu0 %v819
    %v889 = vpop.f32.mrb[0].mxu0
    %v890 = vadd.f32 0.0, %v889
    %v891 = vpop.f32.mrb[0].mxu0
    %892 = vdwg.mxu0
    %893 = vrot.lane.b32.xlu0 %v655, 96
    %v894 = vpop.permute.xlu0 %893
    %v895 = vsel %vm666, %v655, 0
    %v897 = vsel %vm666, %v894, 0
    %899 = vmatprep.subr.mxu0 0.0
    %900 = vmatpush1.xpose.msra.mxu0 %v897
    %901 = vmatprep.subr.mxu0 0.0
    %902 = vmatpush1.xpose.msra.mxu0 0.0
    %903 = vmatprep.subr.mxu0 0.0
    %904 = vmatpush1.xpose.msra.mxu0 0.0
    %905 = vmatprep.subr.mxu0 0.0
    %906 = vmatpush1.xpose.msra.mxu0 0.0
    %907 = vmatprep.subr.mxu0 0.0
    %908 = vmatpush1.xpose.msra.mxu0 0.0
    %909 = vmatprep.subr.mxu0 0.0
    %910 = vmatpush1.xpose.msra.mxu0 0.0
    %911 = vmatprep.subr.mxu0 0.0
    %912 = vmatpush1.xpose.msra.mxu0 0.0
    %913 = vmatprep.subr.mxu0 0.0
    %914 = vmatpush1.xpose.msra.mxu0 0.0
    %915 = vmatprep.subr.mxu0 0.0
    %916 = vmatpush1.xpose.msra.mxu0 0.0
    %917 = vmatprep.subr.mxu0 0.0
    %918 = vmatpush1.xpose.msra.mxu0 0.0
    %919 = vmatprep.subr.mxu0 0.0
    %920 = vmatpush1.xpose.msra.mxu0 0.0
    %921 = vmatprep.subr.mxu0 0.0
    %922 = vmatpush1.xpose.msra.mxu0 0.0
    %923 = vmatprep.subr.mxu0 0.0
    %924 = vmatpush1.xpose.msra.mxu0 0.0
    %925 = vmatprep.subr.mxu0 0.0
    %926 = vmatpush1.xpose.msra.mxu0 0.0
    %927 = vmatprep.subr.mxu0 0.0
    %928 = vmatpush1.xpose.msra.mxu0 0.0
    %929 = vmatprep.subr.mxu0 0.0
    %930 = vmatpush1.xpose.msra.mxu0 0.0
    %931 = vmatprep.subr.mxu0 0.0
    %932 = vmatpush1.xpose.msra.mxu0 0.0
    %933 = vmatprep.subr.mxu0 0.0
    %934 = vmatpush1.xpose.msra.mxu0 0.0
    %935 = vmatprep.subr.mxu0 0.0
    %936 = vmatpush1.xpose.msra.mxu0 0.0
    %937 = vmatprep.subr.mxu0 0.0
    %938 = vmatpush1.xpose.msra.mxu0 0.0
    %939 = vmatprep.subr.mxu0 0.0
    %940 = vmatpush1.xpose.msra.mxu0 0.0
    %941 = vmatprep.subr.mxu0 0.0
    %942 = vmatpush1.xpose.msra.mxu0 0.0
    %943 = vmatprep.subr.mxu0 0.0
    %944 = vmatpush1.xpose.msra.mxu0 0.0
    %945 = vmatprep.subr.mxu0 0.0
    %946 = vmatpush1.xpose.msra.mxu0 0.0
    %947 = vmatprep.subr.mxu0 0.0
    %948 = vmatpush1.xpose.msra.mxu0 0.0
    %949 = vmatprep.subr.mxu0 0.0
    %950 = vmatpush1.xpose.msra.mxu0 0.0
    %951 = vmatprep.subr.mxu0 0.0
    %952 = vmatpush1.xpose.msra.mxu0 0.0
    %953 = vmatprep.subr.mxu0 0.0
    %954 = vmatpush1.xpose.msra.mxu0 0.0
    %955 = vmatprep.subr.mxu0 0.0
    %956 = vmatpush1.xpose.msra.mxu0 0.0
    %957 = vmatprep.subr.mxu0 0.0
    %958 = vmatpush1.xpose.msra.mxu0 0.0
    %959 = vmatprep.subr.mxu0 0.0
    %960 = vmatpush1.xpose.msra.mxu0 0.0
    %961 = vmatprep.subr.mxu0 0.0
    %962 = vmatpush1.xpose.msra.mxu0 0.0
    %963 = vmatprep.mubr.f32.mxu0 0.0
    %964 = vmatmul.mubr.f32.gmra.mrb[0].mxu0 %v895
    %v965 = vpop.f32.mrb[0].mxu0
    %v966 = vadd.f32 0.0, %v965
    %v967 = vpop.f32.mrb[0].mxu0
    %968 = vdwg.mxu0
    %969 = vrot.lane.b32.xlu0 %v657, 96
    %v970 = vpop.permute.xlu0 %969
    %v971 = vsel %vm666, %v657, 0
    %v973 = vsel %vm666, %v970, 0
    %975 = vmatprep.subr.mxu0 0.0
    %976 = vmatpush1.xpose.msra.mxu0 %v973
    %977 = vmatprep.subr.mxu0 0.0
    %978 = vmatpush1.xpose.msra.mxu0 0.0
    %979 = vmatprep.subr.mxu0 0.0
    %980 = vmatpush1.xpose.msra.mxu0 0.0
    %981 = vmatprep.subr.mxu0 0.0
    %982 = vmatpush1.xpose.msra.mxu0 0.0
    %983 = vmatprep.subr.mxu0 0.0
    %984 = vmatpush1.xpose.msra.mxu0 0.0
    %985 = vmatprep.subr.mxu0 0.0
    %986 = vmatpush1.xpose.msra.mxu0 0.0
    %987 = vmatprep.subr.mxu0 0.0
    %988 = vmatpush1.xpose.msra.mxu0 0.0
    %989 = vmatprep.subr.mxu0 0.0
    %990 = vmatpush1.xpose.msra.mxu0 0.0
    %991 = vmatprep.subr.mxu0 0.0
    %992 = vmatpush1.xpose.msra.mxu0 0.0
    %993 = vmatprep.subr.mxu0 0.0
    %994 = vmatpush1.xpose.msra.mxu0 0.0
    %995 = vmatprep.subr.mxu0 0.0
    %996 = vmatpush1.xpose.msra.mxu0 0.0
    %997 = vmatprep.subr.mxu0 0.0
    %998 = vmatpush1.xpose.msra.mxu0 0.0
    %999 = vmatprep.subr.mxu0 0.0
    %1000 = vmatpush1.xpose.msra.mxu0 0.0
    %1001 = vmatprep.subr.mxu0 0.0
    %1002 = vmatpush1.xpose.msra.mxu0 0.0
    %1003 = vmatprep.subr.mxu0 0.0
    %1004 = vmatpush1.xpose.msra.mxu0 0.0
    %1005 = vmatprep.subr.mxu0 0.0
    %1006 = vmatpush1.xpose.msra.mxu0 0.0
    %1007 = vmatprep.subr.mxu0 0.0
    %1008 = vmatpush1.xpose.msra.mxu0 0.0
    %1009 = vmatprep.subr.mxu0 0.0
    %1010 = vmatpush1.xpose.msra.mxu0 0.0
    %1011 = vmatprep.subr.mxu0 0.0
    %1012 = vmatpush1.xpose.msra.mxu0 0.0
    %1013 = vmatprep.subr.mxu0 0.0
    %1014 = vmatpush1.xpose.msra.mxu0 0.0
    %1015 = vmatprep.subr.mxu0 0.0
    %1016 = vmatpush1.xpose.msra.mxu0 0.0
    %1017 = vmatprep.subr.mxu0 0.0
    %1018 = vmatpush1.xpose.msra.mxu0 0.0
    %1019 = vmatprep.subr.mxu0 0.0
    %1020 = vmatpush1.xpose.msra.mxu0 0.0
    %1021 = vmatprep.subr.mxu0 0.0
    %1022 = vmatpush1.xpose.msra.mxu0 0.0
    %1023 = vmatprep.subr.mxu0 0.0
    %1024 = vmatpush1.xpose.msra.mxu0 0.0
    %1025 = vmatprep.subr.mxu0 0.0
    %1026 = vmatpush1.xpose.msra.mxu0 0.0
    %1027 = vmatprep.subr.mxu0 0.0
    %1028 = vmatpush1.xpose.msra.mxu0 0.0
    %1029 = vmatprep.subr.mxu0 0.0
    %1030 = vmatpush1.xpose.msra.mxu0 0.0
    %1031 = vmatprep.subr.mxu0 0.0
    %1032 = vmatpush1.xpose.msra.mxu0 0.0
    %1033 = vmatprep.subr.mxu0 0.0
    %1034 = vmatpush1.xpose.msra.mxu0 0.0
    %1035 = vmatprep.subr.mxu0 0.0
    %1036 = vmatpush1.xpose.msra.mxu0 0.0
    %1037 = vmatprep.subr.mxu0 0.0
    %1038 = vmatpush1.xpose.msra.mxu0 0.0
    %1039 = vmatprep.mubr.f32.mxu0 0.0
    %1040 = vmatmul.mubr.f32.gmra.mrb[0].mxu0 %v971
    %v1041 = vpop.f32.mrb[0].mxu0
    %v1042 = vadd.f32 0.0, %v1041
    %v1043 = vpop.f32.mrb[0].mxu0
    %1044 = vdwg.mxu0
    %1045 = vrot.lane.b32.xlu0 %v659, 96
    %v1046 = vpop.permute.xlu0 %1045
    %v1047 = vsel %vm666, %v659, 0
    %v1049 = vsel %vm666, %v1046, 0
    %1051 = vmatprep.subr.mxu0 0.0
    %1052 = vmatpush1.xpose.msra.mxu0 %v1049
    %1053 = vmatprep.subr.mxu0 0.0
    %1054 = vmatpush1.xpose.msra.mxu0 0.0
    %1055 = vmatprep.subr.mxu0 0.0
    %1056 = vmatpush1.xpose.msra.mxu0 0.0
    %1057 = vmatprep.subr.mxu0 0.0
    %1058 = vmatpush1.xpose.msra.mxu0 0.0
    %1059 = vmatprep.subr.mxu0 0.0
    %1060 = vmatpush1.xpose.msra.mxu0 0.0
    %1061 = vmatprep.subr.mxu0 0.0
    %1062 = vmatpush1.xpose.msra.mxu0 0.0
    %1063 = vmatprep.subr.mxu0 0.0
    %1064 = vmatpush1.xpose.msra.mxu0 0.0
    %1065 = vmatprep.subr.mxu0 0.0
    %1066 = vmatpush1.xpose.msra.mxu0 0.0
    %1067 = vmatprep.subr.mxu0 0.0
    %1068 = vmatpush1.xpose.msra.mxu0 0.0
    %1069 = vmatprep.subr.mxu0 0.0
    %1070 = vmatpush1.xpose.msra.mxu0 0.0
    %1071 = vmatprep.subr.mxu0 0.0
    %1072 = vmatpush1.xpose.msra.mxu0 0.0
    %1073 = vmatprep.subr.mxu0 0.0
    %1074 = vmatpush1.xpose.msra.mxu0 0.0
    %1075 = vmatprep.subr.mxu0 0.0
    %1076 = vmatpush1.xpose.msra.mxu0 0.0
    %1077 = vmatprep.subr.mxu0 0.0
    %1078 = vmatpush1.xpose.msra.mxu0 0.0
    %1079 = vmatprep.subr.mxu0 0.0
    %1080 = vmatpush1.xpose.msra.mxu0 0.0
    %1081 = vmatprep.subr.mxu0 0.0
    %1082 = vmatpush1.xpose.msra.mxu0 0.0
    %1083 = vmatprep.subr.mxu0 0.0
    %1084 = vmatpush1.xpose.msra.mxu0 0.0
    %1085 = vmatprep.subr.mxu0 0.0
    %1086 = vmatpush1.xpose.msra.mxu0 0.0
    %1087 = vmatprep.subr.mxu0 0.0
    %1088 = vmatpush1.xpose.msra.mxu0 0.0
    %1089 = vmatprep.subr.mxu0 0.0
    %1090 = vmatpush1.xpose.msra.mxu0 0.0
    %1091 = vmatprep.subr.mxu0 0.0
    %1092 = vmatpush1.xpose.msra.mxu0 0.0
    %1093 = vmatprep.subr.mxu0 0.0
    %1094 = vmatpush1.xpose.msra.mxu0 0.0
    %1095 = vmatprep.subr.mxu0 0.0
    %1096 = vmatpush1.xpose.msra.mxu0 0.0
    %1097 = vmatprep.subr.mxu0 0.0
    %1098 = vmatpush1.xpose.msra.mxu0 0.0
    %1099 = vmatprep.subr.mxu0 0.0
    %1100 = vmatpush1.xpose.msra.mxu0 0.0
    %1101 = vmatprep.subr.mxu0 0.0
    %1102 = vmatpush1.xpose.msra.mxu0 0.0
    %1103 = vmatprep.subr.mxu0 0.0
    %1104 = vmatpush1.xpose.msra.mxu0 0.0
    %1105 = vmatprep.subr.mxu0 0.0
    %1106 = vmatpush1.xpose.msra.mxu0 0.0
    %1107 = vmatprep.subr.mxu0 0.0
    %1108 = vmatpush1.xpose.msra.mxu0 0.0
    %1109 = vmatprep.subr.mxu0 0.0
    %1110 = vmatpush1.xpose.msra.mxu0 0.0
    %1111 = vmatprep.subr.mxu0 0.0
    %1112 = vmatpush1.xpose.msra.mxu0 0.0
    %1113 = vmatprep.subr.mxu0 0.0
    %1114 = vmatpush1.xpose.msra.mxu0 0.0
    %1115 = vmatprep.mubr.f32.mxu0 0.0
    %1116 = vmatmul.mubr.f32.gmra.mrb[0].mxu0 %v1047
    %v1117 = vpop.f32.mrb[0].mxu0
    %v1118 = vadd.f32 0.0, %v1117
    %v1119 = vpop.f32.mrb[0].mxu0
    %1120 = vdwg.mxu0
    %1121 = vrot.lane.b32.xlu0 %v661, 96
    %v1122 = vpop.permute.xlu0 %1121
    %v1123 = vsel %vm666, %v661, 0
    %v1125 = vsel %vm666, %v1122, 0
    %1127 = vmatprep.subr.mxu0 0.0
    %1128 = vmatpush1.xpose.msra.mxu0 %v1125
    %1129 = vmatprep.subr.mxu0 0.0
    %1130 = vmatpush1.xpose.msra.mxu0 0.0
    %1131 = vmatprep.subr.mxu0 0.0
    %1132 = vmatpush1.xpose.msra.mxu0 0.0
    %1133 = vmatprep.subr.mxu0 0.0
    %1134 = vmatpush1.xpose.msra.mxu0 0.0
    %1135 = vmatprep.subr.mxu0 0.0
    %1136 = vmatpush1.xpose.msra.mxu0 0.0
    %1137 = vmatprep.subr.mxu0 0.0
    %1138 = vmatpush1.xpose.msra.mxu0 0.0
    %1139 = vmatprep.subr.mxu0 0.0
    %1140 = vmatpush1.xpose.msra.mxu0 0.0
    %1141 = vmatprep.subr.mxu0 0.0
    %1142 = vmatpush1.xpose.msra.mxu0 0.0
    %1143 = vmatprep.subr.mxu0 0.0
    %1144 = vmatpush1.xpose.msra.mxu0 0.0
    %1145 = vmatprep.subr.mxu0 0.0
    %1146 = vmatpush1.xpose.msra.mxu0 0.0
    %1147 = vmatprep.subr.mxu0 0.0
    %1148 = vmatpush1.xpose.msra.mxu0 0.0
    %1149 = vmatprep.subr.mxu0 0.0
    %1150 = vmatpush1.xpose.msra.mxu0 0.0
    %1151 = vmatprep.subr.mxu0 0.0
    %1152 = vmatpush1.xpose.msra.mxu0 0.0
    %1153 = vmatprep.subr.mxu0 0.0
    %1154 = vmatpush1.xpose.msra.mxu0 0.0
    %1155 = vmatprep.subr.mxu0 0.0
    %1156 = vmatpush1.xpose.msra.mxu0 0.0
    %1157 = vmatprep.subr.mxu0 0.0
    %1158 = vmatpush1.xpose.msra.mxu0 0.0
    %1159 = vmatprep.subr.mxu0 0.0
    %1160 = vmatpush1.xpose.msra.mxu0 0.0
    %1161 = vmatprep.subr.mxu0 0.0
    %1162 = vmatpush1.xpose.msra.mxu0 0.0
    %1163 = vmatprep.subr.mxu0 0.0
    %1164 = vmatpush1.xpose.msra.mxu0 0.0
    %1165 = vmatprep.subr.mxu0 0.0
    %1166 = vmatpush1.xpose.msra.mxu0 0.0
    %1167 = vmatprep.subr.mxu0 0.0
    %1168 = vmatpush1.xpose.msra.mxu0 0.0
    %1169 = vmatprep.subr.mxu0 0.0
    %1170 = vmatpush1.xpose.msra.mxu0 0.0
    %1171 = vmatprep.subr.mxu0 0.0
    %1172 = vmatpush1.xpose.msra.mxu0 0.0
    %1173 = vmatprep.subr.mxu0 0.0
    %1174 = vmatpush1.xpose.msra.mxu0 0.0
    %1175 = vmatprep.subr.mxu0 0.0
    %1176 = vmatpush1.xpose.msra.mxu0 0.0
    %1177 = vmatprep.subr.mxu0 0.0
    %1178 = vmatpush1.xpose.msra.mxu0 0.0
    %1179 = vmatprep.subr.mxu0 0.0
    %1180 = vmatpush1.xpose.msra.mxu0 0.0
    %1181 = vmatprep.subr.mxu0 0.0
    %1182 = vmatpush1.xpose.msra.mxu0 0.0
    %1183 = vmatprep.subr.mxu0 0.0
    %1184 = vmatpush1.xpose.msra.mxu0 0.0
    %1185 = vmatprep.subr.mxu0 0.0
    %1186 = vmatpush1.xpose.msra.mxu0 0.0
    %1187 = vmatprep.subr.mxu0 0.0
    %1188 = vmatpush1.xpose.msra.mxu0 0.0
    %1189 = vmatprep.subr.mxu0 0.0
    %1190 = vmatpush1.xpose.msra.mxu0 0.0
    %1191 = vmatprep.mubr.f32.mxu0 0.0
    %1192 = vmatmul.mubr.f32.gmra.mrb[0].mxu0 %v1123
    %v1193 = vpop.f32.mrb[0].mxu0
    %v1194 = vadd.f32 0.0, %v1193
    %v1195 = vpop.f32.mrb[0].mxu0
    %1196 = vdwg.mxu0
    %1197 = vrot.lane.b32.xlu0 %v663, 96
    %v1198 = vpop.permute.xlu0 %1197
    %v1199 = vsel %vm666, %v663, 0
    %v1201 = vsel %vm666, %v1198, 0
    %1203 = vmatprep.subr.mxu0 0.0
    %1204 = vmatpush1.xpose.msra.mxu0 %v1201
    %1205 = vmatprep.subr.mxu0 0.0
    %1206 = vmatpush1.xpose.msra.mxu0 0.0
    %1207 = vmatprep.subr.mxu0 0.0
    %1208 = vmatpush1.xpose.msra.mxu0 0.0
    %1209 = vmatprep.subr.mxu0 0.0
    %1210 = vmatpush1.xpose.msra.mxu0 0.0
    %1211 = vmatprep.subr.mxu0 0.0
    %1212 = vmatpush1.xpose.msra.mxu0 0.0
    %1213 = vmatprep.subr.mxu0 0.0
    %1214 = vmatpush1.xpose.msra.mxu0 0.0
    %1215 = vmatprep.subr.mxu0 0.0
    %1216 = vmatpush1.xpose.msra.mxu0 0.0
    %1217 = vmatprep.subr.mxu0 0.0
    %1218 = vmatpush1.xpose.msra.mxu0 0.0
    %1219 = vmatprep.subr.mxu0 0.0
    %1220 = vmatpush1.xpose.msra.mxu0 0.0
    %1221 = vmatprep.subr.mxu0 0.0
    %1222 = vmatpush1.xpose.msra.mxu0 0.0
    %1223 = vmatprep.subr.mxu0 0.0
    %1224 = vmatpush1.xpose.msra.mxu0 0.0
    %1225 = vmatprep.subr.mxu0 0.0
    %1226 = vmatpush1.xpose.msra.mxu0 0.0
    %1227 = vmatprep.subr.mxu0 0.0
    %1228 = vmatpush1.xpose.msra.mxu0 0.0
    %1229 = vmatprep.subr.mxu0 0.0
    %1230 = vmatpush1.xpose.msra.mxu0 0.0
    %1231 = vmatprep.subr.mxu0 0.0
    %1232 = vmatpush1.xpose.msra.mxu0 0.0
    %1233 = vmatprep.subr.mxu0 0.0
    %1234 = vmatpush1.xpose.msra.mxu0 0.0
    %1235 = vmatprep.subr.mxu0 0.0
    %1236 = vmatpush1.xpose.msra.mxu0 0.0
    %1237 = vmatprep.subr.mxu0 0.0
    %1238 = vmatpush1.xpose.msra.mxu0 0.0
    %1239 = vmatprep.subr.mxu0 0.0
    %1240 = vmatpush1.xpose.msra.mxu0 0.0
    %1241 = vmatprep.subr.mxu0 0.0
    %1242 = vmatpush1.xpose.msra.mxu0 0.0
    %1243 = vmatprep.subr.mxu0 0.0
    %1244 = vmatpush1.xpose.msra.mxu0 0.0
    %1245 = vmatprep.subr.mxu0 0.0
    %1246 = vmatpush1.xpose.msra.mxu0 0.0
    %1247 = vmatprep.subr.mxu0 0.0
    %1248 = vmatpush1.xpose.msra.mxu0 0.0
    %1249 = vmatprep.subr.mxu0 0.0
    %1250 = vmatpush1.xpose.msra.mxu0 0.0
    %1251 = vmatprep.subr.mxu0 0.0
    %1252 = vmatpush1.xpose.msra.mxu0 0.0
    %1253 = vmatprep.subr.mxu0 0.0
    %1254 = vmatpush1.xpose.msra.mxu0 0.0
    %1255 = vmatprep.subr.mxu0 0.0
    %1256 = vmatpush1.xpose.msra.mxu0 0.0
    %1257 = vmatprep.subr.mxu0 0.0
    %1258 = vmatpush1.xpose.msra.mxu0 0.0
    %1259 = vmatprep.subr.mxu0 0.0
    %1260 = vmatpush1.xpose.msra.mxu0 0.0
    %1261 = vmatprep.subr.mxu0 0.0
    %1262 = vmatpush1.xpose.msra.mxu0 0.0
    %1263 = vmatprep.subr.mxu0 0.0
    %1264 = vmatpush1.xpose.msra.mxu0 0.0
    %1265 = vmatprep.subr.mxu0 0.0
    %1266 = vmatpush1.xpose.msra.mxu0 0.0
    %1267 = vmatprep.mubr.f32.mxu0 0.0
    %1268 = vmatmul.mubr.f32.gmra.mrb[0].mxu0 %v1199
    %v1269 = vpop.f32.mrb[0].mxu0
    %v1270 = vadd.f32 0.0, %v1269
    %v1271 = vpop.f32.mrb[0].mxu0
    %1272 = vdwg.mxu0
    %v1273 = vmul.f32 %v738, 0.35355338
    %v1274 = vmul.f32 %v814, 0.35355338
    %v1275 = vmul.f32 %v890, 0.35355338
    %v1276 = vmul.f32 %v966, 0.35355338
    %v1277 = vmul.f32 %v1042, 0.35355338
    %v1278 = vmul.f32 %v1118, 0.35355338
    %v1279 = vmul.f32 %v1194, 0.35355338
    %v1280 = vmul.f32 %v1270, 0.35355338
    %v1281 = vsel %vm150, 1, 0
    %vm1282 = vcmp.eq.s32.totalorder %v1281, 1
    %v1283 = vsel %vm1282, %v1273, -3.4028235e+38
    %v1284 = vsel %vm1282, %v1274, -3.4028235e+38
    %v1285 = vsel %vm1282, %v1275, -3.4028235e+38
    %v1286 = vsel %vm1282, %v1276, -3.4028235e+38
    %v1287 = vsel %vm1282, %v1277, -3.4028235e+38
    %v1288 = vsel %vm1282, %v1278, -3.4028235e+38
    %v1289 = vsel %vm1282, %v1279, -3.4028235e+38
    %v1290 = vsel %vm1282, %v1280, -3.4028235e+38
    %v1291 = vsel %vm666, %v1283, -inf
    %1292 = vmax.xlane.f32.xlu0 %v1291
    %v1293 = vpop.xlane.xlu0 %1292
    %v1294 = vsel %vm666, %v1284, -inf
    %1295 = vmax.xlane.f32.xlu0 %v1294
    %v1296 = vpop.xlane.xlu0 %1295
    %v1297 = vsel %vm666, %v1285, -inf
    %1298 = vmax.xlane.f32.xlu0 %v1297
    %v1299 = vpop.xlane.xlu0 %1298
    %v1300 = vsel %vm666, %v1286, -inf
    %1301 = vmax.xlane.f32.xlu0 %v1300
    %v1302 = vpop.xlane.xlu0 %1301
    %v1303 = vsel %vm666, %v1287, -inf
    %1304 = vmax.xlane.f32.xlu0 %v1303
    %v1305 = vpop.xlane.xlu0 %1304
    %v1306 = vsel %vm666, %v1288, -inf
    %1307 = vmax.xlane.f32.xlu0 %v1306
    %v1308 = vpop.xlane.xlu0 %1307
    %v1309 = vsel %vm666, %v1289, -inf
    %1310 = vmax.xlane.f32.xlu0 %v1309
    %v1311 = vpop.xlane.xlu0 %1310
    %v1312 = vsel %vm666, %v1290, -inf
    %1313 = vmax.xlane.f32.xlu0 %v1312
    %v1314 = vpop.xlane.xlu0 %1313
    %v1315 = vsub.f32 %v1283, %v1293
    %v1316 = vsub.f32 %v1284, %v1296
    %v1317 = vsub.f32 %v1285, %v1299
    %v1318 = vsub.f32 %v1286, %v1302
    %v1319 = vsub.f32 %v1287, %v1305
    %v1320 = vsub.f32 %v1288, %v1308
    %v1321 = vsub.f32 %v1289, %v1311
    %v1322 = vsub.f32 %v1290, %v1314
    %v1323 = vmul.f32 %v1315, 1.442695
    %v1324 = vpow.pop %v1323
    %v1325 = vmul.f32 %v1316, 1.442695
    %v1326 = vpow.pop %v1325
    %v1327 = vmul.f32 %v1317, 1.442695
    %v1328 = vpow.pop %v1327
    %v1329 = vmul.f32 %v1318, 1.442695
    %v1330 = vpow.pop %v1329
    %v1331 = vmul.f32 %v1319, 1.442695
    %v1332 = vpow.pop %v1331
    %v1333 = vmul.f32 %v1320, 1.442695
    %v1334 = vpow.pop %v1333
    %v1335 = vmul.f32 %v1321, 1.442695
    %v1336 = vpow.pop %v1335
    %v1337 = vmul.f32 %v1322, 1.442695
    %v1338 = vpow.pop %v1337
    %v1339 = vsel %vm666, %v1324, 0.0
    %1340 = vadd.xlane.f32.xlu0 %v1339
    %v1341 = vpop.xlane.xlu0 %1340
    %v1342 = vsel %vm666, %v1326, 0.0
    %1343 = vadd.xlane.f32.xlu0 %v1342
    %v1344 = vpop.xlane.xlu0 %1343
    %v1345 = vsel %vm666, %v1328, 0.0
    %1346 = vadd.xlane.f32.xlu0 %v1345
    %v1347 = vpop.xlane.xlu0 %1346
    %v1348 = vsel %vm666, %v1330, 0.0
    %1349 = vadd.xlane.f32.xlu0 %v1348
    %v1350 = vpop.xlane.xlu0 %1349
    %v1351 = vsel %vm666, %v1332, 0.0
    %1352 = vadd.xlane.f32.xlu0 %v1351
    %v1353 = vpop.xlane.xlu0 %1352
    %v1354 = vsel %vm666, %v1334, 0.0
    %1355 = vadd.xlane.f32.xlu0 %v1354
    %v1356 = vpop.xlane.xlu0 %1355
    %v1357 = vsel %vm666, %v1336, 0.0
    %1358 = vadd.xlane.f32.xlu0 %v1357
    %v1359 = vpop.xlane.xlu0 %1358
    %v1360 = vsel %vm666, %v1338, 0.0
    %1361 = vadd.xlane.f32.xlu0 %v1360
    %v1362 = vpop.xlane.xlu0 %1361
    %v1363 = vrcp.pop %v1341
    %v1364 = vrcp.pop %v1344
    %v1365 = vrcp.pop %v1347
    %v1366 = vrcp.pop %v1350
    %v1367 = vrcp.pop %v1353
    %v1368 = vrcp.pop %v1356
    %v1369 = vrcp.pop %v1359
    %v1370 = vrcp.pop %v1362
    %v1371 = vmul.f32 %v1324, %v1363
    %v1372 = vmul.f32 %v1326, %v1364
    %v1373 = vmul.f32 %v1328, %v1365
    %v1374 = vmul.f32 %v1330, %v1366
    %v1375 = vmul.f32 %v1332, %v1367
    %v1376 = vmul.f32 %v1334, %v1368
    %v1377 = vmul.f32 %v1336, %v1369
    %v1378 = vmul.f32 %v1338, %v1370
    %1379 = vrot.lane.b32.xlu0 %v642, 64
    %v1380 = vpop.permute.xlu0 %1379
    %v1383 = vsel %vm666, %v1371, 0
    %1385 = vmatprep.subr.mxu0 0.0
    %1386 = vmatpush1.msra.mxu0 %v1380
    %1387 = vmatprep.subr.mxu0 0.0
    %1388 = vmatpush1.msra.mxu0 0.0
    %1389 = vmatprep.subr.mxu0 0.0
    %1390 = vmatpush1.msra.mxu0 0.0
    %1391 = vmatprep.subr.mxu0 0.0
    %1392 = vmatpush1.msra.mxu0 0.0
    %1393 = vmatprep.subr.mxu0 0.0
    %1394 = vmatpush1.msra.mxu0 0.0
    %1395 = vmatprep.subr.mxu0 0.0
    %1396 = vmatpush1.msra.mxu0 0.0
    %1397 = vmatprep.subr.mxu0 0.0
    %1398 = vmatpush1.msra.mxu0 0.0
    %1399 = vmatprep.subr.mxu0 0.0
    %1400 = vmatpush1.msra.mxu0 0.0
    %1401 = vmatprep.subr.mxu0 0.0
    %1402 = vmatpush1.msra.mxu0 0.0
    %1403 = vmatprep.subr.mxu0 0.0
    %1404 = vmatpush1.msra.mxu0 0.0
    %1405 = vmatprep.subr.mxu0 0.0
    %1406 = vmatpush1.msra.mxu0 0.0
    %1407 = vmatprep.subr.mxu0 0.0
    %1408 = vmatpush1.msra.mxu0 0.0
    %1409 = vmatprep.subr.mxu0 0.0
    %1410 = vmatpush1.msra.mxu0 0.0
    %1411 = vmatprep.subr.mxu0 0.0
    %1412 = vmatpush1.msra.mxu0 0.0
    %1413 = vmatprep.subr.mxu0 0.0
    %1414 = vmatpush1.msra.mxu0 0.0
    %1415 = vmatprep.subr.mxu0 0.0
    %1416 = vmatpush1.msra.mxu0 0.0
    %1417 = vmatprep.subr.mxu0 0.0
    %1418 = vmatpush1.msra.mxu0 0.0
    %1419 = vmatprep.subr.mxu0 0.0
    %1420 = vmatpush1.msra.mxu0 0.0
    %1421 = vmatprep.subr.mxu0 0.0
    %1422 = vmatpush1.msra.mxu0 0.0
    %1423 = vmatprep.subr.mxu0 0.0
    %1424 = vmatpush1.msra.mxu0 0.0
    %1425 = vmatprep.subr.mxu0 0.0
    %1426 = vmatpush1.msra.mxu0 0.0
    %1427 = vmatprep.subr.mxu0 0.0
    %1428 = vmatpush1.msra.mxu0 0.0
    %1429 = vmatprep.subr.mxu0 0.0
    %1430 = vmatpush1.msra.mxu0 0.0
    %1431 = vmatprep.subr.mxu0 0.0
    %1432 = vmatpush1.msra.mxu0 0.0
    %1433 = vmatprep.subr.mxu0 0.0
    %1434 = vmatpush1.msra.mxu0 0.0
    %1435 = vmatprep.subr.mxu0 0.0
    %1436 = vmatpush1.msra.mxu0 0.0
    %1437 = vmatprep.subr.mxu0 0.0
    %1438 = vmatpush1.msra.mxu0 0.0
    %1439 = vmatprep.subr.mxu0 0.0
    %1440 = vmatpush1.msra.mxu0 0.0
    %1441 = vmatprep.subr.mxu0 0.0
    %1442 = vmatpush1.msra.mxu0 0.0
    %1443 = vmatprep.subr.mxu0 0.0
    %1444 = vmatpush1.msra.mxu0 0.0
    %1445 = vmatprep.subr.mxu0 0.0
    %1446 = vmatpush1.msra.mxu0 0.0
    %1447 = vmatprep.subr.mxu0 0.0
    %1448 = vmatpush1.msra.mxu0 0.0
    %1449 = vmatprep.mubr.f32.mxu0 0.0
    %1450 = vmatmul.mubr.f32.gmra.mrb[0].mxu0 %v1383
    %v1451 = vpop.f32.mrb[0].mxu0
    %v1452 = vadd.f32 0.0, %v1451
    %v1453 = vpop.f32.mrb[0].mxu0
    %1454 = vdwg.mxu0
    %1455 = vrot.lane.b32.xlu0 %v647, 64
    %v1456 = vpop.permute.xlu0 %1455
    %v1459 = vsel %vm666, %v1372, 0
    %1461 = vmatprep.subr.mxu0 0.0
    %1462 = vmatpush1.msra.mxu0 %v1456
    %1463 = vmatprep.subr.mxu0 0.0
    %1464 = vmatpush1.msra.mxu0 0.0
    %1465 = vmatprep.subr.mxu0 0.0
    %1466 = vmatpush1.msra.mxu0 0.0
    %1467 = vmatprep.subr.mxu0 0.0
    %1468 = vmatpush1.msra.mxu0 0.0
    %1469 = vmatprep.subr.mxu0 0.0
    %1470 = vmatpush1.msra.mxu0 0.0
    %1471 = vmatprep.subr.mxu0 0.0
    %1472 = vmatpush1.msra.mxu0 0.0
    %1473 = vmatprep.subr.mxu0 0.0
    %1474 = vmatpush1.msra.mxu0 0.0
    %1475 = vmatprep.subr.mxu0 0.0
    %1476 = vmatpush1.msra.mxu0 0.0
    %1477 = vmatprep.subr.mxu0 0.0
    %1478 = vmatpush1.msra.mxu0 0.0
    %1479 = vmatprep.subr.mxu0 0.0
    %1480 = vmatpush1.msra.mxu0 0.0
    %1481 = vmatprep.subr.mxu0 0.0
    %1482 = vmatpush1.msra.mxu0 0.0
    %1483 = vmatprep.subr.mxu0 0.0
    %1484 = vmatpush1.msra.mxu0 0.0
    %1485 = vmatprep.subr.mxu0 0.0
    %1486 = vmatpush1.msra.mxu0 0.0
    %1487 = vmatprep.subr.mxu0 0.0
    %1488 = vmatpush1.msra.mxu0 0.0
    %1489 = vmatprep.subr.mxu0 0.0
    %1490 = vmatpush1.msra.mxu0 0.0
    %1491 = vmatprep.subr.mxu0 0.0
    %1492 = vmatpush1.msra.mxu0 0.0
    %1493 = vmatprep.subr.mxu0 0.0
    %1494 = vmatpush1.msra.mxu0 0.0
    %1495 = vmatprep.subr.mxu0 0.0
    %1496 = vmatpush1.msra.mxu0 0.0
    %1497 = vmatprep.subr.mxu0 0.0
    %1498 = vmatpush1.msra.mxu0 0.0
    %1499 = vmatprep.subr.mxu0 0.0
    %1500 = vmatpush1.msra.mxu0 0.0
    %1501 = vmatprep.subr.mxu0 0.0
    %1502 = vmatpush1.msra.mxu0 0.0
    %1503 = vmatprep.subr.mxu0 0.0
    %1504 = vmatpush1.msra.mxu0 0.0
    %1505 = vmatprep.subr.mxu0 0.0
    %1506 = vmatpush1.msra.mxu0 0.0
    %1507 = vmatprep.subr.mxu0 0.0
    %1508 = vmatpush1.msra.mxu0 0.0
    %1509 = vmatprep.subr.mxu0 0.0
    %1510 = vmatpush1.msra.mxu0 0.0
    %1511 = vmatprep.subr.mxu0 0.0
    %1512 = vmatpush1.msra.mxu0 0.0
    %1513 = vmatprep.subr.mxu0 0.0
    %1514 = vmatpush1.msra.mxu0 0.0
    %1515 = vmatprep.subr.mxu0 0.0
    %1516 = vmatpush1.msra.mxu0 0.0
    %1517 = vmatprep.subr.mxu0 0.0
    %1518 = vmatpush1.msra.mxu0 0.0
    %1519 = vmatprep.subr.mxu0 0.0
    %1520 = vmatpush1.msra.mxu0 0.0
    %1521 = vmatprep.subr.mxu0 0.0
    %1522 = vmatpush1.msra.mxu0 0.0
    %1523 = vmatprep.subr.mxu0 0.0
    %1524 = vmatpush1.msra.mxu0 0.0
    %1525 = vmatprep.mubr.f32.mxu0 0.0
    %1526 = vmatmul.mubr.f32.gmra.mrb[0].mxu0 %v1459
    %v1527 = vpop.f32.mrb[0].mxu0
    %v1528 = vadd.f32 0.0, %v1527
    %v1529 = vpop.f32.mrb[0].mxu0
    %1530 = vdwg.mxu0
    %1531 = vrot.lane.b32.xlu0 %v653, 64
    %v1532 = vpop.permute.xlu0 %1531
    %v1535 = vsel %vm666, %v1373, 0
    %1537 = vmatprep.subr.mxu0 0.0
    %1538 = vmatpush1.msra.mxu0 %v1532
    %1539 = vmatprep.subr.mxu0 0.0
    %1540 = vmatpush1.msra.mxu0 0.0
    %1541 = vmatprep.subr.mxu0 0.0
    %1542 = vmatpush1.msra.mxu0 0.0
    %1543 = vmatprep.subr.mxu0 0.0
    %1544 = vmatpush1.msra.mxu0 0.0
    %1545 = vmatprep.subr.mxu0 0.0
    %1546 = vmatpush1.msra.mxu0 0.0
    %1547 = vmatprep.subr.mxu0 0.0
    %1548 = vmatpush1.msra.mxu0 0.0
    %1549 = vmatprep.subr.mxu0 0.0
    %1550 = vmatpush1.msra.mxu0 0.0
    %1551 = vmatprep.subr.mxu0 0.0
    %1552 = vmatpush1.msra.mxu0 0.0
    %1553 = vmatprep.subr.mxu0 0.0
    %1554 = vmatpush1.msra.mxu0 0.0
    %1555 = vmatprep.subr.mxu0 0.0
    %1556 = vmatpush1.msra.mxu0 0.0
    %1557 = vmatprep.subr.mxu0 0.0
    %1558 = vmatpush1.msra.mxu0 0.0
    %1559 = vmatprep.subr.mxu0 0.0
    %1560 = vmatpush1.msra.mxu0 0.0
    %1561 = vmatprep.subr.mxu0 0.0
    %1562 = vmatpush1.msra.mxu0 0.0
    %1563 = vmatprep.subr.mxu0 0.0
    %1564 = vmatpush1.msra.mxu0 0.0
    %1565 = vmatprep.subr.mxu0 0.0
    %1566 = vmatpush1.msra.mxu0 0.0
    %1567 = vmatprep.subr.mxu0 0.0
    %1568 = vmatpush1.msra.mxu0 0.0
    %1569 = vmatprep.subr.mxu0 0.0
    %1570 = vmatpush1.msra.mxu0 0.0
    %1571 = vmatprep.subr.mxu0 0.0
    %1572 = vmatpush1.msra.mxu0 0.0
    %1573 = vmatprep.subr.mxu0 0.0
    %1574 = vmatpush1.msra.mxu0 0.0
    %1575 = vmatprep.subr.mxu0 0.0
    %1576 = vmatpush1.msra.mxu0 0.0
    %1577 = vmatprep.subr.mxu0 0.0
    %1578 = vmatpush1.msra.mxu0 0.0
    %1579 = vmatprep.subr.mxu0 0.0
    %1580 = vmatpush1.msra.mxu0 0.0
    %1581 = vmatprep.subr.mxu0 0.0
    %1582 = vmatpush1.msra.mxu0 0.0
    %1583 = vmatprep.subr.mxu0 0.0
    %1584 = vmatpush1.msra.mxu0 0.0
    %1585 = vmatprep.subr.mxu0 0.0
    %1586 = vmatpush1.msra.mxu0 0.0
    %1587 = vmatprep.subr.mxu0 0.0
    %1588 = vmatpush1.msra.mxu0 0.0
    %1589 = vmatprep.subr.mxu0 0.0
    %1590 = vmatpush1.msra.mxu0 0.0
    %1591 = vmatprep.subr.mxu0 0.0
    %1592 = vmatpush1.msra.mxu0 0.0
    %1593 = vmatprep.subr.mxu0 0.0
    %1594 = vmatpush1.msra.mxu0 0.0
    %1595 = vmatprep.subr.mxu0 0.0
    %1596 = vmatpush1.msra.mxu0 0.0
    %1597 = vmatprep.subr.mxu0 0.0
    %1598 = vmatpush1.msra.mxu0 0.0
    %1599 = vmatprep.subr.mxu0 0.0
    %1600 = vmatpush1.msra.mxu0 0.0
    %1601 = vmatprep.mubr.f32.mxu0 0.0
    %1602 = vmatmul.mubr.f32.gmra.mrb[0].mxu0 %v1535
    %v1603 = vpop.f32.mrb[0].mxu0
    %v1604 = vadd.f32 0.0, %v1603
    %v1605 = vpop.f32.mrb[0].mxu0
    %1606 = vdwg.mxu0
    %1607 = vrot.lane.b32.xlu0 %v655, 64
    %v1608 = vpop.permute.xlu0 %1607
    %v1611 = vsel %vm666, %v1374, 0
    %1613 = vmatprep.subr.mxu0 0.0
    %1614 = vmatpush1.msra.mxu0 %v1608
    %1615 = vmatprep.subr.mxu0 0.0
    %1616 = vmatpush1.msra.mxu0 0.0
    %1617 = vmatprep.subr.mxu0 0.0
    %1618 = vmatpush1.msra.mxu0 0.0
    %1619 = vmatprep.subr.mxu0 0.0
    %1620 = vmatpush1.msra.mxu0 0.0
    %1621 = vmatprep.subr.mxu0 0.0
    %1622 = vmatpush1.msra.mxu0 0.0
    %1623 = vmatprep.subr.mxu0 0.0
    %1624 = vmatpush1.msra.mxu0 0.0
    %1625 = vmatprep.subr.mxu0 0.0
    %1626 = vmatpush1.msra.mxu0 0.0
    %1627 = vmatprep.subr.mxu0 0.0
    %1628 = vmatpush1.msra.mxu0 0.0
    %1629 = vmatprep.subr.mxu0 0.0
    %1630 = vmatpush1.msra.mxu0 0.0
    %1631 = vmatprep.subr.mxu0 0.0
    %1632 = vmatpush1.msra.mxu0 0.0
    %1633 = vmatprep.subr.mxu0 0.0
    %1634 = vmatpush1.msra.mxu0 0.0
    %1635 = vmatprep.subr.mxu0 0.0
    %1636 = vmatpush1.msra.mxu0 0.0
    %1637 = vmatprep.subr.mxu0 0.0
    %1638 = vmatpush1.msra.mxu0 0.0
    %1639 = vmatprep.subr.mxu0 0.0
    %1640 = vmatpush1.msra.mxu0 0.0
    %1641 = vmatprep.subr.mxu0 0.0
    %1642 = vmatpush1.msra.mxu0 0.0
    %1643 = vmatprep.subr.mxu0 0.0
    %1644 = vmatpush1.msra.mxu0 0.0
    %1645 = vmatprep.subr.mxu0 0.0
    %1646 = vmatpush1.msra.mxu0 0.0
    %1647 = vmatprep.subr.mxu0 0.0
    %1648 = vmatpush1.msra.mxu0 0.0
    %1649 = vmatprep.subr.mxu0 0.0
    %1650 = vmatpush1.msra.mxu0 0.0
    %1651 = vmatprep.subr.mxu0 0.0
    %1652 = vmatpush1.msra.mxu0 0.0
    %1653 = vmatprep.subr.mxu0 0.0
    %1654 = vmatpush1.msra.mxu0 0.0
    %1655 = vmatprep.subr.mxu0 0.0
    %1656 = vmatpush1.msra.mxu0 0.0
    %1657 = vmatprep.subr.mxu0 0.0
    %1658 = vmatpush1.msra.mxu0 0.0
    %1659 = vmatprep.subr.mxu0 0.0
    %1660 = vmatpush1.msra.mxu0 0.0
    %1661 = vmatprep.subr.mxu0 0.0
    %1662 = vmatpush1.msra.mxu0 0.0
    %1663 = vmatprep.subr.mxu0 0.0
    %1664 = vmatpush1.msra.mxu0 0.0
    %1665 = vmatprep.subr.mxu0 0.0
    %1666 = vmatpush1.msra.mxu0 0.0
    %1667 = vmatprep.subr.mxu0 0.0
    %1668 = vmatpush1.msra.mxu0 0.0
    %1669 = vmatprep.subr.mxu0 0.0
    %1670 = vmatpush1.msra.mxu0 0.0
    %1671 = vmatprep.subr.mxu0 0.0
    %1672 = vmatpush1.msra.mxu0 0.0
    %1673 = vmatprep.subr.mxu0 0.0
    %1674 = vmatpush1.msra.mxu0 0.0
    %1675 = vmatprep.subr.mxu0 0.0
    %1676 = vmatpush1.msra.mxu0 0.0
    %1677 = vmatprep.mubr.f32.mxu0 0.0
    %1678 = vmatmul.mubr.f32.gmra.mrb[0].mxu0 %v1611
    %v1679 = vpop.f32.mrb[0].mxu0
    %v1680 = vadd.f32 0.0, %v1679
    %v1681 = vpop.f32.mrb[0].mxu0
    %1682 = vdwg.mxu0
    %1683 = vrot.lane.b32.xlu0 %v657, 64
    %v1684 = vpop.permute.xlu0 %1683
    %v1687 = vsel %vm666, %v1375, 0
    %1689 = vmatprep.subr.mxu0 0.0
    %1690 = vmatpush1.msra.mxu0 %v1684
    %1691 = vmatprep.subr.mxu0 0.0
    %1692 = vmatpush1.msra.mxu0 0.0
    %1693 = vmatprep.subr.mxu0 0.0
    %1694 = vmatpush1.msra.mxu0 0.0
    %1695 = vmatprep.subr.mxu0 0.0
    %1696 = vmatpush1.msra.mxu0 0.0
    %1697 = vmatprep.subr.mxu0 0.0
    %1698 = vmatpush1.msra.mxu0 0.0
    %1699 = vmatprep.subr.mxu0 0.0
    %1700 = vmatpush1.msra.mxu0 0.0
    %1701 = vmatprep.subr.mxu0 0.0
    %1702 = vmatpush1.msra.mxu0 0.0
    %1703 = vmatprep.subr.mxu0 0.0
    %1704 = vmatpush1.msra.mxu0 0.0
    %1705 = vmatprep.subr.mxu0 0.0
    %1706 = vmatpush1.msra.mxu0 0.0
    %1707 = vmatprep.subr.mxu0 0.0
    %1708 = vmatpush1.msra.mxu0 0.0
    %1709 = vmatprep.subr.mxu0 0.0
    %1710 = vmatpush1.msra.mxu0 0.0
    %1711 = vmatprep.subr.mxu0 0.0
    %1712 = vmatpush1.msra.mxu0 0.0
    %1713 = vmatprep.subr.mxu0 0.0
    %1714 = vmatpush1.msra.mxu0 0.0
    %1715 = vmatprep.subr.mxu0 0.0
    %1716 = vmatpush1.msra.mxu0 0.0
    %1717 = vmatprep.subr.mxu0 0.0
    %1718 = vmatpush1.msra.mxu0 0.0
    %1719 = vmatprep.subr.mxu0 0.0
    %1720 = vmatpush1.msra.mxu0 0.0
    %1721 = vmatprep.subr.mxu0 0.0
    %1722 = vmatpush1.msra.mxu0 0.0
    %1723 = vmatprep.subr.mxu0 0.0
    %1724 = vmatpush1.msra.mxu0 0.0
    %1725 = vmatprep.subr.mxu0 0.0
    %1726 = vmatpush1.msra.mxu0 0.0
    %1727 = vmatprep.subr.mxu0 0.0
    %1728 = vmatpush1.msra.mxu0 0.0
    %1729 = vmatprep.subr.mxu0 0.0
    %1730 = vmatpush1.msra.mxu0 0.0
    %1731 = vmatprep.subr.mxu0 0.0
    %1732 = vmatpush1.msra.mxu0 0.0
    %1733 = vmatprep.subr.mxu0 0.0
    %1734 = vmatpush1.msra.mxu0 0.0
    %1735 = vmatprep.subr.mxu0 0.0
    %1736 = vmatpush1.msra.mxu0 0.0
    %1737 = vmatprep.subr.mxu0 0.0
    %1738 = vmatpush1.msra.mxu0 0.0
    %1739 = vmatprep.subr.mxu0 0.0
    %1740 = vmatpush1.msra.mxu0 0.0
    %1741 = vmatprep.subr.mxu0 0.0
    %1742 = vmatpush1.msra.mxu0 0.0
    %1743 = vmatprep.subr.mxu0 0.0
    %1744 = vmatpush1.msra.mxu0 0.0
    %1745 = vmatprep.subr.mxu0 0.0
    %1746 = vmatpush1.msra.mxu0 0.0
    %1747 = vmatprep.subr.mxu0 0.0
    %1748 = vmatpush1.msra.mxu0 0.0
    %1749 = vmatprep.subr.mxu0 0.0
    %1750 = vmatpush1.msra.mxu0 0.0
    %1751 = vmatprep.subr.mxu0 0.0
    %1752 = vmatpush1.msra.mxu0 0.0
    %1753 = vmatprep.mubr.f32.mxu0 0.0
    %1754 = vmatmul.mubr.f32.gmra.mrb[0].mxu0 %v1687
    %v1755 = vpop.f32.mrb[0].mxu0
    %v1756 = vadd.f32 0.0, %v1755
    %v1757 = vpop.f32.mrb[0].mxu0
    %1758 = vdwg.mxu0
    %1759 = vrot.lane.b32.xlu0 %v659, 64
    %v1760 = vpop.permute.xlu0 %1759
    %v1763 = vsel %vm666, %v1376, 0
    %1765 = vmatprep.subr.mxu0 0.0
    %1766 = vmatpush1.msra.mxu0 %v1760
    %1767 = vmatprep.subr.mxu0 0.0
    %1768 = vmatpush1.msra.mxu0 0.0
    %1769 = vmatprep.subr.mxu0 0.0
    %1770 = vmatpush1.msra.mxu0 0.0
    %1771 = vmatprep.subr.mxu0 0.0
    %1772 = vmatpush1.msra.mxu0 0.0
    %1773 = vmatprep.subr.mxu0 0.0
    %1774 = vmatpush1.msra.mxu0 0.0
    %1775 = vmatprep.subr.mxu0 0.0
    %1776 = vmatpush1.msra.mxu0 0.0
    %1777 = vmatprep.subr.mxu0 0.0
    %1778 = vmatpush1.msra.mxu0 0.0
    %1779 = vmatprep.subr.mxu0 0.0
    %1780 = vmatpush1.msra.mxu0 0.0
    %1781 = vmatprep.subr.mxu0 0.0
    %1782 = vmatpush1.msra.mxu0 0.0
    %1783 = vmatprep.subr.mxu0 0.0
    %1784 = vmatpush1.msra.mxu0 0.0
    %1785 = vmatprep.subr.mxu0 0.0
    %1786 = vmatpush1.msra.mxu0 0.0
    %1787 = vmatprep.subr.mxu0 0.0
    %1788 = vmatpush1.msra.mxu0 0.0
    %1789 = vmatprep.subr.mxu0 0.0
    %1790 = vmatpush1.msra.mxu0 0.0
    %1791 = vmatprep.subr.mxu0 0.0
    %1792 = vmatpush1.msra.mxu0 0.0
    %1793 = vmatprep.subr.mxu0 0.0
    %1794 = vmatpush1.msra.mxu0 0.0
    %1795 = vmatprep.subr.mxu0 0.0
    %1796 = vmatpush1.msra.mxu0 0.0
    %1797 = vmatprep.subr.mxu0 0.0
    %1798 = vmatpush1.msra.mxu0 0.0
    %1799 = vmatprep.subr.mxu0 0.0
    %1800 = vmatpush1.msra.mxu0 0.0
    %1801 = vmatprep.subr.mxu0 0.0
    %1802 = vmatpush1.msra.mxu0 0.0
    %1803 = vmatprep.subr.mxu0 0.0
    %1804 = vmatpush1.msra.mxu0 0.0
    %1805 = vmatprep.subr.mxu0 0.0
    %1806 = vmatpush1.msra.mxu0 0.0
    %1807 = vmatprep.subr.mxu0 0.0
    %1808 = vmatpush1.msra.mxu0 0.0
    %1809 = vmatprep.subr.mxu0 0.0
    %1810 = vmatpush1.msra.mxu0 0.0
    %1811 = vmatprep.subr.mxu0 0.0
    %1812 = vmatpush1.msra.mxu0 0.0
    %1813 = vmatprep.subr.mxu0 0.0
    %1814 = vmatpush1.msra.mxu0 0.0
    %1815 = vmatprep.subr.mxu0 0.0
    %1816 = vmatpush1.msra.mxu0 0.0
    %1817 = vmatprep.subr.mxu0 0.0
    %1818 = vmatpush1.msra.mxu0 0.0
    %1819 = vmatprep.subr.mxu0 0.0
    %1820 = vmatpush1.msra.mxu0 0.0
    %1821 = vmatprep.subr.mxu0 0.0
    %1822 = vmatpush1.msra.mxu0 0.0
    %1823 = vmatprep.subr.mxu0 0.0
    %1824 = vmatpush1.msra.mxu0 0.0
    %1825 = vmatprep.subr.mxu0 0.0
    %1826 = vmatpush1.msra.mxu0 0.0
    %1827 = vmatprep.subr.mxu0 0.0
    %1828 = vmatpush1.msra.mxu0 0.0
    %1829 = vmatprep.mubr.f32.mxu0 0.0
    %1830 = vmatmul.mubr.f32.gmra.mrb[0].mxu0 %v1763
    %v1831 = vpop.f32.mrb[0].mxu0
    %v1832 = vadd.f32 0.0, %v1831
    %v1833 = vpop.f32.mrb[0].mxu0
    %1834 = vdwg.mxu0
    %1835 = vrot.lane.b32.xlu0 %v661, 64
    %v1836 = vpop.permute.xlu0 %1835
    %v1839 = vsel %vm666, %v1377, 0
    %1841 = vmatprep.subr.mxu0 0.0
    %1842 = vmatpush1.msra.mxu0 %v1836
    %1843 = vmatprep.subr.mxu0 0.0
    %1844 = vmatpush1.msra.mxu0 0.0
    %1845 = vmatprep.subr.mxu0 0.0
    %1846 = vmatpush1.msra.mxu0 0.0
    %1847 = vmatprep.subr.mxu0 0.0
    %1848 = vmatpush1.msra.mxu0 0.0
    %1849 = vmatprep.subr.mxu0 0.0
    %1850 = vmatpush1.msra.mxu0 0.0
    %1851 = vmatprep.subr.mxu0 0.0
    %1852 = vmatpush1.msra.mxu0 0.0
    %1853 = vmatprep.subr.mxu0 0.0
    %1854 = vmatpush1.msra.mxu0 0.0
    %1855 = vmatprep.subr.mxu0 0.0
    %1856 = vmatpush1.msra.mxu0 0.0
    %1857 = vmatprep.subr.mxu0 0.0
    %1858 = vmatpush1.msra.mxu0 0.0
    %1859 = vmatprep.subr.mxu0 0.0
    %1860 = vmatpush1.msra.mxu0 0.0
    %1861 = vmatprep.subr.mxu0 0.0
    %1862 = vmatpush1.msra.mxu0 0.0
    %1863 = vmatprep.subr.mxu0 0.0
    %1864 = vmatpush1.msra.mxu0 0.0
    %1865 = vmatprep.subr.mxu0 0.0
    %1866 = vmatpush1.msra.mxu0 0.0
    %1867 = vmatprep.subr.mxu0 0.0
    %1868 = vmatpush1.msra.mxu0 0.0
    %1869 = vmatprep.subr.mxu0 0.0
    %1870 = vmatpush1.msra.mxu0 0.0
    %1871 = vmatprep.subr.mxu0 0.0
    %1872 = vmatpush1.msra.mxu0 0.0
    %1873 = vmatprep.subr.mxu0 0.0
    %1874 = vmatpush1.msra.mxu0 0.0
    %1875 = vmatprep.subr.mxu0 0.0
    %1876 = vmatpush1.msra.mxu0 0.0
    %1877 = vmatprep.subr.mxu0 0.0
    %1878 = vmatpush1.msra.mxu0 0.0
    %1879 = vmatprep.subr.mxu0 0.0
    %1880 = vmatpush1.msra.mxu0 0.0
    %1881 = vmatprep.subr.mxu0 0.0
    %1882 = vmatpush1.msra.mxu0 0.0
    %1883 = vmatprep.subr.mxu0 0.0
    %1884 = vmatpush1.msra.mxu0 0.0
    %1885 = vmatprep.subr.mxu0 0.0
    %1886 = vmatpush1.msra.mxu0 0.0
    %1887 = vmatprep.subr.mxu0 0.0
    %1888 = vmatpush1.msra.mxu0 0.0
    %1889 = vmatprep.subr.mxu0 0.0
    %1890 = vmatpush1.msra.mxu0 0.0
    %1891 = vmatprep.subr.mxu0 0.0
    %1892 = vmatpush1.msra.mxu0 0.0
    %1893 = vmatprep.subr.mxu0 0.0
    %1894 = vmatpush1.msra.mxu0 0.0
    %1895 = vmatprep.subr.mxu0 0.0
    %1896 = vmatpush1.msra.mxu0 0.0
    %1897 = vmatprep.subr.mxu0 0.0
    %1898 = vmatpush1.msra.mxu0 0.0
    %1899 = vmatprep.subr.mxu0 0.0
    %1900 = vmatpush1.msra.mxu0 0.0
    %1901 = vmatprep.subr.mxu0 0.0
    %1902 = vmatpush1.msra.mxu0 0.0
    %1903 = vmatprep.subr.mxu0 0.0
    %1904 = vmatpush1.msra.mxu0 0.0
    %1905 = vmatprep.mubr.f32.mxu0 0.0
    %1906 = vmatmul.mubr.f32.gmra.mrb[0].mxu0 %v1839
    %v1907 = vpop.f32.mrb[0].mxu0
    %v1908 = vadd.f32 0.0, %v1907
    %v1909 = vpop.f32.mrb[0].mxu0
    %1910 = vdwg.mxu0
    %1911 = vrot.lane.b32.xlu0 %v663, 64
    %v1912 = vpop.permute.xlu0 %1911
    %v1915 = vsel %vm666, %v1378, 0
    %1917 = vmatprep.subr.mxu0 0.0
    %1918 = vmatpush1.msra.mxu0 %v1912
    %1919 = vmatprep.subr.mxu0 0.0
    %1920 = vmatpush1.msra.mxu0 0.0
    %1921 = vmatprep.subr.mxu0 0.0
    %1922 = vmatpush1.msra.mxu0 0.0
    %1923 = vmatprep.subr.mxu0 0.0
    %1924 = vmatpush1.msra.mxu0 0.0
    %1925 = vmatprep.subr.mxu0 0.0
    %1926 = vmatpush1.msra.mxu0 0.0
    %1927 = vmatprep.subr.mxu0 0.0
    %1928 = vmatpush1.msra.mxu0 0.0
    %1929 = vmatprep.subr.mxu0 0.0
    %1930 = vmatpush1.msra.mxu0 0.0
    %1931 = vmatprep.subr.mxu0 0.0
    %1932 = vmatpush1.msra.mxu0 0.0
    %1933 = vmatprep.subr.mxu0 0.0
    %1934 = vmatpush1.msra.mxu0 0.0
    %1935 = vmatprep.subr.mxu0 0.0
    %1936 = vmatpush1.msra.mxu0 0.0
    %1937 = vmatprep.subr.mxu0 0.0
    %1938 = vmatpush1.msra.mxu0 0.0
    %1939 = vmatprep.subr.mxu0 0.0
    %1940 = vmatpush1.msra.mxu0 0.0
    %1941 = vmatprep.subr.mxu0 0.0
    %1942 = vmatpush1.msra.mxu0 0.0
    %1943 = vmatprep.subr.mxu0 0.0
    %1944 = vmatpush1.msra.mxu0 0.0
    %1945 = vmatprep.subr.mxu0 0.0
    %1946 = vmatpush1.msra.mxu0 0.0
    %1947 = vmatprep.subr.mxu0 0.0
    %1948 = vmatpush1.msra.mxu0 0.0
    %1949 = vmatprep.subr.mxu0 0.0
    %1950 = vmatpush1.msra.mxu0 0.0
    %1951 = vmatprep.subr.mxu0 0.0
    %1952 = vmatpush1.msra.mxu0 0.0
    %1953 = vmatprep.subr.mxu0 0.0
    %1954 = vmatpush1.msra.mxu0 0.0
    %1955 = vmatprep.subr.mxu0 0.0
    %1956 = vmatpush1.msra.mxu0 0.0
    %1957 = vmatprep.subr.mxu0 0.0
    %1958 = vmatpush1.msra.mxu0 0.0
    %1959 = vmatprep.subr.mxu0 0.0
    %1960 = vmatpush1.msra.mxu0 0.0
    %1961 = vmatprep.subr.mxu0 0.0
    %1962 = vmatpush1.msra.mxu0 0.0
    %1963 = vmatprep.subr.mxu0 0.0
    %1964 = vmatpush1.msra.mxu0 0.0
    %1965 = vmatprep.subr.mxu0 0.0
    %1966 = vmatpush1.msra.mxu0 0.0
    %1967 = vmatprep.subr.mxu0 0.0
    %1968 = vmatpush1.msra.mxu0 0.0
    %1969 = vmatprep.subr.mxu0 0.0
    %1970 = vmatpush1.msra.mxu0 0.0
    %1971 = vmatprep.subr.mxu0 0.0
    %1972 = vmatpush1.msra.mxu0 0.0
    %1973 = vmatprep.subr.mxu0 0.0
    %1974 = vmatpush1.msra.mxu0 0.0
    %1975 = vmatprep.subr.mxu0 0.0
    %1976 = vmatpush1.msra.mxu0 0.0
    %1977 = vmatprep.subr.mxu0 0.0
    %1978 = vmatpush1.msra.mxu0 0.0
    %1979 = vmatprep.subr.mxu0 0.0
    %1980 = vmatpush1.msra.mxu0 0.0
    %1981 = vmatprep.mubr.f32.mxu0 0.0
    %1982 = vmatmul.mubr.f32.gmra.mrb[0].mxu0 %v1915
    %v1983 = vpop.f32.mrb[0].mxu0
    %v1984 = vadd.f32 0.0, %v1983
    %v1985 = vpop.f32.mrb[0].mxu0
    %1986 = vdwg.mxu0
    %1989 = vrot.lane.b32.xlu0 %v1604, 8
    %v1990 = vpop.permute.xlu0 %1989
    %1991 = vrot.lane.b32.xlu0 %v1680, 8
    %v1992 = vpop.permute.xlu0 %1991
    %1997 = vrot.lane.b32.xlu0 %v1756, 16
    %v1998 = vpop.permute.xlu0 %1997
    %1999 = vrot.lane.b32.xlu0 %v1832, 16
    %v2000 = vpop.permute.xlu0 %1999
    %2005 = vrot.lane.b32.xlu0 %v1908, 24
    %v2006 = vpop.permute.xlu0 %2005
    %2007 = vrot.lane.b32.xlu0 %v1984, 24
    %v2008 = vpop.permute.xlu0 %2007
    %v2011 = vsel %vm666, %v1452, %v1990
    %v2012 = vsel %vm666, %v1528, %v1992
    %vm2013 = vcmask 130048
    %v2014 = vsel %vm2013, %v2011, %v1998
    %v2015 = vsel %vm2013, %v2012, %v2000
    %vm2016 = vcmask 195584
    %v2017 = vsel %vm2016, %v2014, %v2006
    %v2018 = vsel %vm2016, %v2015, %v2008
    %v2020 = vsel %vm171, %v2017, 0
    %v2023 = vsel %vm171, %v2018, 0
    %2025 = vmatprep.subr.mxu0 0.0
    %2026 = vmatpush1.msra.mxu0 %v417
    %2027 = vmatprep.subr.mxu0 0.0
    %2028 = vmatpush1.msra.mxu0 %v418
    %2029 = vmatprep.subr.mxu0 0.0
    %2030 = vmatpush1.msra.mxu0 %v419
    %2031 = vmatprep.subr.mxu0 0.0
    %2032 = vmatpush1.msra.mxu0 %v420
    %2033 = vmatprep.subr.mxu0 0.0
    %2034 = vmatpush1.msra.mxu0 0.0
    %2035 = vmatprep.subr.mxu0 0.0
    %2036 = vmatpush1.msra.mxu0 0.0
    %2037 = vmatprep.subr.mxu0 0.0
    %2038 = vmatpush1.msra.mxu0 0.0
    %2039 = vmatprep.subr.mxu0 0.0
    %2040 = vmatpush1.msra.mxu0 0.0
    %2041 = vmatprep.subr.mxu0 0.0
    %2042 = vmatpush1.msra.mxu0 0.0
    %2043 = vmatprep.subr.mxu0 0.0
    %2044 = vmatpush1.msra.mxu0 0.0
    %2045 = vmatprep.subr.mxu0 0.0
    %2046 = vmatpush1.msra.mxu0 0.0
    %2047 = vmatprep.subr.mxu0 0.0
    %2048 = vmatpush1.msra.mxu0 0.0
    %2049 = vmatprep.subr.mxu0 0.0
    %2050 = vmatpush1.msra.mxu0 0.0
    %2051 = vmatprep.subr.mxu0 0.0
    %2052 = vmatpush1.msra.mxu0 0.0
    %2053 = vmatprep.subr.mxu0 0.0
    %2054 = vmatpush1.msra.mxu0 0.0
    %2055 = vmatprep.subr.mxu0 0.0
    %2056 = vmatpush1.msra.mxu0 0.0
    %2057 = vmatprep.subr.mxu0 0.0
    %2058 = vmatpush1.msra.mxu0 0.0
    %2059 = vmatprep.subr.mxu0 0.0
    %2060 = vmatpush1.msra.mxu0 0.0
    %2061 = vmatprep.subr.mxu0 0.0
    %2062 = vmatpush1.msra.mxu0 0.0
    %2063 = vmatprep.subr.mxu0 0.0
    %2064 = vmatpush1.msra.mxu0 0.0
    %2065 = vmatprep.subr.mxu0 0.0
    %2066 = vmatpush1.msra.mxu0 0.0
    %2067 = vmatprep.subr.mxu0 0.0
    %2068 = vmatpush1.msra.mxu0 0.0
    %2069 = vmatprep.subr.mxu0 0.0
    %2070 = vmatpush1.msra.mxu0 0.0
    %2071 = vmatprep.subr.mxu0 0.0
    %2072 = vmatpush1.msra.mxu0 0.0
    %2073 = vmatprep.subr.mxu0 0.0
    %2074 = vmatpush1.msra.mxu0 0.0
    %2075 = vmatprep.subr.mxu0 0.0
    %2076 = vmatpush1.msra.mxu0 0.0
    %2077 = vmatprep.subr.mxu0 0.0
    %2078 = vmatpush1.msra.mxu0 0.0
    %2079 = vmatprep.subr.mxu0 0.0
    %2080 = vmatpush1.msra.mxu0 0.0
    %2081 = vmatprep.subr.mxu0 0.0
    %2082 = vmatpush1.msra.mxu0 0.0
    %2083 = vmatprep.subr.mxu0 0.0
    %2084 = vmatpush1.msra.mxu0 0.0
    %2085 = vmatprep.subr.mxu0 0.0
    %2086 = vmatpush1.msra.mxu0 0.0
    %2087 = vmatprep.subr.mxu0 0.0
    %2088 = vmatpush1.msra.mxu0 0.0
    %2089 = vmatprep.mubr.f32.mxu0 0.0
    %2090 = vmatmul.mubr.f32.gmra.mrb[0].mxu0 %v2020
    %v2091 = vpop.f32.mrb[0].mxu0
    %v2092 = vadd.f32 0.0, %v2091
    %v2093 = vpop.f32.mrb[0].mxu0
    %2094 = vmatprep.mubr.f32.mxu0 0.0
    %2095 = vmatmul.mubr.f32.gmra.mrb[0].mxu0 %v2023
    %v2096 = vpop.f32.mrb[0].mxu0
    %v2097 = vadd.f32 0.0, %v2096
    %v2098 = vpop.f32.mrb[0].mxu0
    %2099 = vdwg.mxu0
    %v2100 = vadd.f32 %v142, %v2092
    %v2101 = vadd.f32 %v147, %v2097
    %v2102 = vlaneseq
    %v2103 = vshrl.u32 %v2102, 7
    %v2104 = vsub.s32 2, %v2103
    %v2105 = vrot.slane %v531, %v2104
    %v2106 = vadd.f32 %v2100, %v2105
    %v2107 = vadd.f32 %v2101, %v2105
    %v2108 = vsel %vm171, %v2106, 0.0
    %2109 = vadd.xlane.f32.xlu0 %v2108
    %v2110 = vpop.xlane.xlu0 %2109
    %v2111 = vsel %vm171, %v2107, 0.0
    %2112 = vadd.xlane.f32.xlu0 %v2111
    %v2113 = vpop.xlane.xlu0 %2112
    %v2114 = vmul.f32 %v2110, %v536
    %v2115 = vmul.f32 %v2113, %v536
    %v2116 = vsub.f32 %v2106, %v2114
    %v2117 = vsub.f32 %v2107, %v2115
    %v2118 = vmul.f32 %v2116, %v2116
    %v2119 = vmul.f32 %v2117, %v2117
    %v2120 = vsel %vm171, %v2118, 0.0
    %2121 = vadd.xlane.f32.xlu0 %v2120
    %v2122 = vpop.xlane.xlu0 %2121
    %v2123 = vsel %vm171, %v2119, 0.0
    %2124 = vadd.xlane.f32.xlu0 %v2123
    %v2125 = vpop.xlane.xlu0 %2124
    %v2126 = vmul.f32 %v2122, %v536
    %v2127 = vmul.f32 %v2125, %v536
    %v2128 = vadd.f32 %v2126, 1e-05
    %v2129 = vadd.f32 %v2127, 1e-05
    %v2130 = vrsqrt.pop %v2128
    %v2131 = vrsqrt.pop %v2129
    %v2132 = vmul.f32 %v2116, %v2130
    %v2133 = vmul.f32 %v2117, %v2131
    %v2134 = vlaneseq
    %v2135 = vshrl.u32 %v2134, 7
    %v2136 = vsub.s32 3, %v2135
    %v2137 = vrot.slane %v531, %v2136
    %v2138 = vmul.f32 %v2132, %v2137
    %v2139 = vmul.f32 %v2133, %v2137
    %v2140 = vlaneseq
    %v2141 = vshrl.u32 %v2140, 7
    %v2142 = vsub.s32 4, %v2141
    %v2143 = vrot.slane %v531, %v2142
    %v2144 = vadd.f32 %v2138, %v2143
    %v2145 = vadd.f32 %v2139, %v2143
    %v2146 = vlaneseq
    %v2147 = vshrl.u32 %v2146, 7
    %v2148 = vsub.s32 6, %v2147
    %v2149 = vrot.slane %v531, %v2148
    %v2151 = vsel %vm171, %v2144, 0
    %v2154 = vsel %vm171, %v2145, 0
    %2156 = vmatprep.subr.mxu0 0.0
    %2157 = vmatpush1.msra.mxu0 %v439
    %2158 = vmatprep.subr.mxu0 0.0
    %2159 = vmatpush1.msra.mxu0 %v440
    %2160 = vmatprep.subr.mxu0 0.0
    %2161 = vmatpush1.msra.mxu0 %v441
    %2162 = vmatprep.subr.mxu0 0.0
    %2163 = vmatpush1.msra.mxu0 %v442
    %2164 = vmatprep.subr.mxu0 0.0
    %2165 = vmatpush1.msra.mxu0 0.0
    %2166 = vmatprep.subr.mxu0 0.0
    %2167 = vmatpush1.msra.mxu0 0.0
    %2168 = vmatprep.subr.mxu0 0.0
    %2169 = vmatpush1.msra.mxu0 0.0
    %2170 = vmatprep.subr.mxu0 0.0
    %2171 = vmatpush1.msra.mxu0 0.0
    %2172 = vmatprep.subr.mxu0 0.0
    %2173 = vmatpush1.msra.mxu0 0.0
    %2174 = vmatprep.subr.mxu0 0.0
    %2175 = vmatpush1.msra.mxu0 0.0
    %2176 = vmatprep.subr.mxu0 0.0
    %2177 = vmatpush1.msra.mxu0 0.0
    %2178 = vmatprep.subr.mxu0 0.0
    %2179 = vmatpush1.msra.mxu0 0.0
    %2180 = vmatprep.subr.mxu0 0.0
    %2181 = vmatpush1.msra.mxu0 0.0
    %2182 = vmatprep.subr.mxu0 0.0
    %2183 = vmatpush1.msra.mxu0 0.0
    %2184 = vmatprep.subr.mxu0 0.0
    %2185 = vmatpush1.msra.mxu0 0.0
    %2186 = vmatprep.subr.mxu0 0.0
    %2187 = vmatpush1.msra.mxu0 0.0
    %2188 = vmatprep.subr.mxu0 0.0
    %2189 = vmatpush1.msra.mxu0 0.0
    %2190 = vmatprep.subr.mxu0 0.0
    %2191 = vmatpush1.msra.mxu0 0.0
    %2192 = vmatprep.subr.mxu0 0.0
    %2193 = vmatpush1.msra.mxu0 0.0
    %2194 = vmatprep.subr.mxu0 0.0
    %2195 = vmatpush1.msra.mxu0 0.0
    %2196 = vmatprep.subr.mxu0 0.0
    %2197 = vmatpush1.msra.mxu0 0.0
    %2198 = vmatprep.subr.mxu0 0.0
    %2199 = vmatpush1.msra.mxu0 0.0
    %2200 = vmatprep.subr.mxu0 0.0
    %2201 = vmatpush1.msra.mxu0 0.0
    %2202 = vmatprep.subr.mxu0 0.0
    %2203 = vmatpush1.msra.mxu0 0.0
    %2204 = vmatprep.subr.mxu0 0.0
    %2205 = vmatpush1.msra.mxu0 0.0
    %2206 = vmatprep.subr.mxu0 0.0
    %2207 = vmatpush1.msra.mxu0 0.0
    %2208 = vmatprep.subr.mxu0 0.0
    %2209 = vmatpush1.msra.mxu0 0.0
    %2210 = vmatprep.subr.mxu0 0.0
    %2211 = vmatpush1.msra.mxu0 0.0
    %2212 = vmatprep.subr.mxu0 0.0
    %2213 = vmatpush1.msra.mxu0 0.0
    %2214 = vmatprep.subr.mxu0 0.0
    %2215 = vmatpush1.msra.mxu0 0.0
    %2216 = vmatprep.subr.mxu0 0.0
    %2217 = vmatpush1.msra.mxu0 0.0
    %2218 = vmatprep.subr.mxu0 0.0
    %2219 = vmatpush1.msra.mxu0 0.0
    %2220 = vmatprep.mubr.f32.mxu0 0.0
    %2221 = vmatmul.mubr.f32.gmra.mrb[0].mxu0 %v2151
    %v2222 = vpop.f32.mrb[0].mxu0
    %v2223 = vadd.f32 %v2149, %v2222
    %v2224 = vpop.f32.mrb[0].mxu0
    %2225 = vmatprep.mubr.f32.mxu0 0.0
    %2226 = vmatmul.mubr.f32.gmra.mrb[0].mxu0 %v2154
    %v2227 = vpop.f32.mrb[0].mxu0
    %v2228 = vadd.f32 %v2149, %v2227
    %v2229 = vpop.f32.mrb[0].mxu0
    %2230 = vdwg.mxu0
    %v2231 = vmul.f32 %v2223, 0.5
    %v2232 = vmul.f32 %v2228, 0.5
    %v2233 = vmul.f32 %v2223, %v2223
    %v2234 = vmul.f32 %v2228, %v2228
    %v2235 = vmul.f32 %v2223, %v2233
    %v2236 = vmul.f32 %v2228, %v2234
    %v2237 = vmul.f32 %v2235, 0.044715
    %v2238 = vmul.f32 %v2236, 0.044715
    %v2239 = vadd.f32 %v2223, %v2237
    %v2240 = vadd.f32 %v2228, %v2238
    %v2241 = vmul.f32 %v2239, 0.7978846
    %v2242 = vmul.f32 %v2240, 0.7978846
    %v2243 = vtanh.pop %v2241
    %v2244 = vtanh.pop %v2242
    %v2245 = vadd.f32 %v2243, 1.0
    %v2246 = vadd.f32 %v2244, 1.0
    %v2247 = vmul.f32 %v2231, %v2245
    %v2248 = vmul.f32 %v2232, %v2246
    %v2249 = vlaneseq
    %v2250 = vshrl.u32 %v2249, 7
    %v2251 = vsub.s32 5, %v2250
    %v2252 = vrot.slane %v531, %v2251
    %2253 = vmatprep.subr.mxu0 0.0
    %2254 = vmatpush1.msra.mxu0 %v509
    %2255 = vmatprep.subr.mxu0 0.0
    %2256 = vmatpush1.msra.mxu0 %v510
    %2257 = vmatprep.subr.mxu0 0.0
    %2258 = vmatpush1.msra.mxu0 %v511
    %2259 = vmatprep.subr.mxu0 0.0
    %2260 = vmatpush1.msra.mxu0 %v512
    %2261 = vmatprep.subr.mxu0 0.0
    %2262 = vmatpush1.msra.mxu0 %v513
    %2263 = vmatprep.subr.mxu0 0.0
    %2264 = vmatpush1.msra.mxu0 %v514
    %2265 = vmatprep.subr.mxu0 0.0
    %2266 = vmatpush1.msra.mxu0 %v515
    %2267 = vmatprep.subr.mxu0 0.0
    %2268 = vmatpush1.msra.mxu0 %v516
    %2269 = vmatprep.subr.mxu0 0.0
    %2270 = vmatpush1.msra.mxu0 %v517
    %2271 = vmatprep.subr.mxu0 0.0
    %2272 = vmatpush1.msra.mxu0 %v518
    %2273 = vmatprep.subr.mxu0 0.0
    %2274 = vmatpush1.msra.mxu0 %v519
    %2275 = vmatprep.subr.mxu0 0.0
    %2276 = vmatpush1.msra.mxu0 %v520
    %2277 = vmatprep.subr.mxu0 0.0
    %2278 = vmatpush1.msra.mxu0 %v521
    %2279 = vmatprep.subr.mxu0 0.0
    %2280 = vmatpush1.msra.mxu0 %v522
    %2281 = vmatprep.subr.mxu0 0.0
    %2282 = vmatpush1.msra.mxu0 %v523
    %2283 = vmatprep.subr.mxu0 0.0
    %2284 = vmatpush1.msra.mxu0 %v524
    %2285 = vmatprep.subr.mxu0 0.0
    %2286 = vmatpush1.msra.mxu0 0.0
    %2287 = vmatprep.subr.mxu0 0.0
    %2288 = vmatpush1.msra.mxu0 0.0
    %2289 = vmatprep.subr.mxu0 0.0
    %2290 = vmatpush1.msra.mxu0 0.0
    %2291 = vmatprep.subr.mxu0 0.0
    %2292 = vmatpush1.msra.mxu0 0.0
    %2293 = vmatprep.subr.mxu0 0.0
    %2294 = vmatpush1.msra.mxu0 0.0
    %2295 = vmatprep.subr.mxu0 0.0
    %2296 = vmatpush1.msra.mxu0 0.0
    %2297 = vmatprep.subr.mxu0 0.0
    %2298 = vmatpush1.msra.mxu0 0.0
    %2299 = vmatprep.subr.mxu0 0.0
    %2300 = vmatpush1.msra.mxu0 0.0
    %2301 = vmatprep.subr.mxu0 0.0
    %2302 = vmatpush1.msra.mxu0 0.0
    %2303 = vmatprep.subr.mxu0 0.0
    %2304 = vmatpush1.msra.mxu0 0.0
    %2305 = vmatprep.subr.mxu0 0.0
    %2306 = vmatpush1.msra.mxu0 0.0
    %2307 = vmatprep.subr.mxu0 0.0
    %2308 = vmatpush1.msra.mxu0 0.0
    %2309 = vmatprep.subr.mxu0 0.0
    %2310 = vmatpush1.msra.mxu0 0.0
    %2311 = vmatprep.subr.mxu0 0.0
    %2312 = vmatpush1.msra.mxu0 0.0
    %2313 = vmatprep.subr.mxu0 0.0
    %2314 = vmatpush1.msra.mxu0 0.0
    %2315 = vmatprep.subr.mxu0 0.0
    %2316 = vmatpush1.msra.mxu0 0.0
    %2317 = vmatprep.mubr.f32.mxu0 0.0
    %2318 = vmatmul.mubr.f32.gmra.mrb[0].mxu0 %v2247
    %v2319 = vpop.f32.mrb[0].mxu0
    %v2320 = vadd.f32 %v2252, %v2319
    %v2321 = vpop.f32.mrb[0].mxu0
    %2322 = vmatprep.mubr.f32.mxu0 0.0
    %2323 = vmatmul.mubr.f32.gmra.mrb[0].mxu0 %v2248
    %v2324 = vpop.f32.mrb[0].mxu0
    %v2325 = vadd.f32 %v2252, %v2324
    %v2326 = vpop.f32.mrb[0].mxu0
    %2327 = vdwg.mxu0
    %v2328 = vadd.f32 %v2106, %v2320
    %v2329 = vadd.f32 %v2107, %v2325
    %v2331 = vsel %vm171, %v2328, 0
    %v2334 = vsel %vm171, %v2329, 0
    %2336 = vmatprep.subr.mxu0 0.0
    %2337 = vmatpush1.msra.mxu0 %v155
    %2338 = vmatprep.subr.mxu0 0.0
    %2339 = vmatpush1.msra.mxu0 %v156
    %2340 = vmatprep.subr.mxu0 0.0
    %2341 = vmatpush1.msra.mxu0 %v157
    %2342 = vmatprep.subr.mxu0 0.0
    %2343 = vmatpush1.msra.mxu0 %v158
    %2344 = vmatprep.subr.mxu0 0.0
    %2345 = vmatpush1.msra.mxu0 0.0
    %2346 = vmatprep.subr.mxu0 0.0
    %2347 = vmatpush1.msra.mxu0 0.0
    %2348 = vmatprep.subr.mxu0 0.0
    %2349 = vmatpush1.msra.mxu0 0.0
    %2350 = vmatprep.subr.mxu0 0.0
    %2351 = vmatpush1.msra.mxu0 0.0
    %2352 = vmatprep.subr.mxu0 0.0
    %2353 = vmatpush1.msra.mxu0 0.0
    %2354 = vmatprep.subr.mxu0 0.0
    %2355 = vmatpush1.msra.mxu0 0.0
    %2356 = vmatprep.subr.mxu0 0.0
    %2357 = vmatpush1.msra.mxu0 0.0
    %2358 = vmatprep.subr.mxu0 0.0
    %2359 = vmatpush1.msra.mxu0 0.0
    %2360 = vmatprep.subr.mxu0 0.0
    %2361 = vmatpush1.msra.mxu0 0.0
    %2362 = vmatprep.subr.mxu0 0.0
    %2363 = vmatpush1.msra.mxu0 0.0
    %2364 = vmatprep.subr.mxu0 0.0
    %2365 = vmatpush1.msra.mxu0 0.0
    %2366 = vmatprep.subr.mxu0 0.0
    %2367 = vmatpush1.msra.mxu0 0.0
    %2368 = vmatprep.subr.mxu0 0.0
    %2369 = vmatpush1.msra.mxu0 0.0
    %2370 = vmatprep.subr.mxu0 0.0
    %2371 = vmatpush1.msra.mxu0 0.0
    %2372 = vmatprep.subr.mxu0 0.0
    %2373 = vmatpush1.msra.mxu0 0.0
    %2374 = vmatprep.subr.mxu0 0.0
    %2375 = vmatpush1.msra.mxu0 0.0
    %2376 = vmatprep.subr.mxu0 0.0
    %2377 = vmatpush1.msra.mxu0 0.0
    %2378 = vmatprep.subr.mxu0 0.0
    %2379 = vmatpush1.msra.mxu0 0.0
    %2380 = vmatprep.subr.mxu0 0.0
    %2381 = vmatpush1.msra.mxu0 0.0
    %2382 = vmatprep.subr.mxu0 0.0
    %2383 = vmatpush1.msra.mxu0 0.0
    %2384 = vmatprep.subr.mxu0 0.0
    %2385 = vmatpush1.msra.mxu0 0.0
    %2386 = vmatprep.subr.mxu0 0.0
    %2387 = vmatpush1.msra.mxu0 0.0
    %2388 = vmatprep.subr.mxu0 0.0
    %2389 = vmatpush1.msra.mxu0 0.0
    %2390 = vmatprep.subr.mxu0 0.0
    %2391 = vmatpush1.msra.mxu0 0.0
    %2392 = vmatprep.subr.mxu0 0.0
    %2393 = vmatpush1.msra.mxu0 0.0
    %2394 = vmatprep.subr.mxu0 0.0
    %2395 = vmatpush1.msra.mxu0 0.0
    %2396 = vmatprep.subr.mxu0 0.0
    %2397 = vmatpush1.msra.mxu0 0.0
    %2398 = vmatprep.subr.mxu0 0.0
    %2399 = vmatpush1.msra.mxu0 0.0
    %2400 = vmatprep.mubr.f32.mxu0 0.0
    %2401 = vmatmul.mubr.f32.gmra.mrb[0].mxu0 %v2331
    %v2402 = vpop.f32.mrb[0].mxu0
    %v2403 = vadd.f32 0.0, %v2402
    %v2404 = vpop.f32.mrb[0].mxu0
    %2405 = vmatprep.mubr.f32.mxu0 0.0
    %2406 = vmatmul.mubr.f32.gmra.mrb[0].mxu0 %v2334
    %v2407 = vpop.f32.mrb[0].mxu0
    %v2408 = vadd.f32 0.0, %v2407
    %v2409 = vpop.f32.mrb[0].mxu0
    %2410 = vdwg.mxu0
    %v2412 = vsel %vm171, %v142, 0
    %v2415 = vsel %vm171, %v147, 0
    %2417 = vmatprep.subr.mxu0 0.0
    %2418 = vmatpush1.msra.mxu0 %v151
    %2419 = vmatprep.subr.mxu0 0.0
    %2420 = vmatpush1.msra.mxu0 %v152
    %2421 = vmatprep.subr.mxu0 0.0
    %2422 = vmatpush1.msra.mxu0 %v153
    %2423 = vmatprep.subr.mxu0 0.0
    %2424 = vmatpush1.msra.mxu0 %v154
    %2425 = vmatprep.subr.mxu0 0.0
    %2426 = vmatpush1.msra.mxu0 0.0
    %2427 = vmatprep.subr.mxu0 0.0
    %2428 = vmatpush1.msra.mxu0 0.0
    %2429 = vmatprep.subr.mxu0 0.0
    %2430 = vmatpush1.msra.mxu0 0.0
    %2431 = vmatprep.subr.mxu0 0.0
    %2432 = vmatpush1.msra.mxu0 0.0
    %2433 = vmatprep.subr.mxu0 0.0
    %2434 = vmatpush1.msra.mxu0 0.0
    %2435 = vmatprep.subr.mxu0 0.0
    %2436 = vmatpush1.msra.mxu0 0.0
    %2437 = vmatprep.subr.mxu0 0.0
    %2438 = vmatpush1.msra.mxu0 0.0
    %2439 = vmatprep.subr.mxu0 0.0
    %2440 = vmatpush1.msra.mxu0 0.0
    %2441 = vmatprep.subr.mxu0 0.0
    %2442 = vmatpush1.msra.mxu0 0.0
    %2443 = vmatprep.subr.mxu0 0.0
    %2444 = vmatpush1.msra.mxu0 0.0
    %2445 = vmatprep.subr.mxu0 0.0
    %2446 = vmatpush1.msra.mxu0 0.0
    %2447 = vmatprep.subr.mxu0 0.0
    %2448 = vmatpush1.msra.mxu0 0.0
    %2449 = vmatprep.subr.mxu0 0.0
    %2450 = vmatpush1.msra.mxu0 0.0
    %2451 = vmatprep.subr.mxu0 0.0
    %2452 = vmatpush1.msra.mxu0 0.0
    %2453 = vmatprep.subr.mxu0 0.0
    %2454 = vmatpush1.msra.mxu0 0.0
    %2455 = vmatprep.subr.mxu0 0.0
    %2456 = vmatpush1.msra.mxu0 0.0
    %2457 = vmatprep.subr.mxu0 0.0
    %2458 = vmatpush1.msra.mxu0 0.0
    %2459 = vmatprep.subr.mxu0 0.0
    %2460 = vmatpush1.msra.mxu0 0.0
    %2461 = vmatprep.subr.mxu0 0.0
    %2462 = vmatpush1.msra.mxu0 0.0
    %2463 = vmatprep.subr.mxu0 0.0
    %2464 = vmatpush1.msra.mxu0 0.0
    %2465 = vmatprep.subr.mxu0 0.0
    %2466 = vmatpush1.msra.mxu0 0.0
    %2467 = vmatprep.subr.mxu0 0.0
    %2468 = vmatpush1.msra.mxu0 0.0
    %2469 = vmatprep.subr.mxu0 0.0
    %2470 = vmatpush1.msra.mxu0 0.0
    %2471 = vmatprep.subr.mxu0 0.0
    %2472 = vmatpush1.msra.mxu0 0.0
    %2473 = vmatprep.subr.mxu0 0.0
    %2474 = vmatpush1.msra.mxu0 0.0
    %2475 = vmatprep.subr.mxu0 0.0
    %2476 = vmatpush1.msra.mxu0 0.0
    %2477 = vmatprep.subr.mxu0 0.0
    %2478 = vmatpush1.msra.mxu0 0.0
    %2479 = vmatprep.subr.mxu0 0.0
    %2480 = vmatpush1.msra.mxu0 0.0
    %2481 = vmatprep.mubr.f32.mxu0 0.0
    %2482 = vmatmul.mubr.f32.gmra.mrb[0].mxu0 %v2412
    %v2483 = vpop.f32.mrb[0].mxu0
    %v2484 = vadd.f32 %v2403, %v2483
    %v2485 = vpop.f32.mrb[0].mxu0
    %2486 = vmatprep.mubr.f32.mxu0 0.0
    %2487 = vmatmul.mubr.f32.gmra.mrb[0].mxu0 %v2415
    %v2488 = vpop.f32.mrb[0].mxu0
    %v2489 = vadd.f32 %v2408, %v2488
    %v2490 = vpop.f32.mrb[0].mxu0
    %2491 = vdwg.mxu0
    %v2492 = vsel %vm171, %v2484, 0.0
    %v2493 = vsel %vm171, %v2489, 0.0
    %v2494 = vadd.f32 %v2492, %v2493
    %v2495 = vrot.slane %v2494, 4
    %v2496 = vadd.f32 %v2494, %v2495
    %v2497 = vrot.slane %v2496, 2
    %v2498 = vadd.f32 %v2496, %v2497
    %v2499 = vrot.slane %v2498, 1
    %v2500 = vadd.f32 %v2498, %v2499
    %v2501 = vmul.f32 %v2500, %v181
    %v2503 = vsel %vm171, %v2501, 0
    %2505 = vmatprep.subr.mxu0 0.0
    %2506 = vmatpush1.msra.mxu0 %v159
    %2507 = vmatprep.subr.mxu0 0.0
    %2508 = vmatpush1.msra.mxu0 %v160
    %2509 = vmatprep.subr.mxu0 0.0
    %2510 = vmatpush1.msra.mxu0 %v161
    %2511 = vmatprep.subr.mxu0 0.0
    %2512 = vmatpush1.msra.mxu0 %v162
    %2513 = vmatprep.subr.mxu0 0.0
    %2514 = vmatpush1.msra.mxu0 0.0
    %2515 = vmatprep.subr.mxu0 0.0
    %2516 = vmatpush1.msra.mxu0 0.0
    %2517 = vmatprep.subr.mxu0 0.0
    %2518 = vmatpush1.msra.mxu0 0.0
    %2519 = vmatprep.subr.mxu0 0.0
    %2520 = vmatpush1.msra.mxu0 0.0
    %2521 = vmatprep.subr.mxu0 0.0
    %2522 = vmatpush1.msra.mxu0 0.0
    %2523 = vmatprep.subr.mxu0 0.0
    %2524 = vmatpush1.msra.mxu0 0.0
    %2525 = vmatprep.subr.mxu0 0.0
    %2526 = vmatpush1.msra.mxu0 0.0
    %2527 = vmatprep.subr.mxu0 0.0
    %2528 = vmatpush1.msra.mxu0 0.0
    %2529 = vmatprep.subr.mxu0 0.0
    %2530 = vmatpush1.msra.mxu0 0.0
    %2531 = vmatprep.subr.mxu0 0.0
    %2532 = vmatpush1.msra.mxu0 0.0
    %2533 = vmatprep.subr.mxu0 0.0
    %2534 = vmatpush1.msra.mxu0 0.0
    %2535 = vmatprep.subr.mxu0 0.0
    %2536 = vmatpush1.msra.mxu0 0.0
    %2537 = vmatprep.subr.mxu0 0.0
    %2538 = vmatpush1.msra.mxu0 0.0
    %2539 = vmatprep.subr.mxu0 0.0
    %2540 = vmatpush1.msra.mxu0 0.0
    %2541 = vmatprep.subr.mxu0 0.0
    %2542 = vmatpush1.msra.mxu0 0.0
    %2543 = vmatprep.subr.mxu0 0.0
    %2544 = vmatpush1.msra.mxu0 0.0
    %2545 = vmatprep.subr.mxu0 0.0
    %2546 = vmatpush1.msra.mxu0 0.0
    %2547 = vmatprep.subr.mxu0 0.0
    %2548 = vmatpush1.msra.mxu0 0.0
    %2549 = vmatprep.subr.mxu0 0.0
    %2550 = vmatpush1.msra.mxu0 0.0
    %2551 = vmatprep.subr.mxu0 0.0
    %2552 = vmatpush1.msra.mxu0 0.0
    %2553 = vmatprep.subr.mxu0 0.0
    %2554 = vmatpush1.msra.mxu0 0.0
    %2555 = vmatprep.subr.mxu0 0.0
    %2556 = vmatpush1.msra.mxu0 0.0
    %2557 = vmatprep.subr.mxu0 0.0
    %2558 = vmatpush1.msra.mxu0 0.0
    %2559 = vmatprep.subr.mxu0 0.0
    %2560 = vmatpush1.msra.mxu0 0.0
    %2561 = vmatprep.subr.mxu0 0.0
    %2562 = vmatpush1.msra.mxu0 0.0
    %2563 = vmatprep.subr.mxu0 0.0
    %2564 = vmatpush1.msra.mxu0 0.0
    %2565 = vmatprep.subr.mxu0 0.0
    %2566 = vmatpush1.msra.mxu0 0.0
    %2567 = vmatprep.subr.mxu0 0.0
    %2568 = vmatpush1.msra.mxu0 0.0
    %2569 = vmatprep.mubr.f32.mxu0 0.0
    %2570 = vmatmul.mubr.f32.gmra.mrb[0].mxu0 %v2503
    %v2571 = vpop.f32.mrb[0].mxu0
    %v2572 = vadd.f32 %v167, %v2571
    %v2573 = vpop.f32.mrb[0].mxu0
    %2574 = vdwg.mxu0
    %v2575 = vmul.f32 %v2572, 0.5
    %v2576 = vmul.f32 %v2572, %v2572
    %v2577 = vmul.f32 %v2572, %v2576
    %v2578 = vmul.f32 %v2577, 0.044715
    %v2579 = vadd.f32 %v2572, %v2578
    %v2580 = vmul.f32 %v2579, 0.7978846
    %v2581 = vtanh.pop %v2580
    %v2582 = vadd.f32 %v2581, 1.0
    %v2583 = vmul.f32 %v2575, %v2582
    %v2585 = vsel %vm171, %v2583, 0
    %2587 = vmatprep.subr.mxu0 0.0
    %2588 = vmatpush1.msra.mxu0 %v163
    %2589 = vmatprep.subr.mxu0 0.0
    %2590 = vmatpush1.msra.mxu0 %v164
    %2591 = vmatprep.subr.mxu0 0.0
    %2592 = vmatpush1.msra.mxu0 %v165
    %2593 = vmatprep.subr.mxu0 0.0
    %2594 = vmatpush1.msra.mxu0 %v166
    %2595 = vmatprep.subr.mxu0 0.0
    %2596 = vmatpush1.msra.mxu0 0.0
    %2597 = vmatprep.subr.mxu0 0.0
    %2598 = vmatpush1.msra.mxu0 0.0
    %2599 = vmatprep.subr.mxu0 0.0
    %2600 = vmatpush1.msra.mxu0 0.0
    %2601 = vmatprep.subr.mxu0 0.0
    %2602 = vmatpush1.msra.mxu0 0.0
    %2603 = vmatprep.subr.mxu0 0.0
    %2604 = vmatpush1.msra.mxu0 0.0
    %2605 = vmatprep.subr.mxu0 0.0
    %2606 = vmatpush1.msra.mxu0 0.0
    %2607 = vmatprep.subr.mxu0 0.0
    %2608 = vmatpush1.msra.mxu0 0.0
    %2609 = vmatprep.subr.mxu0 0.0
    %2610 = vmatpush1.msra.mxu0 0.0
    %2611 = vmatprep.subr.mxu0 0.0
    %2612 = vmatpush1.msra.mxu0 0.0
    %2613 = vmatprep.subr.mxu0 0.0
    %2614 = vmatpush1.msra.mxu0 0.0
    %2615 = vmatprep.subr.mxu0 0.0
    %2616 = vmatpush1.msra.mxu0 0.0
    %2617 = vmatprep.subr.mxu0 0.0
    %2618 = vmatpush1.msra.mxu0 0.0
    %2619 = vmatprep.subr.mxu0 0.0
    %2620 = vmatpush1.msra.mxu0 0.0
    %2621 = vmatprep.subr.mxu0 0.0
    %2622 = vmatpush1.msra.mxu0 0.0
    %2623 = vmatprep.subr.mxu0 0.0
    %2624 = vmatpush1.msra.mxu0 0.0
    %2625 = vmatprep.subr.mxu0 0.0
    %2626 = vmatpush1.msra.mxu0 0.0
    %2627 = vmatprep.subr.mxu0 0.0
    %2628 = vmatpush1.msra.mxu0 0.0
    %2629 = vmatprep.subr.mxu0 0.0
    %2630 = vmatpush1.msra.mxu0 0.0
    %2631 = vmatprep.subr.mxu0 0.0
    %2632 = vmatpush1.msra.mxu0 0.0
    %2633 = vmatprep.subr.mxu0 0.0
    %2634 = vmatpush1.msra.mxu0 0.0
    %2635 = vmatprep.subr.mxu0 0.0
    %2636 = vmatpush1.msra.mxu0 0.0
    %2637 = vmatprep.subr.mxu0 0.0
    %2638 = vmatpush1.msra.mxu0 0.0
    %2639 = vmatprep.subr.mxu0 0.0
    %2640 = vmatpush1.msra.mxu0 0.0
    %2641 = vmatprep.subr.mxu0 0.0
    %2642 = vmatpush1.msra.mxu0 0.0
    %2643 = vmatprep.subr.mxu0 0.0
    %2644 = vmatpush1.msra.mxu0 0.0
    %2645 = vmatprep.subr.mxu0 0.0
    %2646 = vmatpush1.msra.mxu0 0.0
    %2647 = vmatprep.subr.mxu0 0.0
    %2648 = vmatpush1.msra.mxu0 0.0
    %2649 = vmatprep.subr.mxu0 0.0
    %2650 = vmatpush1.msra.mxu0 0.0
    %2651 = vmatprep.mubr.f32.mxu0 0.0
    %2652 = vmatmul.mubr.f32.gmra.mrb[0].mxu0 %v2585
    %v2653 = vpop.f32.mrb[0].mxu0
    %v2654 = vadd.f32 %v168, %v2653
    %v2655 = vpop.f32.mrb[0].mxu0
    %2656 = vdwg.mxu0
    %v2657 = vsel %vm338, %v2654, -3.4028235e+38
    %v2658 = vsel %vm340, %v2657, -inf
    %2659 = vmax.xlane.f32.xlu0 %v2658
    %v2660 = vpop.xlane.xlu0 %2659
    %vm2661 = vcmp.ge.f32.partialorder %v2657, %v2660
    %v2662 = vsel %vm2661, %v37, 32
    %v2663 = vsel %vm340, %v2662, 2147483647
    %v2664 = vand.u32 %v2663, 65535
    %v2665 = vshra.s32 %v2663, 16
    %v2666 = vcvt.s32.f32 %v2664
    %v2667 = vcvt.s32.f32 %v2665
    %2668 = vmin.xlane.f32.xlu0 %v2667
    %v2669 = vpop.xlane.xlu0 %2668
    %vm2670 = vcmp.eq.f32.partialorder %v2667, %v2669
    %v2671 = vsel %vm2670, %v2666, inf
    %2672 = vmin.xlane.f32.xlu0 %v2671
    %v2673 = vpop.xlane.xlu0 %2672
    %v2674 = vcvt.f32.s32 %v2673
    %v2675 = vcvt.f32.s32 %v2669
    %v2676 = vshll.u32 %v2675, 16
    %v2677 = vadd.s32 %v2676, %v2674
    %vm2678 = vcmp.eq.s32.totalorder %v37, %v2677
    %v2679 = vsel %vm2678, 1, 0
    %v2680 = vadd.s32 %v362, %v2679
    %vm2681 = vcmp.eq.s32.totalorder %v2677, 1
    %vm2682 = vcmp.eq.s32.totalorder %v2677, 2
    %v2683 = vld [vmem:[%s2] sm:$0xff]
    %v2684 = vld [vmem:[%s2 + $0x8] sm:$0xff]
    %v2685 = vld [vmem:[%s2 + $0x10] sm:$0xff]
    %v2686 = vld [vmem:[%s2 + $0x18] sm:$0xff]
    %v2687 = vld [vmem:[%s369] sm:$0xff]
    %v2688 = vld [vmem:[%s369 + $0x8] sm:$0xff]
    %v2689 = vld [vmem:[%s369 + $0x10] sm:$0xff]
    %v2690 = vld [vmem:[%s369 + $0x18] sm:$0xff]
    %v2691 = vsel %vm2681, 1, 0
    %v2692 = vlaneseq
    %v2693 = vshrl.u32 %v2692, 7
    %v2694 = vsub.s32 0, %v2693
    %v2695 = vrot.slane %v2691, %v2694
    %vm2696 = vcmp.eq.s32.totalorder %v2695, 1
    %v2697 = vsel %vm2696, %v2687, %v2683
    %v2698 = vsel %vm2696, %v2688, %v2684
    %v2699 = vsel %vm2696, %v2689, %v2685
    %v2700 = vsel %vm2696, %v2690, %v2686
    %v2701 = vld [vmem:[%s384] sm:$0xff]
    %v2702 = vld [vmem:[%s384 + $0x8] sm:$0xff]
    %v2703 = vld [vmem:[%s384 + $0x10] sm:$0xff]
    %v2704 = vld [vmem:[%s384 + $0x18] sm:$0xff]
    %v2705 = vsel %vm2682, 1, 0
    %v2706 = vlaneseq
    %v2707 = vshrl.u32 %v2706, 7
    %v2708 = vsub.s32 0, %v2707
    %v2709 = vrot.slane %v2705, %v2708
    %vm2710 = vcmp.eq.s32.totalorder %v2709, 1
    %v2711 = vsel %vm2710, %v2701, %v2697
    %v2712 = vsel %vm2710, %v2702, %v2698
    %v2713 = vsel %vm2710, %v2703, %v2699
    %v2714 = vsel %vm2710, %v2704, %v2700
    %v2715 = vld [vmem:[%s3] sm:$0xff]
    %v2716 = vld [vmem:[%s3 + $0x8] sm:$0xff]
    %v2717 = vld [vmem:[%s3 + $0x10] sm:$0xff]
    %v2718 = vld [vmem:[%s3 + $0x18] sm:$0xff]
    %v2719 = vld [vmem:[%s403] sm:$0xff]
    %v2720 = vld [vmem:[%s403 + $0x8] sm:$0xff]
    %v2721 = vld [vmem:[%s403 + $0x10] sm:$0xff]
    %v2722 = vld [vmem:[%s403 + $0x18] sm:$0xff]
    %v2723 = vsel %vm2696, %v2719, %v2715
    %v2724 = vsel %vm2696, %v2720, %v2716
    %v2725 = vsel %vm2696, %v2721, %v2717
    %v2726 = vsel %vm2696, %v2722, %v2718
    %v2727 = vld [vmem:[%s412] sm:$0xff]
    %v2728 = vld [vmem:[%s412 + $0x8] sm:$0xff]
    %v2729 = vld [vmem:[%s412 + $0x10] sm:$0xff]
    %v2730 = vld [vmem:[%s412 + $0x18] sm:$0xff]
    %v2731 = vsel %vm2710, %v2727, %v2723
    %v2732 = vsel %vm2710, %v2728, %v2724
    %v2733 = vsel %vm2710, %v2729, %v2725
    %v2734 = vsel %vm2710, %v2730, %v2726
    %v2735 = vld [vmem:[%s4] sm:$0xff]
    %v2736 = vld [vmem:[%s4 + $0x8] sm:$0xff]
    %v2737 = vld [vmem:[%s4 + $0x10] sm:$0xff]
    %v2738 = vld [vmem:[%s4 + $0x18] sm:$0xff]
    %v2739 = vld [vmem:[%s425] sm:$0xff]
    %v2740 = vld [vmem:[%s425 + $0x8] sm:$0xff]
    %v2741 = vld [vmem:[%s425 + $0x10] sm:$0xff]
    %v2742 = vld [vmem:[%s425 + $0x18] sm:$0xff]
    %v2743 = vsel %vm2696, %v2739, %v2735
    %v2744 = vsel %vm2696, %v2740, %v2736
    %v2745 = vsel %vm2696, %v2741, %v2737
    %v2746 = vsel %vm2696, %v2742, %v2738
    %v2747 = vld [vmem:[%s434] sm:$0xff]
    %v2748 = vld [vmem:[%s434 + $0x8] sm:$0xff]
    %v2749 = vld [vmem:[%s434 + $0x10] sm:$0xff]
    %v2750 = vld [vmem:[%s434 + $0x18] sm:$0xff]
    %v2751 = vsel %vm2710, %v2747, %v2743
    %v2752 = vsel %vm2710, %v2748, %v2744
    %v2753 = vsel %vm2710, %v2749, %v2745
    %v2754 = vsel %vm2710, %v2750, %v2746
    %v2755 = vld [vmem:[%s5] sm:$0xff]
    %v2756 = vld [vmem:[%s5 + $0x8] sm:$0xff]
    %v2757 = vld [vmem:[%s5 + $0x10] sm:$0xff]
    %v2758 = vld [vmem:[%s5 + $0x18] sm:$0xff]
    %v2759 = vld [vmem:[%s5 + $0x20] sm:$0xff]
    %v2760 = vld [vmem:[%s5 + $0x28] sm:$0xff]
    %v2761 = vld [vmem:[%s5 + $0x30] sm:$0xff]
    %v2762 = vld [vmem:[%s5 + $0x38] sm:$0xff]
    %v2763 = vld [vmem:[%s5 + $0x40] sm:$0xff]
    %v2764 = vld [vmem:[%s5 + $0x48] sm:$0xff]
    %v2765 = vld [vmem:[%s5 + $0x50] sm:$0xff]
    %v2766 = vld [vmem:[%s5 + $0x58] sm:$0xff]
    %v2767 = vld [vmem:[%s5 + $0x60] sm:$0xff]
    %v2768 = vld [vmem:[%s5 + $0x68] sm:$0xff]
    %v2769 = vld [vmem:[%s5 + $0x70] sm:$0xff]
    %v2770 = vld [vmem:[%s5 + $0x78] sm:$0xff]
    %v2771 = vld [vmem:[%s459] sm:$0xff]
    %v2772 = vld [vmem:[%s459 + $0x8] sm:$0xff]
    %v2773 = vld [vmem:[%s459 + $0x10] sm:$0xff]
    %v2774 = vld [vmem:[%s459 + $0x18] sm:$0xff]
    %v2775 = vld [vmem:[%s459 + $0x20] sm:$0xff]
    %v2776 = vld [vmem:[%s459 + $0x28] sm:$0xff]
    %v2777 = vld [vmem:[%s459 + $0x30] sm:$0xff]
    %v2778 = vld [vmem:[%s459 + $0x38] sm:$0xff]
    %v2779 = vld [vmem:[%s459 + $0x40] sm:$0xff]
    %v2780 = vld [vmem:[%s459 + $0x48] sm:$0xff]
    %v2781 = vld [vmem:[%s459 + $0x50] sm:$0xff]
    %v2782 = vld [vmem:[%s459 + $0x58] sm:$0xff]
    %v2783 = vld [vmem:[%s459 + $0x60] sm:$0xff]
    %v2784 = vld [vmem:[%s459 + $0x68] sm:$0xff]
    %v2785 = vld [vmem:[%s459 + $0x70] sm:$0xff]
    %v2786 = vld [vmem:[%s459 + $0x78] sm:$0xff]
    %v2787 = vsel %vm2696, %v2771, %v2755
    %v2788 = vsel %vm2696, %v2772, %v2756
    %v2789 = vsel %vm2696, %v2773, %v2757
    %v2790 = vsel %vm2696, %v2774, %v2758
    %v2791 = vsel %vm2696, %v2775, %v2759
    %v2792 = vsel %vm2696, %v2776, %v2760
    %v2793 = vsel %vm2696, %v2777, %v2761
    %v2794 = vsel %vm2696, %v2778, %v2762
    %v2795 = vsel %vm2696, %v2779, %v2763
    %v2796 = vsel %vm2696, %v2780, %v2764
    %v2797 = vsel %vm2696, %v2781, %v2765
    %v2798 = vsel %vm2696, %v2782, %v2766
    %v2799 = vsel %vm2696, %v2783, %v2767
    %v2800 = vsel %vm2696, %v2784, %v2768
    %v2801 = vsel %vm2696, %v2785, %v2769
    %v2802 = vsel %vm2696, %v2786, %v2770
    %v2803 = vld [vmem:[%s492] sm:$0xff]
    %v2804 = vld [vmem:[%s492 + $0x8] sm:$0xff]
    %v2805 = vld [vmem:[%s492 + $0x10] sm:$0xff]
    %v2806 = vld [vmem:[%s492 + $0x18] sm:$0xff]
    %v2807 = vld [vmem:[%s492 + $0x20] sm:$0xff]
    %v2808 = vld [vmem:[%s492 + $0x28] sm:$0xff]
    %v2809 = vld [vmem:[%s492 + $0x30] sm:$0xff]
    %v2810 = vld [vmem:[%s492 + $0x38] sm:$0xff]
    %v2811 = vld [vmem:[%s492 + $0x40] sm:$0xff]
    %v2812 = vld [vmem:[%s492 + $0x48] sm:$0xff]
    %v2813 = vld [vmem:[%s492 + $0x50] sm:$0xff]
    %v2814 = vld [vmem:[%s492 + $0x58] sm:$0xff]
    %v2815 = vld [vmem:[%s492 + $0x60] sm:$0xff]
    %v2816 = vld [vmem:[%s492 + $0x68] sm:$0xff]
    %v2817 = vld [vmem:[%s492 + $0x70] sm:$0xff]
    %v2818 = vld [vmem:[%s492 + $0x78] sm:$0xff]
    %v2819 = vsel %vm2710, %v2803, %v2787
    %v2820 = vsel %vm2710, %v2804, %v2788
    %v2821 = vsel %vm2710, %v2805, %v2789
    %v2822 = vsel %vm2710, %v2806, %v2790
    %v2823 = vsel %vm2710, %v2807, %v2791
    %v2824 = vsel %vm2710, %v2808, %v2792
    %v2825 = vsel %vm2710, %v2809, %v2793
    %v2826 = vsel %vm2710, %v2810, %v2794
    %v2827 = vsel %vm2710, %v2811, %v2795
    %v2828 = vsel %vm2710, %v2812, %v2796
    %v2829 = vsel %vm2710, %v2813, %v2797
    %v2830 = vsel %vm2710, %v2814, %v2798
    %v2831 = vsel %vm2710, %v2815, %v2799
    %v2832 = vsel %vm2710, %v2816, %v2800
    %v2833 = vsel %vm2710, %v2817, %v2801
    %v2834 = vsel %vm2710, %v2818, %v2802
    %v2835 = vld [vmem:[%s6] sm:$0xff]
    %v2836 = vld [vmem:[%s526] sm:$0xff]
    %v2837 = vsel %vm2696, %v2836, %v2835
    %v2838 = vld [vmem:[%s529] sm:$0xff]
    %v2839 = vsel %vm2710, %v2838, %v2837
    %2840 = vadd.xlane.f32.xlu0 %v2492
    %v2841 = vpop.xlane.xlu0 %2840
    %2842 = vadd.xlane.f32.xlu0 %v2493
    %v2843 = vpop.xlane.xlu0 %2842
    %v2844 = vmul.f32 %v2841, %v536
    %v2845 = vmul.f32 %v2843, %v536
    %v2846 = vsub.f32 %v2484, %v2844
    %v2847 = vsub.f32 %v2489, %v2845
    %v2848 = vmul.f32 %v2846, %v2846
    %v2849 = vmul.f32 %v2847, %v2847
    %v2850 = vsel %vm171, %v2848, 0.0
    %2851 = vadd.xlane.f32.xlu0 %v2850
    %v2852 = vpop.xlane.xlu0 %2851
    %v2853 = vsel %vm171, %v2849, 0.0
    %2854 = vadd.xlane.f32.xlu0 %v2853
    %v2855 = vpop.xlane.xlu0 %2854
    %v2856 = vmul.f32 %v2852, %v536
    %v2857 = vmul.f32 %v2855, %v536
    %v2858 = vadd.f32 %v2856, 1e-05
    %v2859 = vadd.f32 %v2857, 1e-05
    %v2860 = vrsqrt.pop %v2858
    %v2861 = vrsqrt.pop %v2859
    %v2862 = vmul.f32 %v2846, %v2860
    %v2863 = vmul.f32 %v2847, %v2861
    %v2864 = vlaneseq
    %v2865 = vshrl.u32 %v2864, 7
    %v2866 = vsub.s32 0, %v2865
    %v2867 = vrot.slane %v2839, %v2866
    %v2868 = vmul.f32 %v2862, %v2867
    %v2869 = vmul.f32 %v2863, %v2867
    %v2870 = vlaneseq
    %v2871 = vshrl.u32 %v2870, 7
    %v2872 = vsub.s32 1, %v2871
    %v2873 = vrot.slane %v2839, %v2872
    %v2874 = vadd.f32 %v2868, %v2873
    %v2875 = vadd.f32 %v2869, %v2873
    %v2877 = vsel %vm171, %v2874, 0
    %v2880 = vsel %vm171, %v2875, 0
    %2882 = vmatprep.subr.mxu0 0.0
    %2883 = vmatpush1.msra.mxu0 %v2711
    %2884 = vmatprep.subr.mxu0 0.0
    %2885 = vmatpush1.msra.mxu0 %v2712
    %2886 = vmatprep.subr.mxu0 0.0
    %2887 = vmatpush1.msra.mxu0 %v2713
    %2888 = vmatprep.subr.mxu0 0.0
    %2889 = vmatpush1.msra.mxu0 %v2714
    %2890 = vmatprep.subr.mxu0 0.0
    %2891 = vmatpush1.msra.mxu0 0.0
    %2892 = vmatprep.subr.mxu0 0.0
    %2893 = vmatpush1.msra.mxu0 0.0
    %2894 = vmatprep.subr.mxu0 0.0
    %2895 = vmatpush1.msra.mxu0 0.0
    %2896 = vmatprep.subr.mxu0 0.0
    %2897 = vmatpush1.msra.mxu0 0.0
    %2898 = vmatprep.subr.mxu0 0.0
    %2899 = vmatpush1.msra.mxu0 0.0
    %2900 = vmatprep.subr.mxu0 0.0
    %2901 = vmatpush1.msra.mxu0 0.0
    %2902 = vmatprep.subr.mxu0 0.0
    %2903 = vmatpush1.msra.mxu0 0.0
    %2904 = vmatprep.subr.mxu0 0.0
    %2905 = vmatpush1.msra.mxu0 0.0
    %2906 = vmatprep.subr.mxu0 0.0
    %2907 = vmatpush1.msra.mxu0 0.0
    %2908 = vmatprep.subr.mxu0 0.0
    %2909 = vmatpush1.msra.mxu0 0.0
    %2910 = vmatprep.subr.mxu0 0.0
    %2911 = vmatpush1.msra.mxu0 0.0
    %2912 = vmatprep.subr.mxu0 0.0
    %2913 = vmatpush1.msra.mxu0 0.0
    %2914 = vmatprep.subr.mxu0 0.0
    %2915 = vmatpush1.msra.mxu0 0.0
    %2916 = vmatprep.subr.mxu0 0.0
    %2917 = vmatpush1.msra.mxu0 0.0
    %2918 = vmatprep.subr.mxu0 0.0
    %2919 = vmatpush1.msra.mxu0 0.0
    %2920 = vmatprep.subr.mxu0 0.0
    %2921 = vmatpush1.msra.mxu0 0.0
    %2922 = vmatprep.subr.mxu0 0.0
    %2923 = vmatpush1.msra.mxu0 0.0
    %2924 = vmatprep.subr.mxu0 0.0
    %2925 = vmatpush1.msra.mxu0 0.0
    %2926 = vmatprep.subr.mxu0 0.0
    %2927 = vmatpush1.msra.mxu0 0.0
    %2928 = vmatprep.subr.mxu0 0.0
    %2929 = vmatpush1.msra.mxu0 0.0
    %2930 = vmatprep.subr.mxu0 0.0
    %2931 = vmatpush1.msra.mxu0 0.0
    %2932 = vmatprep.subr.mxu0 0.0
    %2933 = vmatpush1.msra.mxu0 0.0
    %2934 = vmatprep.subr.mxu0 0.0
    %2935 = vmatpush1.msra.mxu0 0.0
    %2936 = vmatprep.subr.mxu0 0.0
    %2937 = vmatpush1.msra.mxu0 0.0
    %2938 = vmatprep.subr.mxu0 0.0
    %2939 = vmatpush1.msra.mxu0 0.0
    %2940 = vmatprep.subr.mxu0 0.0
    %2941 = vmatpush1.msra.mxu0 0.0
    %2942 = vmatprep.subr.mxu0 0.0
    %2943 = vmatpush1.msra.mxu0 0.0
    %2944 = vmatprep.subr.mxu0 0.0
    %2945 = vmatpush1.msra.mxu0 0.0
    %2946 = vmatprep.mubr.f32.mxu0 0.0
    %2947 = vmatmul.mubr.f32.gmra.mrb[0].mxu0 %v2877
    %v2948 = vpop.f32.mrb[0].mxu0
    %v2949 = vadd.f32 0.0, %v2948
    %v2950 = vpop.f32.mrb[0].mxu0
    %2951 = vmatprep.mubr.f32.mxu0 0.0
    %2952 = vmatmul.mubr.f32.gmra.mrb[0].mxu0 %v2880
    %v2953 = vpop.f32.mrb[0].mxu0
    %v2954 = vadd.f32 0.0, %v2953
    %v2955 = vpop.f32.mrb[0].mxu0
    %2956 = vdwg.mxu0
    %2959 = vrot.lane.b32.xlu0 %v2949, 120
    %v2960 = vpop.permute.xlu0 %2959
    %2961 = vrot.lane.b32.xlu0 %v2954, 120
    %v2962 = vpop.permute.xlu0 %2961
    %2963 = vrot.lane.b32.xlu0 %v2949, 112
    %v2964 = vpop.permute.xlu0 %2963
    %2965 = vrot.lane.b32.xlu0 %v2954, 112
    %v2966 = vpop.permute.xlu0 %2965
    %2967 = vrot.lane.b32.xlu0 %v2949, 104
    %v2968 = vpop.permute.xlu0 %2967
    %2969 = vrot.lane.b32.xlu0 %v2954, 104
    %v2970 = vpop.permute.xlu0 %2969
    %2971 = vrot.lane.b32.xlu0 %v2949, 96
    %v2972 = vpop.permute.xlu0 %2971
    %v2973 = vsel %vm666, %v2949, 0
    %v2975 = vsel %vm666, %v2972, 0
    %2977 = vmatprep.subr.mxu0 0.0
    %2978 = vmatpush1.xpose.msra.mxu0 %v2975
    %2979 = vmatprep.subr.mxu0 0.0
    %2980 = vmatpush1.xpose.msra.mxu0 0.0
    %2981 = vmatprep.subr.mxu0 0.0
    %2982 = vmatpush1.xpose.msra.mxu0 0.0
    %2983 = vmatprep.subr.mxu0 0.0
    %2984 = vmatpush1.xpose.msra.mxu0 0.0
    %2985 = vmatprep.subr.mxu0 0.0
    %2986 = vmatpush1.xpose.msra.mxu0 0.0
    %2987 = vmatprep.subr.mxu0 0.0
    %2988 = vmatpush1.xpose.msra.mxu0 0.0
    %2989 = vmatprep.subr.mxu0 0.0
    %2990 = vmatpush1.xpose.msra.mxu0 0.0
    %2991 = vmatprep.subr.mxu0 0.0
    %2992 = vmatpush1.xpose.msra.mxu0 0.0
    %2993 = vmatprep.subr.mxu0 0.0
    %2994 = vmatpush1.xpose.msra.mxu0 0.0
    %2995 = vmatprep.subr.mxu0 0.0
    %2996 = vmatpush1.xpose.msra.mxu0 0.0
    %2997 = vmatprep.subr.mxu0 0.0
    %2998 = vmatpush1.xpose.msra.mxu0 0.0
    %2999 = vmatprep.subr.mxu0 0.0
    %3000 = vmatpush1.xpose.msra.mxu0 0.0
    %3001 = vmatprep.subr.mxu0 0.0
    %3002 = vmatpush1.xpose.msra.mxu0 0.0
    %3003 = vmatprep.subr.mxu0 0.0
    %3004 = vmatpush1.xpose.msra.mxu0 0.0
    %3005 = vmatprep.subr.mxu0 0.0
    %3006 = vmatpush1.xpose.msra.mxu0 0.0
    %3007 = vmatprep.subr.mxu0 0.0
    %3008 = vmatpush1.xpose.msra.mxu0 0.0
    %3009 = vmatprep.subr.mxu0 0.0
    %3010 = vmatpush1.xpose.msra.mxu0 0.0
    %3011 = vmatprep.subr.mxu0 0.0
    %3012 = vmatpush1.xpose.msra.mxu0 0.0
    %3013 = vmatprep.subr.mxu0 0.0
    %3014 = vmatpush1.xpose.msra.mxu0 0.0
    %3015 = vmatprep.subr.mxu0 0.0
    %3016 = vmatpush1.xpose.msra.mxu0 0.0
    %3017 = vmatprep.subr.mxu0 0.0
    %3018 = vmatpush1.xpose.msra.mxu0 0.0
    %3019 = vmatprep.subr.mxu0 0.0
    %3020 = vmatpush1.xpose.msra.mxu0 0.0
    %3021 = vmatprep.subr.mxu0 0.0
    %3022 = vmatpush1.xpose.msra.mxu0 0.0
    %3023 = vmatprep.subr.mxu0 0.0
    %3024 = vmatpush1.xpose.msra.mxu0 0.0
    %3025 = vmatprep.subr.mxu0 0.0
    %3026 = vmatpush1.xpose.msra.mxu0 0.0
    %3027 = vmatprep.subr.mxu0 0.0
    %3028 = vmatpush1.xpose.msra.mxu0 0.0
    %3029 = vmatprep.subr.mxu0 0.0
    %3030 = vmatpush1.xpose.msra.mxu0 0.0
    %3031 = vmatprep.subr.mxu0 0.0
    %3032 = vmatpush1.xpose.msra.mxu0 0.0
    %3033 = vmatprep.subr.mxu0 0.0
    %3034 = vmatpush1.xpose.msra.mxu0 0.0
    %3035 = vmatprep.subr.mxu0 0.0
    %3036 = vmatpush1.xpose.msra.mxu0 0.0
    %3037 = vmatprep.subr.mxu0 0.0
    %3038 = vmatpush1.xpose.msra.mxu0 0.0
    %3039 = vmatprep.subr.mxu0 0.0
    %3040 = vmatpush1.xpose.msra.mxu0 0.0
    %3041 = vmatprep.mubr.f32.mxu0 0.0
    %3042 = vmatmul.mubr.f32.gmra.mrb[0].mxu0 %v2973
    %v3043 = vpop.f32.mrb[0].mxu0
    %v3044 = vadd.f32 0.0, %v3043
    %v3045 = vpop.f32.mrb[0].mxu0
    %3046 = vdwg.mxu0
    %3047 = vrot.lane.b32.xlu0 %v2954, 96
    %v3048 = vpop.permute.xlu0 %3047
    %v3049 = vsel %vm666, %v2954, 0
    %v3051 = vsel %vm666, %v3048, 0
    %3053 = vmatprep.subr.mxu0 0.0
    %3054 = vmatpush1.xpose.msra.mxu0 %v3051
    %3055 = vmatprep.subr.mxu0 0.0
    %3056 = vmatpush1.xpose.msra.mxu0 0.0
    %3057 = vmatprep.subr.mxu0 0.0
    %3058 = vmatpush1.xpose.msra.mxu0 0.0
    %3059 = vmatprep.subr.mxu0 0.0
    %3060 = vmatpush1.xpose.msra.mxu0 0.0
    %3061 = vmatprep.subr.mxu0 0.0
    %3062 = vmatpush1.xpose.msra.mxu0 0.0
    %3063 = vmatprep.subr.mxu0 0.0
    %3064 = vmatpush1.xpose.msra.mxu0 0.0
    %3065 = vmatprep.subr.mxu0 0.0
    %3066 = vmatpush1.xpose.msra.mxu0 0.0
    %3067 = vmatprep.subr.mxu0 0.0
    %3068 = vmatpush1.xpose.msra.mxu0 0.0
    %3069 = vmatprep.subr.mxu0 0.0
    %3070 = vmatpush1.xpose.msra.mxu0 0.0
    %3071 = vmatprep.subr.mxu0 0.0
    %3072 = vmatpush1.xpose.msra.mxu0 0.0
    %3073 = vmatprep.subr.mxu0 0.0
    %3074 = vmatpush1.xpose.msra.mxu0 0.0
    %3075 = vmatprep.subr.mxu0 0.0
    %3076 = vmatpush1.xpose.msra.mxu0 0.0
    %3077 = vmatprep.subr.mxu0 0.0
    %3078 = vmatpush1.xpose.msra.mxu0 0.0
    %3079 = vmatprep.subr.mxu0 0.0
    %3080 = vmatpush1.xpose.msra.mxu0 0.0
    %3081 = vmatprep.subr.mxu0 0.0
    %3082 = vmatpush1.xpose.msra.mxu0 0.0
    %3083 = vmatprep.subr.mxu0 0.0
    %3084 = vmatpush1.xpose.msra.mxu0 0.0
    %3085 = vmatprep.subr.mxu0 0.0
    %3086 = vmatpush1.xpose.msra.mxu0 0.0
    %3087 = vmatprep.subr.mxu0 0.0
    %3088 = vmatpush1.xpose.msra.mxu0 0.0
    %3089 = vmatprep.subr.mxu0 0.0
    %3090 = vmatpush1.xpose.msra.mxu0 0.0
    %3091 = vmatprep.subr.mxu0 0.0
    %3092 = vmatpush1.xpose.msra.mxu0 0.0
    %3093 = vmatprep.subr.mxu0 0.0
    %3094 = vmatpush1.xpose.msra.mxu0 0.0
    %3095 = vmatprep.subr.mxu0 0.0
    %3096 = vmatpush1.xpose.msra.mxu0 0.0
    %3097 = vmatprep.subr.mxu0 0.0
    %3098 = vmatpush1.xpose.msra.mxu0 0.0
    %3099 = vmatprep.subr.mxu0 0.0
    %3100 = vmatpush1.xpose.msra.mxu0 0.0
    %3101 = vmatprep.subr.mxu0 0.0
    %3102 = vmatpush1.xpose.msra.mxu0 0.0
    %3103 = vmatprep.subr.mxu0 0.0
    %3104 = vmatpush1.xpose.msra.mxu0 0.0
    %3105 = vmatprep.subr.mxu0 0.0
    %3106 = vmatpush1.xpose.msra.mxu0 0.0
    %3107 = vmatprep.subr.mxu0 0.0
    %3108 = vmatpush1.xpose.msra.mxu0 0.0
    %3109 = vmatprep.subr.mxu0 0.0
    %3110 = vmatpush1.xpose.msra.mxu0 0.0
    %3111 = vmatprep.subr.mxu0 0.0
    %3112 = vmatpush1.xpose.msra.mxu0 0.0
    %3113 = vmatprep.subr.mxu0 0.0
    %3114 = vmatpush1.xpose.msra.mxu0 0.0
    %3115 = vmatprep.subr.mxu0 0.0
    %3116 = vmatpush1.xpose.msra.mxu0 0.0
    %3117 = vmatprep.mubr.f32.mxu0 0.0
    %3118 = vmatmul.mubr.f32.gmra.mrb[0].mxu0 %v3049
    %v3119 = vpop.f32.mrb[0].mxu0
    %v3120 = vadd.f32 0.0, %v3119
    %v3121 = vpop.f32.mrb[0].mxu0
    %3122 = vdwg.mxu0
    %3123 = vrot.lane.b32.xlu0 %v2960, 96
    %v3124 = vpop.permute.xlu0 %3123
    %v3125 = vsel %vm666, %v2960, 0
    %v3127 = vsel %vm666, %v3124, 0
    %3129 = vmatprep.subr.mxu0 0.0
    %3130 = vmatpush1.xpose.msra.mxu0 %v3127
    %3131 = vmatprep.subr.mxu0 0.0
    %3132 = vmatpush1.xpose.msra.mxu0 0.0
    %3133 = vmatprep.subr.mxu0 0.0
    %3134 = vmatpush1.xpose.msra.mxu0 0.0
    %3135 = vmatprep.subr.mxu0 0.0
    %3136 = vmatpush1.xpose.msra.mxu0 0.0
    %3137 = vmatprep.subr.mxu0 0.0
    %3138 = vmatpush1.xpose.msra.mxu0 0.0
    %3139 = vmatprep.subr.mxu0 0.0
    %3140 = vmatpush1.xpose.msra.mxu0 0.0
    %3141 = vmatprep.subr.mxu0 0.0
    %3142 = vmatpush1.xpose.msra.mxu0 0.0
    %3143 = vmatprep.subr.mxu0 0.0
    %3144 = vmatpush1.xpose.msra.mxu0 0.0
    %3145 = vmatprep.subr.mxu0 0.0
    %3146 = vmatpush1.xpose.msra.mxu0 0.0
    %3147 = vmatprep.subr.mxu0 0.0
    %3148 = vmatpush1.xpose.msra.mxu0 0.0
    %3149 = vmatprep.subr.mxu0 0.0
    %3150 = vmatpush1.xpose.msra.mxu0 0.0
    %3151 = vmatprep.subr.mxu0 0.0
    %3152 = vmatpush1.xpose.msra.mxu0 0.0
    %3153 = vmatprep.subr.mxu0 0.0
    %3154 = vmatpush1.xpose.msra.mxu0 0.0
    %3155 = vmatprep.subr.mxu0 0.0
    %3156 = vmatpush1.xpose.msra.mxu0 0.0
    %3157 = vmatprep.subr.mxu0 0.0
    %3158 = vmatpush1.xpose.msra.mxu0 0.0
    %3159 = vmatprep.subr.mxu0 0.0
    %3160 = vmatpush1.xpose.msra.mxu0 0.0
    %3161 = vmatprep.subr.mxu0 0.0
    %3162 = vmatpush1.xpose.msra.mxu0 0.0
    %3163 = vmatprep.subr.mxu0 0.0
    %3164 = vmatpush1.xpose.msra.mxu0 0.0
    %3165 = vmatprep.subr.mxu0 0.0
    %3166 = vmatpush1.xpose.msra.mxu0 0.0
    %3167 = vmatprep.subr.mxu0 0.0
    %3168 = vmatpush1.xpose.msra.mxu0 0.0
    %3169 = vmatprep.subr.mxu0 0.0
    %3170 = vmatpush1.xpose.msra.mxu0 0.0
    %3171 = vmatprep.subr.mxu0 0.0
    %3172 = vmatpush1.xpose.msra.mxu0 0.0
    %3173 = vmatprep.subr.mxu0 0.0
    %3174 = vmatpush1.xpose.msra.mxu0 0.0
    %3175 = vmatprep.subr.mxu0 0.0
    %3176 = vmatpush1.xpose.msra.mxu0 0.0
    %3177 = vmatprep.subr.mxu0 0.0
    %3178 = vmatpush1.xpose.msra.mxu0 0.0
    %3179 = vmatprep.subr.mxu0 0.0
    %3180 = vmatpush1.xpose.msra.mxu0 0.0
    %3181 = vmatprep.subr.mxu0 0.0
    %3182 = vmatpush1.xpose.msra.mxu0 0.0
    %3183 = vmatprep.subr.mxu0 0.0
    %3184 = vmatpush1.xpose.msra.mxu0 0.0
    %3185 = vmatprep.subr.mxu0 0.0
    %3186 = vmatpush1.xpose.msra.mxu0 0.0
    %3187 = vmatprep.subr.mxu0 0.0
    %3188 = vmatpush1.xpose.msra.mxu0 0.0
    %3189 = vmatprep.subr.mxu0 0.0
    %3190 = vmatpush1.xpose.msra.mxu0 0.0
    %3191 = vmatprep.subr.mxu0 0.0
    %3192 = vmatpush1.xpose.msra.mxu0 0.0
    %3193 = vmatprep.mubr.f32.mxu0 0.0
    %3194 = vmatmul.mubr.f32.gmra.mrb[0].mxu0 %v3125
    %v3195 = vpop.f32.mrb[0].mxu0
    %v3196 = vadd.f32 0.0, %v3195
    %v3197 = vpop.f32.mrb[0].mxu0
    %3198 = vdwg.mxu0
    %3199 = vrot.lane.b32.xlu0 %v2962, 96
    %v3200 = vpop.permute.xlu0 %3199
    %v3201 = vsel %vm666, %v2962, 0
    %v3203 = vsel %vm666, %v3200, 0
    %3205 = vmatprep.subr.mxu0 0.0
    %3206 = vmatpush1.xpose.msra.mxu0 %v3203
    %3207 = vmatprep.subr.mxu0 0.0
    %3208 = vmatpush1.xpose.msra.mxu0 0.0
    %3209 = vmatprep.subr.mxu0 0.0
    %3210 = vmatpush1.xpose.msra.mxu0 0.0
    %3211 = vmatprep.subr.mxu0 0.0
    %3212 = vmatpush1.xpose.msra.mxu0 0.0
    %3213 = vmatprep.subr.mxu0 0.0
    %3214 = vmatpush1.xpose.msra.mxu0 0.0
    %3215 = vmatprep.subr.mxu0 0.0
    %3216 = vmatpush1.xpose.msra.mxu0 0.0
    %3217 = vmatprep.subr.mxu0 0.0
    %3218 = vmatpush1.xpose.msra.mxu0 0.0
    %3219 = vmatprep.subr.mxu0 0.0
    %3220 = vmatpush1.xpose.msra.mxu0 0.0
    %3221 = vmatprep.subr.mxu0 0.0
    %3222 = vmatpush1.xpose.msra.mxu0 0.0
    %3223 = vmatprep.subr.mxu0 0.0
    %3224 = vmatpush1.xpose.msra.mxu0 0.0
    %3225 = vmatprep.subr.mxu0 0.0
    %3226 = vmatpush1.xpose.msra.mxu0 0.0
    %3227 = vmatprep.subr.mxu0 0.0
    %3228 = vmatpush1.xpose.msra.mxu0 0.0
    %3229 = vmatprep.subr.mxu0 0.0
    %3230 = vmatpush1.xpose.msra.mxu0 0.0
    %3231 = vmatprep.subr.mxu0 0.0
    %3232 = vmatpush1.xpose.msra.mxu0 0.0
    %3233 = vmatprep.subr.mxu0 0.0
    %3234 = vmatpush1.xpose.msra.mxu0 0.0
    %3235 = vmatprep.subr.mxu0 0.0
    %3236 = vmatpush1.xpose.msra.mxu0 0.0
    %3237 = vmatprep.subr.mxu0 0.0
    %3238 = vmatpush1.xpose.msra.mxu0 0.0
    %3239 = vmatprep.subr.mxu0 0.0
    %3240 = vmatpush1.xpose.msra.mxu0 0.0
    %3241 = vmatprep.subr.mxu0 0.0
    %3242 = vmatpush1.xpose.msra.mxu0 0.0
    %3243 = vmatprep.subr.mxu0 0.0
    %3244 = vmatpush1.xpose.msra.mxu0 0.0
    %3245 = vmatprep.subr.mxu0 0.0
    %3246 = vmatpush1.xpose.msra.mxu0 0.0
    %3247 = vmatprep.subr.mxu0 0.0
    %3248 = vmatpush1.xpose.msra.mxu0 0.0
    %3249 = vmatprep.subr.mxu0 0.0
    %3250 = vmatpush1.xpose.msra.mxu0 0.0
    %3251 = vmatprep.subr.mxu0 0.0
    %3252 = vmatpush1.xpose.msra.mxu0 0.0
    %3253 = vmatprep.subr.mxu0 0.0
    %3254 = vmatpush1.xpose.msra.mxu0 0.0
    %3255 = vmatprep.subr.mxu0 0.0
    %3256 = vmatpush1.xpose.msra.mxu0 0.0
    %3257 = vmatprep.subr.mxu0 0.0
    %3258 = vmatpush1.xpose.msra.mxu0 0.0
    %3259 = vmatprep.subr.mxu0 0.0
    %3260 = vmatpush1.xpose.msra.mxu0 0.0
    %3261 = vmatprep.subr.mxu0 0.0
    %3262 = vmatpush1.xpose.msra.mxu0 0.0
    %3263 = vmatprep.subr.mxu0 0.0
    %3264 = vmatpush1.xpose.msra.mxu0 0.0
    %3265 = vmatprep.subr.mxu0 0.0
    %3266 = vmatpush1.xpose.msra.mxu0 0.0
    %3267 = vmatprep.subr.mxu0 0.0
    %3268 = vmatpush1.xpose.msra.mxu0 0.0
    %3269 = vmatprep.mubr.f32.mxu0 0.0
    %3270 = vmatmul.mubr.f32.gmra.mrb[0].mxu0 %v3201
    %v3271 = vpop.f32.mrb[0].mxu0
    %v3272 = vadd.f32 0.0, %v3271
    %v3273 = vpop.f32.mrb[0].mxu0
    %3274 = vdwg.mxu0
    %3275 = vrot.lane.b32.xlu0 %v2964, 96
    %v3276 = vpop.permute.xlu0 %3275
    %v3277 = vsel %vm666, %v2964, 0
    %v3279 = vsel %vm666, %v3276, 0
    %3281 = vmatprep.subr.mxu0 0.0
    %3282 = vmatpush1.xpose.msra.mxu0 %v3279
    %3283 = vmatprep.subr.mxu0 0.0
    %3284 = vmatpush1.xpose.msra.mxu0 0.0
    %3285 = vmatprep.subr.mxu0 0.0
    %3286 = vmatpush1.xpose.msra.mxu0 0.0
    %3287 = vmatprep.subr.mxu0 0.0
    %3288 = vmatpush1.xpose.msra.mxu0 0.0
    %3289 = vmatprep.subr.mxu0 0.0
    %3290 = vmatpush1.xpose.msra.mxu0 0.0
    %3291 = vmatprep.subr.mxu0 0.0
    %3292 = vmatpush1.xpose.msra.mxu0 0.0
    %3293 = vmatprep.subr.mxu0 0.0
    %3294 = vmatpush1.xpose.msra.mxu0 0.0
    %3295 = vmatprep.subr.mxu0 0.0
    %3296 = vmatpush1.xpose.msra.mxu0 0.0
    %3297 = vmatprep.subr.mxu0 0.0
    %3298 = vmatpush1.xpose.msra.mxu0 0.0
    %3299 = vmatprep.subr.mxu0 0.0
    %3300 = vmatpush1.xpose.msra.mxu0 0.0
    %3301 = vmatprep.subr.mxu0 0.0
    %3302 = vmatpush1.xpose.msra.mxu0 0.0
    %3303 = vmatprep.subr.mxu0 0.0
    %3304 = vmatpush1.xpose.msra.mxu0 0.0
    %3305 = vmatprep.subr.mxu0 0.0
    %3306 = vmatpush1.xpose.msra.mxu0 0.0
    %3307 = vmatprep.subr.mxu0 0.0
    %3308 = vmatpush1.xpose.msra.mxu0 0.0
    %3309 = vmatprep.subr.mxu0 0.0
    %3310 = vmatpush1.xpose.msra.mxu0 0.0
    %3311 = vmatprep.subr.mxu0 0.0
    %3312 = vmatpush1.xpose.msra.mxu0 0.0
    %3313 = vmatprep.subr.mxu0 0.0
    %3314 = vmatpush1.xpose.msra.mxu0 0.0
    %3315 = vmatprep.subr.mxu0 0.0
    %3316 = vmatpush1.xpose.msra.mxu0 0.0
    %3317 = vmatprep.subr.mxu0 0.0
    %3318 = vmatpush1.xpose.msra.mxu0 0.0
    %3319 = vmatprep.subr.mxu0 0.0
    %3320 = vmatpush1.xpose.msra.mxu0 0.0
    %3321 = vmatprep.subr.mxu0 0.0
    %3322 = vmatpush1.xpose.msra.mxu0 0.0
    %3323 = vmatprep.subr.mxu0 0.0
    %3324 = vmatpush1.xpose.msra.mxu0 0.0
    %3325 = vmatprep.subr.mxu0 0.0
    %3326 = vmatpush1.xpose.msra.mxu0 0.0
    %3327 = vmatprep.subr.mxu0 0.0
    %3328 = vmatpush1.xpose.msra.mxu0 0.0
    %3329 = vmatprep.subr.mxu0 0.0
    %3330 = vmatpush1.xpose.msra.mxu0 0.0
    %3331 = vmatprep.subr.mxu0 0.0
    %3332 = vmatpush1.xpose.msra.mxu0 0.0
    %3333 = vmatprep.subr.mxu0 0.0
    %3334 = vmatpush1.xpose.msra.mxu0 0.0
    %3335 = vmatprep.subr.mxu0 0.0
    %3336 = vmatpush1.xpose.msra.mxu0 0.0
    %3337 = vmatprep.subr.mxu0 0.0
    %3338 = vmatpush1.xpose.msra.mxu0 0.0
    %3339 = vmatprep.subr.mxu0 0.0
    %3340 = vmatpush1.xpose.msra.mxu0 0.0
    %3341 = vmatprep.subr.mxu0 0.0
    %3342 = vmatpush1.xpose.msra.mxu0 0.0
    %3343 = vmatprep.subr.mxu0 0.0
    %3344 = vmatpush1.xpose.msra.mxu0 0.0
    %3345 = vmatprep.mubr.f32.mxu0 0.0
    %3346 = vmatmul.mubr.f32.gmra.mrb[0].mxu0 %v3277
    %v3347 = vpop.f32.mrb[0].mxu0
    %v3348 = vadd.f32 0.0, %v3347
    %v3349 = vpop.f32.mrb[0].mxu0
    %3350 = vdwg.mxu0
    %3351 = vrot.lane.b32.xlu0 %v2966, 96
    %v3352 = vpop.permute.xlu0 %3351
    %v3353 = vsel %vm666, %v2966, 0
    %v3355 = vsel %vm666, %v3352, 0
    %3357 = vmatprep.subr.mxu0 0.0
    %3358 = vmatpush1.xpose.msra.mxu0 %v3355
    %3359 = vmatprep.subr.mxu0 0.0
    %3360 = vmatpush1.xpose.msra.mxu0 0.0
    %3361 = vmatprep.subr.mxu0 0.0
    %3362 = vmatpush1.xpose.msra.mxu0 0.0
    %3363 = vmatprep.subr.mxu0 0.0
    %3364 = vmatpush1.xpose.msra.mxu0 0.0
    %3365 = vmatprep.subr.mxu0 0.0
    %3366 = vmatpush1.xpose.msra.mxu0 0.0
    %3367 = vmatprep.subr.mxu0 0.0
    %3368 = vmatpush1.xpose.msra.mxu0 0.0
    %3369 = vmatprep.subr.mxu0 0.0
    %3370 = vmatpush1.xpose.msra.mxu0 0.0
    %3371 = vmatprep.subr.mxu0 0.0
    %3372 = vmatpush1.xpose.msra.mxu0 0.0
    %3373 = vmatprep.subr.mxu0 0.0
    %3374 = vmatpush1.xpose.msra.mxu0 0.0
    %3375 = vmatprep.subr.mxu0 0.0
    %3376 = vmatpush1.xpose.msra.mxu0 0.0
    %3377 = vmatprep.subr.mxu0 0.0
    %3378 = vmatpush1.xpose.msra.mxu0 0.0
    %3379 = vmatprep.subr.mxu0 0.0
    %3380 = vmatpush1.xpose.msra.mxu0 0.0
    %3381 = vmatprep.subr.mxu0 0.0
    %3382 = vmatpush1.xpose.msra.mxu0 0.0
    %3383 = vmatprep.subr.mxu0 0.0
    %3384 = vmatpush1.xpose.msra.mxu0 0.0
    %3385 = vmatprep.subr.mxu0 0.0
    %3386 = vmatpush1.xpose.msra.mxu0 0.0
    %3387 = vmatprep.subr.mxu0 0.0
    %3388 = vmatpush1.xpose.msra.mxu0 0.0
    %3389 = vmatprep.subr.mxu0 0.0
    %3390 = vmatpush1.xpose.msra.mxu0 0.0
    %3391 = vmatprep.subr.mxu0 0.0
    %3392 = vmatpush1.xpose.msra.mxu0 0.0
    %3393 = vmatprep.subr.mxu0 0.0
    %3394 = vmatpush1.xpose.msra.mxu0 0.0
    %3395 = vmatprep.subr.mxu0 0.0
    %3396 = vmatpush1.xpose.msra.mxu0 0.0
    %3397 = vmatprep.subr.mxu0 0.0
    %3398 = vmatpush1.xpose.msra.mxu0 0.0
    %3399 = vmatprep.subr.mxu0 0.0
    %3400 = vmatpush1.xpose.msra.mxu0 0.0
    %3401 = vmatprep.subr.mxu0 0.0
    %3402 = vmatpush1.xpose.msra.mxu0 0.0
    %3403 = vmatprep.subr.mxu0 0.0
    %3404 = vmatpush1.xpose.msra.mxu0 0.0
    %3405 = vmatprep.subr.mxu0 0.0
    %3406 = vmatpush1.xpose.msra.mxu0 0.0
    %3407 = vmatprep.subr.mxu0 0.0
    %3408 = vmatpush1.xpose.msra.mxu0 0.0
    %3409 = vmatprep.subr.mxu0 0.0
    %3410 = vmatpush1.xpose.msra.mxu0 0.0
    %3411 = vmatprep.subr.mxu0 0.0
    %3412 = vmatpush1.xpose.msra.mxu0 0.0
    %3413 = vmatprep.subr.mxu0 0.0
    %3414 = vmatpush1.xpose.msra.mxu0 0.0
    %3415 = vmatprep.subr.mxu0 0.0
    %3416 = vmatpush1.xpose.msra.mxu0 0.0
    %3417 = vmatprep.subr.mxu0 0.0
    %3418 = vmatpush1.xpose.msra.mxu0 0.0
    %3419 = vmatprep.subr.mxu0 0.0
    %3420 = vmatpush1.xpose.msra.mxu0 0.0
    %3421 = vmatprep.mubr.f32.mxu0 0.0
    %3422 = vmatmul.mubr.f32.gmra.mrb[0].mxu0 %v3353
    %v3423 = vpop.f32.mrb[0].mxu0
    %v3424 = vadd.f32 0.0, %v3423
    %v3425 = vpop.f32.mrb[0].mxu0
    %3426 = vdwg.mxu0
    %3427 = vrot.lane.b32.xlu0 %v2968, 96
    %v3428 = vpop.permute.xlu0 %3427
    %v3429 = vsel %vm666, %v2968, 0
    %v3431 = vsel %vm666, %v3428, 0
    %3433 = vmatprep.subr.mxu0 0.0
    %3434 = vmatpush1.xpose.msra.mxu0 %v3431
    %3435 = vmatprep.subr.mxu0 0.0
    %3436 = vmatpush1.xpose.msra.mxu0 0.0
    %3437 = vmatprep.subr.mxu0 0.0
    %3438 = vmatpush1.xpose.msra.mxu0 0.0
    %3439 = vmatprep.subr.mxu0 0.0
    %3440 = vmatpush1.xpose.msra.mxu0 0.0
    %3441 = vmatprep.subr.mxu0 0.0
    %3442 = vmatpush1.xpose.msra.mxu0 0.0
    %3443 = vmatprep.subr.mxu0 0.0
    %3444 = vmatpush1.xpose.msra.mxu0 0.0
    %3445 = vmatprep.subr.mxu0 0.0
    %3446 = vmatpush1.xpose.msra.mxu0 0.0
    %3447 = vmatprep.subr.mxu0 0.0
    %3448 = vmatpush1.xpose.msra.mxu0 0.0
    %3449 = vmatprep.subr.mxu0 0.0
    %3450 = vmatpush1.xpose.msra.mxu0 0.0
    %3451 = vmatprep.subr.mxu0 0.0
    %3452 = vmatpush1.xpose.msra.mxu0 0.0
    %3453 = vmatprep.subr.mxu0 0.0
    %3454 = vmatpush1.xpose.msra.mxu0 0.0
    %3455 = vmatprep.subr.mxu0 0.0
    %3456 = vmatpush1.xpose.msra.mxu0 0.0
    %3457 = vmatprep.subr.mxu0 0.0
    %3458 = vmatpush1.xpose.msra.mxu0 0.0
    %3459 = vmatprep.subr.mxu0 0.0
    %3460 = vmatpush1.xpose.msra.mxu0 0.0
    %3461 = vmatprep.subr.mxu0 0.0
    %3462 = vmatpush1.xpose.msra.mxu0 0.0
    %3463 = vmatprep.subr.mxu0 0.0
    %3464 = vmatpush1.xpose.msra.mxu0 0.0
    %3465 = vmatprep.subr.mxu0 0.0
    %3466 = vmatpush1.xpose.msra.mxu0 0.0
    %3467 = vmatprep.subr.mxu0 0.0
    %3468 = vmatpush1.xpose.msra.mxu0 0.0
    %3469 = vmatprep.subr.mxu0 0.0
    %3470 = vmatpush1.xpose.msra.mxu0 0.0
    %3471 = vmatprep.subr.mxu0 0.0
    %3472 = vmatpush1.xpose.msra.mxu0 0.0
    %3473 = vmatprep.subr.mxu0 0.0
    %3474 = vmatpush1.xpose.msra.mxu0 0.0
    %3475 = vmatprep.subr.mxu0 0.0
    %3476 = vmatpush1.xpose.msra.mxu0 0.0
    %3477 = vmatprep.subr.mxu0 0.0
    %3478 = vmatpush1.xpose.msra.mxu0 0.0
    %3479 = vmatprep.subr.mxu0 0.0
    %3480 = vmatpush1.xpose.msra.mxu0 0.0
    %3481 = vmatprep.subr.mxu0 0.0
    %3482 = vmatpush1.xpose.msra.mxu0 0.0
    %3483 = vmatprep.subr.mxu0 0.0
    %3484 = vmatpush1.xpose.msra.mxu0 0.0
    %3485 = vmatprep.subr.mxu0 0.0
    %3486 = vmatpush1.xpose.msra.mxu0 0.0
    %3487 = vmatprep.subr.mxu0 0.0
    %3488 = vmatpush1.xpose.msra.mxu0 0.0
    %3489 = vmatprep.subr.mxu0 0.0
    %3490 = vmatpush1.xpose.msra.mxu0 0.0
    %3491 = vmatprep.subr.mxu0 0.0
    %3492 = vmatpush1.xpose.msra.mxu0 0.0
    %3493 = vmatprep.subr.mxu0 0.0
    %3494 = vmatpush1.xpose.msra.mxu0 0.0
    %3495 = vmatprep.subr.mxu0 0.0
    %3496 = vmatpush1.xpose.msra.mxu0 0.0
    %3497 = vmatprep.mubr.f32.mxu0 0.0
    %3498 = vmatmul.mubr.f32.gmra.mrb[0].mxu0 %v3429
    %v3499 = vpop.f32.mrb[0].mxu0
    %v3500 = vadd.f32 0.0, %v3499
    %v3501 = vpop.f32.mrb[0].mxu0
    %3502 = vdwg.mxu0
    %3503 = vrot.lane.b32.xlu0 %v2970, 96
    %v3504 = vpop.permute.xlu0 %3503
    %v3505 = vsel %vm666, %v2970, 0
    %v3507 = vsel %vm666, %v3504, 0
    %3509 = vmatprep.subr.mxu0 0.0
    %3510 = vmatpush1.xpose.msra.mxu0 %v3507
    %3511 = vmatprep.subr.mxu0 0.0
    %3512 = vmatpush1.xpose.msra.mxu0 0.0
    %3513 = vmatprep.subr.mxu0 0.0
    %3514 = vmatpush1.xpose.msra.mxu0 0.0
    %3515 = vmatprep.subr.mxu0 0.0
    %3516 = vmatpush1.xpose.msra.mxu0 0.0
    %3517 = vmatprep.subr.mxu0 0.0
    %3518 = vmatpush1.xpose.msra.mxu0 0.0
    %3519 = vmatprep.subr.mxu0 0.0
    %3520 = vmatpush1.xpose.msra.mxu0 0.0
    %3521 = vmatprep.subr.mxu0 0.0
    %3522 = vmatpush1.xpose.msra.mxu0 0.0
    %3523 = vmatprep.subr.mxu0 0.0
    %3524 = vmatpush1.xpose.msra.mxu0 0.0
    %3525 = vmatprep.subr.mxu0 0.0
    %3526 = vmatpush1.xpose.msra.mxu0 0.0
    %3527 = vmatprep.subr.mxu0 0.0
    %3528 = vmatpush1.xpose.msra.mxu0 0.0
    %3529 = vmatprep.subr.mxu0 0.0
    %3530 = vmatpush1.xpose.msra.mxu0 0.0
    %3531 = vmatprep.subr.mxu0 0.0
    %3532 = vmatpush1.xpose.msra.mxu0 0.0
    %3533 = vmatprep.subr.mxu0 0.0
    %3534 = vmatpush1.xpose.msra.mxu0 0.0
    %3535 = vmatprep.subr.mxu0 0.0
    %3536 = vmatpush1.xpose.msra.mxu0 0.0
    %3537 = vmatprep.subr.mxu0 0.0
    %3538 = vmatpush1.xpose.msra.mxu0 0.0
    %3539 = vmatprep.subr.mxu0 0.0
    %3540 = vmatpush1.xpose.msra.mxu0 0.0
    %3541 = vmatprep.subr.mxu0 0.0
    %3542 = vmatpush1.xpose.msra.mxu0 0.0
    %3543 = vmatprep.subr.mxu0 0.0
    %3544 = vmatpush1.xpose.msra.mxu0 0.0
    %3545 = vmatprep.subr.mxu0 0.0
    %3546 = vmatpush1.xpose.msra.mxu0 0.0
    %3547 = vmatprep.subr.mxu0 0.0
    %3548 = vmatpush1.xpose.msra.mxu0 0.0
    %3549 = vmatprep.subr.mxu0 0.0
    %3550 = vmatpush1.xpose.msra.mxu0 0.0
    %3551 = vmatprep.subr.mxu0 0.0
    %3552 = vmatpush1.xpose.msra.mxu0 0.0
    %3553 = vmatprep.subr.mxu0 0.0
    %3554 = vmatpush1.xpose.msra.mxu0 0.0
    %3555 = vmatprep.subr.mxu0 0.0
    %3556 = vmatpush1.xpose.msra.mxu0 0.0
    %3557 = vmatprep.subr.mxu0 0.0
    %3558 = vmatpush1.xpose.msra.mxu0 0.0
    %3559 = vmatprep.subr.mxu0 0.0
    %3560 = vmatpush1.xpose.msra.mxu0 0.0
    %3561 = vmatprep.subr.mxu0 0.0
    %3562 = vmatpush1.xpose.msra.mxu0 0.0
    %3563 = vmatprep.subr.mxu0 0.0
    %3564 = vmatpush1.xpose.msra.mxu0 0.0
    %3565 = vmatprep.subr.mxu0 0.0
    %3566 = vmatpush1.xpose.msra.mxu0 0.0
    %3567 = vmatprep.subr.mxu0 0.0
    %3568 = vmatpush1.xpose.msra.mxu0 0.0
    %3569 = vmatprep.subr.mxu0 0.0
    %3570 = vmatpush1.xpose.msra.mxu0 0.0
    %3571 = vmatprep.subr.mxu0 0.0
    %3572 = vmatpush1.xpose.msra.mxu0 0.0
    %3573 = vmatprep.mubr.f32.mxu0 0.0
    %3574 = vmatmul.mubr.f32.gmra.mrb[0].mxu0 %v3505
    %v3575 = vpop.f32.mrb[0].mxu0
    %v3576 = vadd.f32 0.0, %v3575
    %v3577 = vpop.f32.mrb[0].mxu0
    %3578 = vdwg.mxu0
    %v3579 = vmul.f32 %v3044, 0.35355338
    %v3580 = vmul.f32 %v3120, 0.35355338
    %v3581 = vmul.f32 %v3196, 0.35355338
    %v3582 = vmul.f32 %v3272, 0.35355338
    %v3583 = vmul.f32 %v3348, 0.35355338
    %v3584 = vmul.f32 %v3424, 0.35355338
    %v3585 = vmul.f32 %v3500, 0.35355338
    %v3586 = vmul.f32 %v3576, 0.35355338
    %v3587 = vsel %vm1282, %v3579, -3.4028235e+38
    %v3588 = vsel %vm1282, %v3580, -3.4028235e+38
    %v3589 = vsel %vm1282, %v3581, -3.4028235e+38
    %v3590 = vsel %vm1282, %v3582, -3.4028235e+38
    %v3591 = vsel %vm1282, %v3583, -3.4028235e+38
    %v3592 = vsel %vm1282, %v3584, -3.4028235e+38
    %v3593 = vsel %vm1282, %v3585, -3.4028235e+38
    %v3594 = vsel %vm1282, %v3586, -3.4028235e+38
    %v3595 = vsel %vm666, %v3587, -inf
    %3596 = vmax.xlane.f32.xlu0 %v3595
    %v3597 = vpop.xlane.xlu0 %3596
    %v3598 = vsel %vm666, %v3588, -inf
    %3599 = vmax.xlane.f32.xlu0 %v3598
    %v3600 = vpop.xlane.xlu0 %3599
    %v3601 = vsel %vm666, %v3589, -inf
    %3602 = vmax.xlane.f32.xlu0 %v3601
    %v3603 = vpop.xlane.xlu0 %3602
    %v3604 = vsel %vm666, %v3590, -inf
    %3605 = vmax.xlane.f32.xlu0 %v3604
    %v3606 = vpop.xlane.xlu0 %3605
    %v3607 = vsel %vm666, %v3591, -inf
    %3608 = vmax.xlane.f32.xlu0 %v3607
    %v3609 = vpop.xlane.xlu0 %3608
    %v3610 = vsel %vm666, %v3592, -inf
    %3611 = vmax.xlane.f32.xlu0 %v3610
    %v3612 = vpop.xlane.xlu0 %3611
    %v3613 = vsel %vm666, %v3593, -inf
    %3614 = vmax.xlane.f32.xlu0 %v3613
    %v3615 = vpop.xlane.xlu0 %3614
    %v3616 = vsel %vm666, %v3594, -inf
    %3617 = vmax.xlane.f32.xlu0 %v3616
    %v3618 = vpop.xlane.xlu0 %3617
    %v3619 = vsub.f32 %v3587, %v3597
    %v3620 = vsub.f32 %v3588, %v3600
    %v3621 = vsub.f32 %v3589, %v3603
    %v3622 = vsub.f32 %v3590, %v3606
    %v3623 = vsub.f32 %v3591, %v3609
    %v3624 = vsub.f32 %v3592, %v3612
    %v3625 = vsub.f32 %v3593, %v3615
    %v3626 = vsub.f32 %v3594, %v3618
    %v3627 = vmul.f32 %v3619, 1.442695
    %v3628 = vpow.pop %v3627
    %v3629 = vmul.f32 %v3620, 1.442695
    %v3630 = vpow.pop %v3629
    %v3631 = vmul.f32 %v3621, 1.442695
    %v3632 = vpow.pop %v3631
    %v3633 = vmul.f32 %v3622, 1.442695
    %v3634 = vpow.pop %v3633
    %v3635 = vmul.f32 %v3623, 1.442695
    %v3636 = vpow.pop %v3635
    %v3637 = vmul.f32 %v3624, 1.442695
    %v3638 = vpow.pop %v3637
    %v3639 = vmul.f32 %v3625, 1.442695
    %v3640 = vpow.pop %v3639
    %v3641 = vmul.f32 %v3626, 1.442695
    %v3642 = vpow.pop %v3641
    %v3643 = vsel %vm666, %v3628, 0.0
    %3644 = vadd.xlane.f32.xlu0 %v3643
    %v3645 = vpop.xlane.xlu0 %3644
    %v3646 = vsel %vm666, %v3630, 0.0
    %3647 = vadd.xlane.f32.xlu0 %v3646
    %v3648 = vpop.xlane.xlu0 %3647
    %v3649 = vsel %vm666, %v3632, 0.0
    %3650 = vadd.xlane.f32.xlu0 %v3649
    %v3651 = vpop.xlane.xlu0 %3650
    %v3652 = vsel %vm666, %v3634, 0.0
    %3653 = vadd.xlane.f32.xlu0 %v3652
    %v3654 = vpop.xlane.xlu0 %3653
    %v3655 = vsel %vm666, %v3636, 0.0
    %3656 = vadd.xlane.f32.xlu0 %v3655
    %v3657 = vpop.xlane.xlu0 %3656
    %v3658 = vsel %vm666, %v3638, 0.0
    %3659 = vadd.xlane.f32.xlu0 %v3658
    %v3660 = vpop.xlane.xlu0 %3659
    %v3661 = vsel %vm666, %v3640, 0.0
    %3662 = vadd.xlane.f32.xlu0 %v3661
    %v3663 = vpop.xlane.xlu0 %3662
    %v3664 = vsel %vm666, %v3642, 0.0
    %3665 = vadd.xlane.f32.xlu0 %v3664
    %v3666 = vpop.xlane.xlu0 %3665
    %v3667 = vrcp.pop %v3645
    %v3668 = vrcp.pop %v3648
    %v3669 = vrcp.pop %v3651
    %v3670 = vrcp.pop %v3654
    %v3671 = vrcp.pop %v3657
    %v3672 = vrcp.pop %v3660
    %v3673 = vrcp.pop %v3663
    %v3674 = vrcp.pop %v3666
    %v3675 = vmul.f32 %v3628, %v3667
    %v3676 = vmul.f32 %v3630, %v3668
    %v3677 = vmul.f32 %v3632, %v3669
    %v3678 = vmul.f32 %v3634, %v3670
    %v3679 = vmul.f32 %v3636, %v3671
    %v3680 = vmul.f32 %v3638, %v3672
    %v3681 = vmul.f32 %v3640, %v3673
    %v3682 = vmul.f32 %v3642, %v3674
    %3683 = vrot.lane.b32.xlu0 %v2949, 64
    %v3684 = vpop.permute.xlu0 %3683
    %v3687 = vsel %vm666, %v3675, 0
    %3689 = vmatprep.subr.mxu0 0.0
    %3690 = vmatpush1.msra.mxu0 %v3684
    %3691 = vmatprep.subr.mxu0 0.0
    %3692 = vmatpush1.msra.mxu0 0.0
    %3693 = vmatprep.subr.mxu0 0.0
    %3694 = vmatpush1.msra.mxu0 0.0
    %3695 = vmatprep.subr.mxu0 0.0
    %3696 = vmatpush1.msra.mxu0 0.0
    %3697 = vmatprep.subr.mxu0 0.0
    %3698 = vmatpush1.msra.mxu0 0.0
    %3699 = vmatprep.subr.mxu0 0.0
    %3700 = vmatpush1.msra.mxu0 0.0
    %3701 = vmatprep.subr.mxu0 0.0
    %3702 = vmatpush1.msra.mxu0 0.0
    %3703 = vmatprep.subr.mxu0 0.0
    %3704 = vmatpush1.msra.mxu0 0.0
    %3705 = vmatprep.subr.mxu0 0.0
    %3706 = vmatpush1.msra.mxu0 0.0
    %3707 = vmatprep.subr.mxu0 0.0
    %3708 = vmatpush1.msra.mxu0 0.0
    %3709 = vmatprep.subr.mxu0 0.0
    %3710 = vmatpush1.msra.mxu0 0.0
    %3711 = vmatprep.subr.mxu0 0.0
    %3712 = vmatpush1.msra.mxu0 0.0
    %3713 = vmatprep.subr.mxu0 0.0
    %3714 = vmatpush1.msra.mxu0 0.0
    %3715 = vmatprep.subr.mxu0 0.0
    %3716 = vmatpush1.msra.mxu0 0.0
    %3717 = vmatprep.subr.mxu0 0.0
    %3718 = vmatpush1.msra.mxu0 0.0
    %3719 = vmatprep.subr.mxu0 0.0
    %3720 = vmatpush1.msra.mxu0 0.0
    %3721 = vmatprep.subr.mxu0 0.0
    %3722 = vmatpush1.msra.mxu0 0.0
    %3723 = vmatprep.subr.mxu0 0.0
    %3724 = vmatpush1.msra.mxu0 0.0
    %3725 = vmatprep.subr.mxu0 0.0
    %3726 = vmatpush1.msra.mxu0 0.0
    %3727 = vmatprep.subr.mxu0 0.0
    %3728 = vmatpush1.msra.mxu0 0.0
    %3729 = vmatprep.subr.mxu0 0.0
    %3730 = vmatpush1.msra.mxu0 0.0
    %3731 = vmatprep.subr.mxu0 0.0
    %3732 = vmatpush1.msra.mxu0 0.0
    %3733 = vmatprep.subr.mxu0 0.0
    %3734 = vmatpush1.msra.mxu0 0.0
    %3735 = vmatprep.subr.mxu0 0.0
    %3736 = vmatpush1.msra.mxu0 0.0
    %3737 = vmatprep.subr.mxu0 0.0
    %3738 = vmatpush1.msra.mxu0 0.0
    %3739 = vmatprep.subr.mxu0 0.0
    %3740 = vmatpush1.msra.mxu0 0.0
    %3741 = vmatprep.subr.mxu0 0.0
    %3742 = vmatpush1.msra.mxu0 0.0
    %3743 = vmatprep.subr.mxu0 0.0
    %3744 = vmatpush1.msra.mxu0 0.0
    %3745 = vmatprep.subr.mxu0 0.0
    %3746 = vmatpush1.msra.mxu0 0.0
    %3747 = vmatprep.subr.mxu0 0.0
    %3748 = vmatpush1.msra.mxu0 0.0
    %3749 = vmatprep.subr.mxu0 0.0
    %3750 = vmatpush1.msra.mxu0 0.0
    %3751 = vmatprep.subr.mxu0 0.0
    %3752 = vmatpush1.msra.mxu0 0.0
    %3753 = vmatprep.mubr.f32.mxu0 0.0
    %3754 = vmatmul.mubr.f32.gmra.mrb[0].mxu0 %v3687
    %v3755 = vpop.f32.mrb[0].mxu0
    %v3756 = vadd.f32 0.0, %v3755
    %v3757 = vpop.f32.mrb[0].mxu0
    %3758 = vdwg.mxu0
    %3759 = vrot.lane.b32.xlu0 %v2954, 64
    %v3760 = vpop.permute.xlu0 %3759
    %v3763 = vsel %vm666, %v3676, 0
    %3765 = vmatprep.subr.mxu0 0.0
    %3766 = vmatpush1.msra.mxu0 %v3760
    %3767 = vmatprep.subr.mxu0 0.0
    %3768 = vmatpush1.msra.mxu0 0.0
    %3769 = vmatprep.subr.mxu0 0.0
    %3770 = vmatpush1.msra.mxu0 0.0
    %3771 = vmatprep.subr.mxu0 0.0
    %3772 = vmatpush1.msra.mxu0 0.0
    %3773 = vmatprep.subr.mxu0 0.0
    %3774 = vmatpush1.msra.mxu0 0.0
    %3775 = vmatprep.subr.mxu0 0.0
    %3776 = vmatpush1.msra.mxu0 0.0
    %3777 = vmatprep.subr.mxu0 0.0
    %3778 = vmatpush1.msra.mxu0 0.0
    %3779 = vmatprep.subr.mxu0 0.0
    %3780 = vmatpush1.msra.mxu0 0.0
    %3781 = vmatprep.subr.mxu0 0.0
    %3782 = vmatpush1.msra.mxu0 0.0
    %3783 = vmatprep.subr.mxu0 0.0
    %3784 = vmatpush1.msra.mxu0 0.0
    %3785 = vmatprep.subr.mxu0 0.0
    %3786 = vmatpush1.msra.mxu0 0.0
    %3787 = vmatprep.subr.mxu0 0.0
    %3788 = vmatpush1.msra.mxu0 0.0
    %3789 = vmatprep.subr.mxu0 0.0
    %3790 = vmatpush1.msra.mxu0 0.0
    %3791 = vmatprep.subr.mxu0 0.0
    %3792 = vmatpush1.msra.mxu0 0.0
    %3793 = vmatprep.subr.mxu0 0.0
    %3794 = vmatpush1.msra.mxu0 0.0
    %3795 = vmatprep.subr.mxu0 0.0
    %3796 = vmatpush1.msra.mxu0 0.0
    %3797 = vmatprep.subr.mxu0 0.0
    %3798 = vmatpush1.msra.mxu0 0.0
    %3799 = vmatprep.subr.mxu0 0.0
    %3800 = vmatpush1.msra.mxu0 0.0
    %3801 = vmatprep.subr.mxu0 0.0
    %3802 = vmatpush1.msra.mxu0 0.0
    %3803 = vmatprep.subr.mxu0 0.0
    %3804 = vmatpush1.msra.mxu0 0.0
    %3805 = vmatprep.subr.mxu0 0.0
    %3806 = vmatpush1.msra.mxu0 0.0
    %3807 = vmatprep.subr.mxu0 0.0
    %3808 = vmatpush1.msra.mxu0 0.0
    %3809 = vmatprep.subr.mxu0 0.0
    %3810 = vmatpush1.msra.mxu0 0.0
    %3811 = vmatprep.subr.mxu0 0.0
    %3812 = vmatpush1.msra.mxu0 0.0
    %3813 = vmatprep.subr.mxu0 0.0
    %3814 = vmatpush1.msra.mxu0 0.0
    %3815 = vmatprep.subr.mxu0 0.0
    %3816 = vmatpush1.msra.mxu0 0.0
    %3817 = vmatprep.subr.mxu0 0.0
    %3818 = vmatpush1.msra.mxu0 0.0
    %3819 = vmatprep.subr.mxu0 0.0
    %3820 = vmatpush1.msra.mxu0 0.0
    %3821 = vmatprep.subr.mxu0 0.0
    %3822 = vmatpush1.msra.mxu0 0.0
    %3823 = vmatprep.subr.mxu0 0.0
    %3824 = vmatpush1.msra.mxu0 0.0
    %3825 = vmatprep.subr.mxu0 0.0
    %3826 = vmatpush1.msra.mxu0 0.0
    %3827 = vmatprep.subr.mxu0 0.0
    %3828 = vmatpush1.msra.mxu0 0.0
    %3829 = vmatprep.mubr.f32.mxu0 0.0
    %3830 = vmatmul.mubr.f32.gmra.mrb[0].mxu0 %v3763
    %v3831 = vpop.f32.mrb[0].mxu0
    %v3832 = vadd.f32 0.0, %v3831
    %v3833 = vpop.f32.mrb[0].mxu0
    %3834 = vdwg.mxu0
    %3835 = vrot.lane.b32.xlu0 %v2960, 64
    %v3836 = vpop.permute.xlu0 %3835
    %v3839 = vsel %vm666, %v3677, 0
    %3841 = vmatprep.subr.mxu0 0.0
    %3842 = vmatpush1.msra.mxu0 %v3836
    %3843 = vmatprep.subr.mxu0 0.0
    %3844 = vmatpush1.msra.mxu0 0.0
    %3845 = vmatprep.subr.mxu0 0.0
    %3846 = vmatpush1.msra.mxu0 0.0
    %3847 = vmatprep.subr.mxu0 0.0
    %3848 = vmatpush1.msra.mxu0 0.0
    %3849 = vmatprep.subr.mxu0 0.0
    %3850 = vmatpush1.msra.mxu0 0.0
    %3851 = vmatprep.subr.mxu0 0.0
    %3852 = vmatpush1.msra.mxu0 0.0
    %3853 = vmatprep.subr.mxu0 0.0
    %3854 = vmatpush1.msra.mxu0 0.0
    %3855 = vmatprep.subr.mxu0 0.0
    %3856 = vmatpush1.msra.mxu0 0.0
    %3857 = vmatprep.subr.mxu0 0.0
    %3858 = vmatpush1.msra.mxu0 0.0
    %3859 = vmatprep.subr.mxu0 0.0
    %3860 = vmatpush1.msra.mxu0 0.0
    %3861 = vmatprep.subr.mxu0 0.0
    %3862 = vmatpush1.msra.mxu0 0.0
    %3863 = vmatprep.subr.mxu0 0.0
    %3864 = vmatpush1.msra.mxu0 0.0
    %3865 = vmatprep.subr.mxu0 0.0
    %3866 = vmatpush1.msra.mxu0 0.0
    %3867 = vmatprep.subr.mxu0 0.0
    %3868 = vmatpush1.msra.mxu0 0.0
    %3869 = vmatprep.subr.mxu0 0.0
    %3870 = vmatpush1.msra.mxu0 0.0
    %3871 = vmatprep.subr.mxu0 0.0
    %3872 = vmatpush1.msra.mxu0 0.0
    %3873 = vmatprep.subr.mxu0 0.0
    %3874 = vmatpush1.msra.mxu0 0.0
    %3875 = vmatprep.subr.mxu0 0.0
    %3876 = vmatpush1.msra.mxu0 0.0
    %3877 = vmatprep.subr.mxu0 0.0
    %3878 = vmatpush1.msra.mxu0 0.0
    %3879 = vmatprep.subr.mxu0 0.0
    %3880 = vmatpush1.msra.mxu0 0.0
    %3881 = vmatprep.subr.mxu0 0.0
    %3882 = vmatpush1.msra.mxu0 0.0
    %3883 = vmatprep.subr.mxu0 0.0
    %3884 = vmatpush1.msra.mxu0 0.0
    %3885 = vmatprep.subr.mxu0 0.0
    %3886 = vmatpush1.msra.mxu0 0.0
    %3887 = vmatprep.subr.mxu0 0.0
    %3888 = vmatpush1.msra.mxu0 0.0
    %3889 = vmatprep.subr.mxu0 0.0
    %3890 = vmatpush1.msra.mxu0 0.0
    %3891 = vmatprep.subr.mxu0 0.0
    %3892 = vmatpush1.msra.mxu0 0.0
    %3893 = vmatprep.subr.mxu0 0.0
    %3894 = vmatpush1.msra.mxu0 0.0
    %3895 = vmatprep.subr.mxu0 0.0
    %3896 = vmatpush1.msra.mxu0 0.0
    %3897 = vmatprep.subr.mxu0 0.0
    %3898 = vmatpush1.msra.mxu0 0.0
    %3899 = vmatprep.subr.mxu0 0.0
    %3900 = vmatpush1.msra.mxu0 0.0
    %3901 = vmatprep.subr.mxu0 0.0
    %3902 = vmatpush1.msra.mxu0 0.0
    %3903 = vmatprep.subr.mxu0 0.0
    %3904 = vmatpush1.msra.mxu0 0.0
    %3905 = vmatprep.mubr.f32.mxu0 0.0
    %3906 = vmatmul.mubr.f32.gmra.mrb[0].mxu0 %v3839
    %v3907 = vpop.f32.mrb[0].mxu0
    %v3908 = vadd.f32 0.0, %v3907
    %v3909 = vpop.f32.mrb[0].mxu0
    %3910 = vdwg.mxu0
    %3911 = vrot.lane.b32.xlu0 %v2962, 64
    %v3912 = vpop.permute.xlu0 %3911
    %v3915 = vsel %vm666, %v3678, 0
    %3917 = vmatprep.subr.mxu0 0.0
    %3918 = vmatpush1.msra.mxu0 %v3912
    %3919 = vmatprep.subr.mxu0 0.0
    %3920 = vmatpush1.msra.mxu0 0.0
    %3921 = vmatprep.subr.mxu0 0.0
    %3922 = vmatpush1.msra.mxu0 0.0
    %3923 = vmatprep.subr.mxu0 0.0
    %3924 = vmatpush1.msra.mxu0 0.0
    %3925 = vmatprep.subr.mxu0 0.0
    %3926 = vmatpush1.msra.mxu0 0.0
    %3927 = vmatprep.subr.mxu0 0.0
    %3928 = vmatpush1.msra.mxu0 0.0
    %3929 = vmatprep.subr.mxu0 0.0
    %3930 = vmatpush1.msra.mxu0 0.0
    %3931 = vmatprep.subr.mxu0 0.0
    %3932 = vmatpush1.msra.mxu0 0.0
    %3933 = vmatprep.subr.mxu0 0.0
    %3934 = vmatpush1.msra.mxu0 0.0
    %3935 = vmatprep.subr.mxu0 0.0
    %3936 = vmatpush1.msra.mxu0 0.0
    %3937 = vmatprep.subr.mxu0 0.0
    %3938 = vmatpush1.msra.mxu0 0.0
    %3939 = vmatprep.subr.mxu0 0.0
    %3940 = vmatpush1.msra.mxu0 0.0
    %3941 = vmatprep.subr.mxu0 0.0
    %3942 = vmatpush1.msra.mxu0 0.0
    %3943 = vmatprep.subr.mxu0 0.0
    %3944 = vmatpush1.msra.mxu0 0.0
    %3945 = vmatprep.subr.mxu0 0.0
    %3946 = vmatpush1.msra.mxu0 0.0
    %3947 = vmatprep.subr.mxu0 0.0
    %3948 = vmatpush1.msra.mxu0 0.0
    %3949 = vmatprep.subr.mxu0 0.0
    %3950 = vmatpush1.msra.mxu0 0.0
    %3951 = vmatprep.subr.mxu0 0.0
    %3952 = vmatpush1.msra.mxu0 0.0
    %3953 = vmatprep.subr.mxu0 0.0
    %3954 = vmatpush1.msra.mxu0 0.0
    %3955 = vmatprep.subr.mxu0 0.0
    %3956 = vmatpush1.msra.mxu0 0.0
    %3957 = vmatprep.subr.mxu0 0.0
    %3958 = vmatpush1.msra.mxu0 0.0
    %3959 = vmatprep.subr.mxu0 0.0
    %3960 = vmatpush1.msra.mxu0 0.0
    %3961 = vmatprep.subr.mxu0 0.0
    %3962 = vmatpush1.msra.mxu0 0.0
    %3963 = vmatprep.subr.mxu0 0.0
    %3964 = vmatpush1.msra.mxu0 0.0
    %3965 = vmatprep.subr.mxu0 0.0
    %3966 = vmatpush1.msra.mxu0 0.0
    %3967 = vmatprep.subr.mxu0 0.0
    %3968 = vmatpush1.msra.mxu0 0.0
    %3969 = vmatprep.subr.mxu0 0.0
    %3970 = vmatpush1.msra.mxu0 0.0
    %3971 = vmatprep.subr.mxu0 0.0
    %3972 = vmatpush1.msra.mxu0 0.0
    %3973 = vmatprep.subr.mxu0 0.0
    %3974 = vmatpush1.msra.mxu0 0.0
    %3975 = vmatprep.subr.mxu0 0.0
    %3976 = vmatpush1.msra.mxu0 0.0
    %3977 = vmatprep.subr.mxu0 0.0
    %3978 = vmatpush1.msra.mxu0 0.0
    %3979 = vmatprep.subr.mxu0 0.0
    %3980 = vmatpush1.msra.mxu0 0.0
    %3981 = vmatprep.mubr.f32.mxu0 0.0
    %3982 = vmatmul.mubr.f32.gmra.mrb[0].mxu0 %v3915
    %v3983 = vpop.f32.mrb[0].mxu0
    %v3984 = vadd.f32 0.0, %v3983
    %v3985 = vpop.f32.mrb[0].mxu0
    %3986 = vdwg.mxu0
    %3987 = vrot.lane.b32.xlu0 %v2964, 64
    %v3988 = vpop.permute.xlu0 %3987
    %v3991 = vsel %vm666, %v3679, 0
    %3993 = vmatprep.subr.mxu0 0.0
    %3994 = vmatpush1.msra.mxu0 %v3988
    %3995 = vmatprep.subr.mxu0 0.0
    %3996 = vmatpush1.msra.mxu0 0.0
    %3997 = vmatprep.subr.mxu0 0.0
    %3998 = vmatpush1.msra.mxu0 0.0
    %3999 = vmatprep.subr.mxu0 0.0
    %4000 = vmatpush1.msra.mxu0 0.0
    %4001 = vmatprep.subr.mxu0 0.0
    %4002 = vmatpush1.msra.mxu0 0.0
    %4003 = vmatprep.subr.mxu0 0.0
    %4004 = vmatpush1.msra.mxu0 0.0
    %4005 = vmatprep.subr.mxu0 0.0
    %4006 = vmatpush1.msra.mxu0 0.0
    %4007 = vmatprep.subr.mxu0 0.0
    %4008 = vmatpush1.msra.mxu0 0.0
    %4009 = vmatprep.subr.mxu0 0.0
    %4010 = vmatpush1.msra.mxu0 0.0
    %4011 = vmatprep.subr.mxu0 0.0
    %4012 = vmatpush1.msra.mxu0 0.0
    %4013 = vmatprep.subr.mxu0 0.0
    %4014 = vmatpush1.msra.mxu0 0.0
    %4015 = vmatprep.subr.mxu0 0.0
    %4016 = vmatpush1.msra.mxu0 0.0
    %4017 = vmatprep.subr.mxu0 0.0
    %4018 = vmatpush1.msra.mxu0 0.0
    %4019 = vmatprep.subr.mxu0 0.0
    %4020 = vmatpush1.msra.mxu0 0.0
    %4021 = vmatprep.subr.mxu0 0.0
    %4022 = vmatpush1.msra.mxu0 0.0
    %4023 = vmatprep.subr.mxu0 0.0
    %4024 = vmatpush1.msra.mxu0 0.0
    %4025 = vmatprep.subr.mxu0 0.0
    %4026 = vmatpush1.msra.mxu0 0.0
    %4027 = vmatprep.subr.mxu0 0.0
    %4028 = vmatpush1.msra.mxu0 0.0
    %4029 = vmatprep.subr.mxu0 0.0
    %4030 = vmatpush1.msra.mxu0 0.0
    %4031 = vmatprep.subr.mxu0 0.0
    %4032 = vmatpush1.msra.mxu0 0.0
    %4033 = vmatprep.subr.mxu0 0.0
    %4034 = vmatpush1.msra.mxu0 0.0
    %4035 = vmatprep.subr.mxu0 0.0
    %4036 = vmatpush1.msra.mxu0 0.0
    %4037 = vmatprep.subr.mxu0 0.0
    %4038 = vmatpush1.msra.mxu0 0.0
    %4039 = vmatprep.subr.mxu0 0.0
    %4040 = vmatpush1.msra.mxu0 0.0
    %4041 = vmatprep.subr.mxu0 0.0
    %4042 = vmatpush1.msra.mxu0 0.0
    %4043 = vmatprep.subr.mxu0 0.0
    %4044 = vmatpush1.msra.mxu0 0.0
    %4045 = vmatprep.subr.mxu0 0.0
    %4046 = vmatpush1.msra.mxu0 0.0
    %4047 = vmatprep.subr.mxu0 0.0
    %4048 = vmatpush1.msra.mxu0 0.0
    %4049 = vmatprep.subr.mxu0 0.0
    %4050 = vmatpush1.msra.mxu0 0.0
    %4051 = vmatprep.subr.mxu0 0.0
    %4052 = vmatpush1.msra.mxu0 0.0
    %4053 = vmatprep.subr.mxu0 0.0
    %4054 = vmatpush1.msra.mxu0 0.0
    %4055 = vmatprep.subr.mxu0 0.0
    %4056 = vmatpush1.msra.mxu0 0.0
    %4057 = vmatprep.mubr.f32.mxu0 0.0
    %4058 = vmatmul.mubr.f32.gmra.mrb[0].mxu0 %v3991
    %v4059 = vpop.f32.mrb[0].mxu0
    %v4060 = vadd.f32 0.0, %v4059
    %v4061 = vpop.f32.mrb[0].mxu0
    %4062 = vdwg.mxu0
    %4063 = vrot.lane.b32.xlu0 %v2966, 64
    %v4064 = vpop.permute.xlu0 %4063
    %v4067 = vsel %vm666, %v3680, 0
    %4069 = vmatprep.subr.mxu0 0.0
    %4070 = vmatpush1.msra.mxu0 %v4064
    %4071 = vmatprep.subr.mxu0 0.0
    %4072 = vmatpush1.msra.mxu0 0.0
    %4073 = vmatprep.subr.mxu0 0.0
    %4074 = vmatpush1.msra.mxu0 0.0
    %4075 = vmatprep.subr.mxu0 0.0
    %4076 = vmatpush1.msra.mxu0 0.0
    %4077 = vmatprep.subr.mxu0 0.0
    %4078 = vmatpush1.msra.mxu0 0.0
    %4079 = vmatprep.subr.mxu0 0.0
    %4080 = vmatpush1.msra.mxu0 0.0
    %4081 = vmatprep.subr.mxu0 0.0
    %4082 = vmatpush1.msra.mxu0 0.0
    %4083 = vmatprep.subr.mxu0 0.0
    %4084 = vmatpush1.msra.mxu0 0.0
    %4085 = vmatprep.subr.mxu0 0.0
    %4086 = vmatpush1.msra.mxu0 0.0
    %4087 = vmatprep.subr.mxu0 0.0
    %4088 = vmatpush1.msra.mxu0 0.0
    %4089 = vmatprep.subr.mxu0 0.0
    %4090 = vmatpush1.msra.mxu0 0.0
    %4091 = vmatprep.subr.mxu0 0.0
    %4092 = vmatpush1.msra.mxu0 0.0
    %4093 = vmatprep.subr.mxu0 0.0
    %4094 = vmatpush1.msra.mxu0 0.0
    %4095 = vmatprep.subr.mxu0 0.0
    %4096 = vmatpush1.msra.mxu0 0.0
    %4097 = vmatprep.subr.mxu0 0.0
    %4098 = vmatpush1.msra.mxu0 0.0
    %4099 = vmatprep.subr.mxu0 0.0
    %4100 = vmatpush1.msra.mxu0 0.0
    %4101 = vmatprep.subr.mxu0 0.0
    %4102 = vmatpush1.msra.mxu0 0.0
    %4103 = vmatprep.subr.mxu0 0.0
    %4104 = vmatpush1.msra.mxu0 0.0
    %4105 = vmatprep.subr.mxu0 0.0
    %4106 = vmatpush1.msra.mxu0 0.0
    %4107 = vmatprep.subr.mxu0 0.0
    %4108 = vmatpush1.msra.mxu0 0.0
    %4109 = vmatprep.subr.mxu0 0.0
    %4110 = vmatpush1.msra.mxu0 0.0
    %4111 = vmatprep.subr.mxu0 0.0
    %4112 = vmatpush1.msra.mxu0 0.0
    %4113 = vmatprep.subr.mxu0 0.0
    %4114 = vmatpush1.msra.mxu0 0.0
    %4115 = vmatprep.subr.mxu0 0.0
    %4116 = vmatpush1.msra.mxu0 0.0
    %4117 = vmatprep.subr.mxu0 0.0
    %4118 = vmatpush1.msra.mxu0 0.0
    %4119 = vmatprep.subr.mxu0 0.0
    %4120 = vmatpush1.msra.mxu0 0.0
    %4121 = vmatprep.subr.mxu0 0.0
    %4122 = vmatpush1.msra.mxu0 0.0
    %4123 = vmatprep.subr.mxu0 0.0
    %4124 = vmatpush1.msra.mxu0 0.0
    %4125 = vmatprep.subr.mxu0 0.0
    %4126 = vmatpush1.msra.mxu0 0.0
    %4127 = vmatprep.subr.mxu0 0.0
    %4128 = vmatpush1.msra.mxu0 0.0
    %4129 = vmatprep.subr.mxu0 0.0
    %4130 = vmatpush1.msra.mxu0 0.0
    %4131 = vmatprep.subr.mxu0 0.0
    %4132 = vmatpush1.msra.mxu0 0.0
    %4133 = vmatprep.mubr.f32.mxu0 0.0
    %4134 = vmatmul.mubr.f32.gmra.mrb[0].mxu0 %v4067
    %v4135 = vpop.f32.mrb[0].mxu0
    %v4136 = vadd.f32 0.0, %v4135
    %v4137 = vpop.f32.mrb[0].mxu0
    %4138 = vdwg.mxu0
    %4139 = vrot.lane.b32.xlu0 %v2968, 64
    %v4140 = vpop.permute.xlu0 %4139
    %v4143 = vsel %vm666, %v3681, 0
    %4145 = vmatprep.subr.mxu0 0.0
    %4146 = vmatpush1.msra.mxu0 %v4140
    %4147 = vmatprep.subr.mxu0 0.0
    %4148 = vmatpush1.msra.mxu0 0.0
    %4149 = vmatprep.subr.mxu0 0.0
    %4150 = vmatpush1.msra.mxu0 0.0
    %4151 = vmatprep.subr.mxu0 0.0
    %4152 = vmatpush1.msra.mxu0 0.0
    %4153 = vmatprep.subr.mxu0 0.0
    %4154 = vmatpush1.msra.mxu0 0.0
    %4155 = vmatprep.subr.mxu0 0.0
    %4156 = vmatpush1.msra.mxu0 0.0
    %4157 = vmatprep.subr.mxu0 0.0
    %4158 = vmatpush1.msra.mxu0 0.0
    %4159 = vmatprep.subr.mxu0 0.0
    %4160 = vmatpush1.msra.mxu0 0.0
    %4161 = vmatprep.subr.mxu0 0.0
    %4162 = vmatpush1.msra.mxu0 0.0
    %4163 = vmatprep.subr.mxu0 0.0
    %4164 = vmatpush1.msra.mxu0 0.0
    %4165 = vmatprep.subr.mxu0 0.0
    %4166 = vmatpush1.msra.mxu0 0.0
    %4167 = vmatprep.subr.mxu0 0.0
    %4168 = vmatpush1.msra.mxu0 0.0
    %4169 = vmatprep.subr.mxu0 0.0
    %4170 = vmatpush1.msra.mxu0 0.0
    %4171 = vmatprep.subr.mxu0 0.0
    %4172 = vmatpush1.msra.mxu0 0.0
    %4173 = vmatprep.subr.mxu0 0.0
    %4174 = vmatpush1.msra.mxu0 0.0
    %4175 = vmatprep.subr.mxu0 0.0
    %4176 = vmatpush1.msra.mxu0 0.0
    %4177 = vmatprep.subr.mxu0 0.0
    %4178 = vmatpush1.msra.mxu0 0.0
    %4179 = vmatprep.subr.mxu0 0.0
    %4180 = vmatpush1.msra.mxu0 0.0
    %4181 = vmatprep.subr.mxu0 0.0
    %4182 = vmatpush1.msra.mxu0 0.0
    %4183 = vmatprep.subr.mxu0 0.0
    %4184 = vmatpush1.msra.mxu0 0.0
    %4185 = vmatprep.subr.mxu0 0.0
    %4186 = vmatpush1.msra.mxu0 0.0
    %4187 = vmatprep.subr.mxu0 0.0
    %4188 = vmatpush1.msra.mxu0 0.0
    %4189 = vmatprep.subr.mxu0 0.0
    %4190 = vmatpush1.msra.mxu0 0.0
    %4191 = vmatprep.subr.mxu0 0.0
    %4192 = vmatpush1.msra.mxu0 0.0
    %4193 = vmatprep.subr.mxu0 0.0
    %4194 = vmatpush1.msra.mxu0 0.0
    %4195 = vmatprep.subr.mxu0 0.0
    %4196 = vmatpush1.msra.mxu0 0.0
    %4197 = vmatprep.subr.mxu0 0.0
    %4198 = vmatpush1.msra.mxu0 0.0
    %4199 = vmatprep.subr.mxu0 0.0
    %4200 = vmatpush1.msra.mxu0 0.0
    %4201 = vmatprep.subr.mxu0 0.0
    %4202 = vmatpush1.msra.mxu0 0.0
    %4203 = vmatprep.subr.mxu0 0.0
    %4204 = vmatpush1.msra.mxu0 0.0
    %4205 = vmatprep.subr.mxu0 0.0
    %4206 = vmatpush1.msra.mxu0 0.0
    %4207 = vmatprep.subr.mxu0 0.0
    %4208 = vmatpush1.msra.mxu0 0.0
    %4209 = vmatprep.mubr.f32.mxu0 0.0
    %4210 = vmatmul.mubr.f32.gmra.mrb[0].mxu0 %v4143
    %v4211 = vpop.f32.mrb[0].mxu0
    %v4212 = vadd.f32 0.0, %v4211
    %v4213 = vpop.f32.mrb[0].mxu0
    %4214 = vdwg.mxu0
    %4215 = vrot.lane.b32.xlu0 %v2970, 64
    %v4216 = vpop.permute.xlu0 %4215
    %v4219 = vsel %vm666, %v3682, 0
    %4221 = vmatprep.subr.mxu0 0.0
    %4222 = vmatpush1.msra.mxu0 %v4216
    %4223 = vmatprep.subr.mxu0 0.0
    %4224 = vmatpush1.msra.mxu0 0.0
    %4225 = vmatprep.subr.mxu0 0.0
    %4226 = vmatpush1.msra.mxu0 0.0
    %4227 = vmatprep.subr.mxu0 0.0
    %4228 = vmatpush1.msra.mxu0 0.0
    %4229 = vmatprep.subr.mxu0 0.0
    %4230 = vmatpush1.msra.mxu0 0.0
    %4231 = vmatprep.subr.mxu0 0.0
    %4232 = vmatpush1.msra.mxu0 0.0
    %4233 = vmatprep.subr.mxu0 0.0
    %4234 = vmatpush1.msra.mxu0 0.0
    %4235 = vmatprep.subr.mxu0 0.0
    %4236 = vmatpush1.msra.mxu0 0.0
    %4237 = vmatprep.subr.mxu0 0.0
    %4238 = vmatpush1.msra.mxu0 0.0
    %4239 = vmatprep.subr.mxu0 0.0
    %4240 = vmatpush1.msra.mxu0 0.0
    %4241 = vmatprep.subr.mxu0 0.0
    %4242 = vmatpush1.msra.mxu0 0.0
    %4243 = vmatprep.subr.mxu0 0.0
    %4244 = vmatpush1.msra.mxu0 0.0
    %4245 = vmatprep.subr.mxu0 0.0
    %4246 = vmatpush1.msra.mxu0 0.0
    %4247 = vmatprep.subr.mxu0 0.0
    %4248 = vmatpush1.msra.mxu0 0.0
    %4249 = vmatprep.subr.mxu0 0.0
    %4250 = vmatpush1.msra.mxu0 0.0
    %4251 = vmatprep.subr.mxu0 0.0
    %4252 = vmatpush1.msra.mxu0 0.0
    %4253 = vmatprep.subr.mxu0 0.0
    %4254 = vmatpush1.msra.mxu0 0.0
    %4255 = vmatprep.subr.mxu0 0.0
    %4256 = vmatpush1.msra.mxu0 0.0
    %4257 = vmatprep.subr.mxu0 0.0
    %4258 = vmatpush1.msra.mxu0 0.0
    %4259 = vmatprep.subr.mxu0 0.0
    %4260 = vmatpush1.msra.mxu0 0.0
    %4261 = vmatprep.subr.mxu0 0.0
    %4262 = vmatpush1.msra.mxu0 0.0
    %4263 = vmatprep.subr.mxu0 0.0
    %4264 = vmatpush1.msra.mxu0 0.0
    %4265 = vmatprep.subr.mxu0 0.0
    %4266 = vmatpush1.msra.mxu0 0.0
    %4267 = vmatprep.subr.mxu0 0.0
    %4268 = vmatpush1.msra.mxu0 0.0
    %4269 = vmatprep.subr.mxu0 0.0
    %4270 = vmatpush1.msra.mxu0 0.0
    %4271 = vmatprep.subr.mxu0 0.0
    %4272 = vmatpush1.msra.mxu0 0.0
    %4273 = vmatprep.subr.mxu0 0.0
    %4274 = vmatpush1.msra.mxu0 0.0
    %4275 = vmatprep.subr.mxu0 0.0
    %4276 = vmatpush1.msra.mxu0 0.0
    %4277 = vmatprep.subr.mxu0 0.0
    %4278 = vmatpush1.msra.mxu0 0.0
    %4279 = vmatprep.subr.mxu0 0.0
    %4280 = vmatpush1.msra.mxu0 0.0
    %4281 = vmatprep.subr.mxu0 0.0
    %4282 = vmatpush1.msra.mxu0 0.0
    %4283 = vmatprep.subr.mxu0 0.0
    %4284 = vmatpush1.msra.mxu0 0.0
    %4285 = vmatprep.mubr.f32.mxu0 0.0
    %4286 = vmatmul.mubr.f32.gmra.mrb[0].mxu0 %v4219
    %v4287 = vpop.f32.mrb[0].mxu0
    %v4288 = vadd.f32 0.0, %v4287
    %v4289 = vpop.f32.mrb[0].mxu0
    %4290 = vdwg.mxu0
    %4293 = vrot.lane.b32.xlu0 %v3908, 8
    %v4294 = vpop.permute.xlu0 %4293
    %4295 = vrot.lane.b32.xlu0 %v3984, 8
    %v4296 = vpop.permute.xlu0 %4295
    %4301 = vrot.lane.b32.xlu0 %v4060, 16
    %v4302 = vpop.permute.xlu0 %4301
    %4303 = vrot.lane.b32.xlu0 %v4136, 16
    %v4304 = vpop.permute.xlu0 %4303
    %4309 = vrot.lane.b32.xlu0 %v4212, 24
    %v4310 = vpop.permute.xlu0 %4309
    %4311 = vrot.lane.b32.xlu0 %v4288, 24
    %v4312 = vpop.permute.xlu0 %4311
    %v4315 = vsel %vm666, %v3756, %v4294
    %v4316 = vsel %vm666, %v3832, %v4296
    %v4317 = vsel %vm2013, %v4315, %v4302
    %v4318 = vsel %vm2013, %v4316, %v4304
    %v4319 = vsel %vm2016, %v4317, %v4310
    %v4320 = vsel %vm2016, %v4318, %v4312
    %v4322 = vsel %vm171, %v4319, 0
    %v4325 = vsel %vm171, %v4320, 0
    %4327 = vmatprep.subr.mxu0 0.0
    %4328 = vmatpush1.msra.mxu0 %v2731
    %4329 = vmatprep.subr.mxu0 0.0
    %4330 = vmatpush1.msra.mxu0 %v2732
    %4331 = vmatprep.subr.mxu0 0.0
    %4332 = vmatpush1.msra.mxu0 %v2733
    %4333 = vmatprep.subr.mxu0 0.0
    %4334 = vmatpush1.msra.mxu0 %v2734
    %4335 = vmatprep.subr.mxu0 0.0
    %4336 = vmatpush1.msra.mxu0 0.0
    %4337 = vmatprep.subr.mxu0 0.0
    %4338 = vmatpush1.msra.mxu0 0.0
    %4339 = vmatprep.subr.mxu0 0.0
    %4340 = vmatpush1.msra.mxu0 0.0
    %4341 = vmatprep.subr.mxu0 0.0
    %4342 = vmatpush1.msra.mxu0 0.0
    %4343 = vmatprep.subr.mxu0 0.0
    %4344 = vmatpush1.msra.mxu0 0.0
    %4345 = vmatprep.subr.mxu0 0.0
    %4346 = vmatpush1.msra.mxu0 0.0
    %4347 = vmatprep.subr.mxu0 0.0
    %4348 = vmatpush1.msra.mxu0 0.0
    %4349 = vmatprep.subr.mxu0 0.0
    %4350 = vmatpush1.msra.mxu0 0.0
    %4351 = vmatprep.subr.mxu0 0.0
    %4352 = vmatpush1.msra.mxu0 0.0
    %4353 = vmatprep.subr.mxu0 0.0
    %4354 = vmatpush1.msra.mxu0 0.0
    %4355 = vmatprep.subr.mxu0 0.0
    %4356 = vmatpush1.msra.mxu0 0.0
    %4357 = vmatprep.subr.mxu0 0.0
    %4358 = vmatpush1.msra.mxu0 0.0
    %4359 = vmatprep.subr.mxu0 0.0
    %4360 = vmatpush1.msra.mxu0 0.0
    %4361 = vmatprep.subr.mxu0 0.0
    %4362 = vmatpush1.msra.mxu0 0.0
    %4363 = vmatprep.subr.mxu0 0.0
    %4364 = vmatpush1.msra.mxu0 0.0
    %4365 = vmatprep.subr.mxu0 0.0
    %4366 = vmatpush1.msra.mxu0 0.0
    %4367 = vmatprep.subr.mxu0 0.0
    %4368 = vmatpush1.msra.mxu0 0.0
    %4369 = vmatprep.subr.mxu0 0.0
    %4370 = vmatpush1.msra.mxu0 0.0
    %4371 = vmatprep.subr.mxu0 0.0
    %4372 = vmatpush1.msra.mxu0 0.0
    %4373 = vmatprep.subr.mxu0 0.0
    %4374 = vmatpush1.msra.mxu0 0.0
    %4375 = vmatprep.subr.mxu0 0.0
    %4376 = vmatpush1.msra.mxu0 0.0
    %4377 = vmatprep.subr.mxu0 0.0
    %4378 = vmatpush1.msra.mxu0 0.0
    %4379 = vmatprep.subr.mxu0 0.0
    %4380 = vmatpush1.msra.mxu0 0.0
    %4381 = vmatprep.subr.mxu0 0.0
    %4382 = vmatpush1.msra.mxu0 0.0
    %4383 = vmatprep.subr.mxu0 0.0
    %4384 = vmatpush1.msra.mxu0 0.0
    %4385 = vmatprep.subr.mxu0 0.0
    %4386 = vmatpush1.msra.mxu0 0.0
    %4387 = vmatprep.subr.mxu0 0.0
    %4388 = vmatpush1.msra.mxu0 0.0
    %4389 = vmatprep.subr.mxu0 0.0
    %4390 = vmatpush1.msra.mxu0 0.0
    %4391 = vmatprep.mubr.f32.mxu0 0.0
    %4392 = vmatmul.mubr.f32.gmra.mrb[0].mxu0 %v4322
    %v4393 = vpop.f32.mrb[0].mxu0
    %v4394 = vadd.f32 0.0, %v4393
    %v4395 = vpop.f32.mrb[0].mxu0
    %4396 = vmatprep.mubr.f32.mxu0 0.0
    %4397 = vmatmul.mubr.f32.gmra.mrb[0].mxu0 %v4325
    %v4398 = vpop.f32.mrb[0].mxu0
    %v4399 = vadd.f32 0.0, %v4398
    %v4400 = vpop.f32.mrb[0].mxu0
    %4401 = vdwg.mxu0
    %v4402 = vadd.f32 %v2484, %v4394
    %v4403 = vadd.f32 %v2489, %v4399
    %v4404 = vlaneseq
    %v4405 = vshrl.u32 %v4404, 7
    %v4406 = vsub.s32 2, %v4405
    %v4407 = vrot.slane %v2839, %v4406
    %v4408 = vadd.f32 %v4402, %v4407
    %v4409 = vadd.f32 %v4403, %v4407
    %v4410 = vsel %vm171, %v4408, 0.0
    %4411 = vadd.xlane.f32.xlu0 %v4410
    %v4412 = vpop.xlane.xlu0 %4411
    %v4413 = vsel %vm171, %v4409, 0.0
    %4414 = vadd.xlane.f32.xlu0 %v4413
    %v4415 = vpop.xlane.xlu0 %4414
    %v4416 = vmul.f32 %v4412, %v536
    %v4417 = vmul.f32 %v4415, %v536
    %v4418 = vsub.f32 %v4408, %v4416
    %v4419 = vsub.f32 %v4409, %v4417
    %v4420 = vmul.f32 %v4418, %v4418
    %v4421 = vmul.f32 %v4419, %v4419
    %v4422 = vsel %vm171, %v4420, 0.0
    %4423 = vadd.xlane.f32.xlu0 %v4422
    %v4424 = vpop.xlane.xlu0 %4423
    %v4425 = vsel %vm171, %v4421, 0.0
    %4426 = vadd.xlane.f32.xlu0 %v4425
    %v4427 = vpop.xlane.xlu0 %4426
    %v4428 = vmul.f32 %v4424, %v536
    %v4429 = vmul.f32 %v4427, %v536
    %v4430 = vadd.f32 %v4428, 1e-05
    %v4431 = vadd.f32 %v4429, 1e-05
    %v4432 = vrsqrt.pop %v4430
    %v4433 = vrsqrt.pop %v4431
    %v4434 = vmul.f32 %v4418, %v4432
    %v4435 = vmul.f32 %v4419, %v4433
    %v4436 = vlaneseq
    %v4437 = vshrl.u32 %v4436, 7
    %v4438 = vsub.s32 3, %v4437
    %v4439 = vrot.slane %v2839, %v4438
    %v4440 = vmul.f32 %v4434, %v4439
    %v4441 = vmul.f32 %v4435, %v4439
    %v4442 = vlaneseq
    %v4443 = vshrl.u32 %v4442, 7
    %v4444 = vsub.s32 4, %v4443
    %v4445 = vrot.slane %v2839, %v4444
    %v4446 = vadd.f32 %v4440, %v4445
    %v4447 = vadd.f32 %v4441, %v4445
    %v4448 = vlaneseq
    %v4449 = vshrl.u32 %v4448, 7
    %v4450 = vsub.s32 6, %v4449
    %v4451 = vrot.slane %v2839, %v4450
    %v4453 = vsel %vm171, %v4446, 0
    %v4456 = vsel %vm171, %v4447, 0
    %4458 = vmatprep.subr.mxu0 0.0
    %4459 = vmatpush1.msra.mxu0 %v2751
    %4460 = vmatprep.subr.mxu0 0.0
    %4461 = vmatpush1.msra.mxu0 %v2752
    %4462 = vmatprep.subr.mxu0 0.0
    %4463 = vmatpush1.msra.mxu0 %v2753
    %4464 = vmatprep.subr.mxu0 0.0
    %4465 = vmatpush1.msra.mxu0 %v2754
    %4466 = vmatprep.subr.mxu0 0.0
    %4467 = vmatpush1.msra.mxu0 0.0
    %4468 = vmatprep.subr.mxu0 0.0
    %4469 = vmatpush1.msra.mxu0 0.0
    %4470 = vmatprep.subr.mxu0 0.0
    %4471 = vmatpush1.msra.mxu0 0.0
    %4472 = vmatprep.subr.mxu0 0.0
    %4473 = vmatpush1.msra.mxu0 0.0
    %4474 = vmatprep.subr.mxu0 0.0
    %4475 = vmatpush1.msra.mxu0 0.0
    %4476 = vmatprep.subr.mxu0 0.0
    %4477 = vmatpush1.msra.mxu0 0.0
    %4478 = vmatprep.subr.mxu0 0.0
    %4479 = vmatpush1.msra.mxu0 0.0
    %4480 = vmatprep.subr.mxu0 0.0
    %4481 = vmatpush1.msra.mxu0 0.0
    %4482 = vmatprep.subr.mxu0 0.0
    %4483 = vmatpush1.msra.mxu0 0.0
    %4484 = vmatprep.subr.mxu0 0.0
    %4485 = vmatpush1.msra.mxu0 0.0
    %4486 = vmatprep.subr.mxu0 0.0
    %4487 = vmatpush1.msra.mxu0 0.0
    %4488 = vmatprep.subr.mxu0 0.0
    %4489 = vmatpush1.msra.mxu0 0.0
    %4490 = vmatprep.subr.mxu0 0.0
    %4491 = vmatpush1.msra.mxu0 0.0
    %4492 = vmatprep.subr.mxu0 0.0
    %4493 = vmatpush1.msra.mxu0 0.0
    %4494 = vmatprep.subr.mxu0 0.0
    %4495 = vmatpush1.msra.mxu0 0.0
    %4496 = vmatprep.subr.mxu0 0.0
    %4497 = vmatpush1.msra.mxu0 0.0
    %4498 = vmatprep.subr.mxu0 0.0
    %4499 = vmatpush1.msra.mxu0 0.0
    %4500 = vmatprep.subr.mxu0 0.0
    %4501 = vmatpush1.msra.mxu0 0.0
    %4502 = vmatprep.subr.mxu0 0.0
    %4503 = vmatpush1.msra.mxu0 0.0
    %4504 = vmatprep.subr.mxu0 0.0
    %4505 = vmatpush1.msra.mxu0 0.0
    %4506 = vmatprep.subr.mxu0 0.0
    %4507 = vmatpush1.msra.mxu0 0.0
    %4508 = vmatprep.subr.mxu0 0.0
    %4509 = vmatpush1.msra.mxu0 0.0
    %4510 = vmatprep.subr.mxu0 0.0
    %4511 = vmatpush1.msra.mxu0 0.0
    %4512 = vmatprep.subr.mxu0 0.0
    %4513 = vmatpush1.msra.mxu0 0.0
    %4514 = vmatprep.subr.mxu0 0.0
    %4515 = vmatpush1.msra.mxu0 0.0
    %4516 = vmatprep.subr.mxu0 0.0
    %4517 = vmatpush1.msra.mxu0 0.0
    %4518 = vmatprep.subr.mxu0 0.0
    %4519 = vmatpush1.msra.mxu0 0.0
    %4520 = vmatprep.subr.mxu0 0.0
    %4521 = vmatpush1.msra.mxu0 0.0
    %4522 = vmatprep.mubr.f32.mxu0 0.0
    %4523 = vmatmul.mubr.f32.gmra.mrb[0].mxu0 %v4453
    %v4524 = vpop.f32.mrb[0].mxu0
    %v4525 = vadd.f32 %v4451, %v4524
    %v4526 = vpop.f32.mrb[0].mxu0
    %4527 = vmatprep.mubr.f32.mxu0 0.0
    %4528 = vmatmul.mubr.f32.gmra.mrb[0].mxu0 %v4456
    %v4529 = vpop.f32.mrb[0].mxu0
    %v4530 = vadd.f32 %v4451, %v4529
    %v4531 = vpop.f32.mrb[0].mxu0
    %4532 = vdwg.mxu0
    %v4533 = vmul.f32 %v4525, 0.5
    %v4534 = vmul.f32 %v4530, 0.5
    %v4535 = vmul.f32 %v4525, %v4525
    %v4536 = vmul.f32 %v4530, %v4530
    %v4537 = vmul.f32 %v4525, %v4535
    %v4538 = vmul.f32 %v4530, %v4536
    %v4539 = vmul.f32 %v4537, 0.044715
    %v4540 = vmul.f32 %v4538, 0.044715
    %v4541 = vadd.f32 %v4525, %v4539
    %v4542 = vadd.f32 %v4530, %v4540
    %v4543 = vmul.f32 %v4541, 0.7978846
    %v4544 = vmul.f32 %v4542, 0.7978846
    %v4545 = vtanh.pop %v4543
    %v4546 = vtanh.pop %v4544
    %v4547 = vadd.f32 %v4545, 1.0
    %v4548 = vadd.f32 %v4546, 1.0
    %v4549 = vmul.f32 %v4533, %v4547
    %v4550 = vmul.f32 %v4534, %v4548
    %v4551 = vlaneseq
    %v4552 = vshrl.u32 %v4551, 7
    %v4553 = vsub.s32 5, %v4552
    %v4554 = vrot.slane %v2839, %v4553
    %4555 = vmatprep.subr.mxu0 0.0
    %4556 = vmatpush1.msra.mxu0 %v2819
    %4557 = vmatprep.subr.mxu0 0.0
    %4558 = vmatpush1.msra.mxu0 %v2820
    %4559 = vmatprep.subr.mxu0 0.0
    %4560 = vmatpush1.msra.mxu0 %v2821
    %4561 = vmatprep.subr.mxu0 0.0
    %4562 = vmatpush1.msra.mxu0 %v2822
    %4563 = vmatprep.subr.mxu0 0.0
    %4564 = vmatpush1.msra.mxu0 %v2823
    %4565 = vmatprep.subr.mxu0 0.0
    %4566 = vmatpush1.msra.mxu0 %v2824
    %4567 = vmatprep.subr.mxu0 0.0
    %4568 = vmatpush1.msra.mxu0 %v2825
    %4569 = vmatprep.subr.mxu0 0.0
    %4570 = vmatpush1.msra.mxu0 %v2826
    %4571 = vmatprep.subr.mxu0 0.0
    %4572 = vmatpush1.msra.mxu0 %v2827
    %4573 = vmatprep.subr.mxu0 0.0
    %4574 = vmatpush1.msra.mxu0 %v2828
    %4575 = vmatprep.subr.mxu0 0.0
    %4576 = vmatpush1.msra.mxu0 %v2829
    %4577 = vmatprep.subr.mxu0 0.0
    %4578 = vmatpush1.msra.mxu0 %v2830
    %4579 = vmatprep.subr.mxu0 0.0
    %4580 = vmatpush1.msra.mxu0 %v2831
    %4581 = vmatprep.subr.mxu0 0.0
    %4582 = vmatpush1.msra.mxu0 %v2832
    %4583 = vmatprep.subr.mxu0 0.0
    %4584 = vmatpush1.msra.mxu0 %v2833
    %4585 = vmatprep.subr.mxu0 0.0
    %4586 = vmatpush1.msra.mxu0 %v2834
    %4587 = vmatprep.subr.mxu0 0.0
    %4588 = vmatpush1.msra.mxu0 0.0
    %4589 = vmatprep.subr.mxu0 0.0
    %4590 = vmatpush1.msra.mxu0 0.0
    %4591 = vmatprep.subr.mxu0 0.0
    %4592 = vmatpush1.msra.mxu0 0.0
    %4593 = vmatprep.subr.mxu0 0.0
    %4594 = vmatpush1.msra.mxu0 0.0
    %4595 = vmatprep.subr.mxu0 0.0
    %4596 = vmatpush1.msra.mxu0 0.0
    %4597 = vmatprep.subr.mxu0 0.0
    %4598 = vmatpush1.msra.mxu0 0.0
    %4599 = vmatprep.subr.mxu0 0.0
    %4600 = vmatpush1.msra.mxu0 0.0
    %4601 = vmatprep.subr.mxu0 0.0
    %4602 = vmatpush1.msra.mxu0 0.0
    %4603 = vmatprep.subr.mxu0 0.0
    %4604 = vmatpush1.msra.mxu0 0.0
    %4605 = vmatprep.subr.mxu0 0.0
    %4606 = vmatpush1.msra.mxu0 0.0
    %4607 = vmatprep.subr.mxu0 0.0
    %4608 = vmatpush1.msra.mxu0 0.0
    %4609 = vmatprep.subr.mxu0 0.0
    %4610 = vmatpush1.msra.mxu0 0.0
    %4611 = vmatprep.subr.mxu0 0.0
    %4612 = vmatpush1.msra.mxu0 0.0
    %4613 = vmatprep.subr.mxu0 0.0
    %4614 = vmatpush1.msra.mxu0 0.0
    %4615 = vmatprep.subr.mxu0 0.0
    %4616 = vmatpush1.msra.mxu0 0.0
    %4617 = vmatprep.subr.mxu0 0.0
    %4618 = vmatpush1.msra.mxu0 0.0
    %4619 = vmatprep.mubr.f32.mxu0 0.0
    %4620 = vmatmul.mubr.f32.gmra.mrb[0].mxu0 %v4549
    %v4621 = vpop.f32.mrb[0].mxu0
    %v4622 = vadd.f32 %v4554, %v4621
    %v4623 = vpop.f32.mrb[0].mxu0
    %4624 = vmatprep.mubr.f32.mxu0 0.0
    %4625 = vmatmul.mubr.f32.gmra.mrb[0].mxu0 %v4550
    %v4626 = vpop.f32.mrb[0].mxu0
    %v4627 = vadd.f32 %v4554, %v4626
    %v4628 = vpop.f32.mrb[0].mxu0
    %4629 = vdwg.mxu0
    %v4630 = vadd.f32 %v4408, %v4622
    %v4631 = vadd.f32 %v4409, %v4627
    %v4632 = vsel %vm171, %v4630, 0.0
    %4633 = vadd.xlane.f32.xlu0 %v4632
    %v4634 = vpop.xlane.xlu0 %4633
    %v4635 = vsel %vm171, %v4631, 0.0
    %4636 = vadd.xlane.f32.xlu0 %v4635
    %v4637 = vpop.xlane.xlu0 %4636
    %v4638 = vmul.f32 %v4634, %v536
    %v4639 = vmul.f32 %v4637, %v536
    %v4640 = vsub.f32 %v4630, %v4638
    %v4641 = vsub.f32 %v4631, %v4639
    %v4642 = vmul.f32 %v4640, %v4640
    %v4643 = vmul.f32 %v4641, %v4641
    %v4644 = vsel %vm171, %v4642, 0.0
    %4645 = vadd.xlane.f32.xlu0 %v4644
    %v4646 = vpop.xlane.xlu0 %4645
    %v4647 = vsel %vm171, %v4643, 0.0
    %4648 = vadd.xlane.f32.xlu0 %v4647
    %v4649 = vpop.xlane.xlu0 %4648
    %v4650 = vmul.f32 %v4646, %v536
    %v4651 = vmul.f32 %v4649, %v536
    %v4652 = vadd.f32 %v4650, 1e-05
    %v4653 = vadd.f32 %v4651, 1e-05
    %v4654 = vrsqrt.pop %v4652
    %v4655 = vrsqrt.pop %v4653
    %v4656 = vmul.f32 %v4640, %v4654
    %v4657 = vmul.f32 %v4641, %v4655
    %v4658 = vlaneseq
    %v4659 = vshrl.u32 %v4658, 7
    %v4660 = vsub.s32 0, %v4659
    %v4661 = vrot.slane %v169, %v4660
    %v4662 = vmul.f32 %v4656, %v4661
    %v4663 = vmul.f32 %v4657, %v4661
    %v4664 = vlaneseq
    %v4665 = vshrl.u32 %v4664, 7
    %v4666 = vsub.s32 0, %v4665
    %v4667 = vrot.slane %v170, %v4666
    %v4668 = vadd.f32 %v4662, %v4667
    %v4669 = vadd.f32 %v4663, %v4667
    %v4670 = vld [vmem:[%s8] sm:$0xff]
    %v4671 = vld [vmem:[%s8 + $0x8] sm:$0xff]
    %v4672 = vld [vmem:[%s8 + $0x10] sm:$0xff]
    %v4673 = vld [vmem:[%s8 + $0x18] sm:$0xff]
    %v4675 = vsel %vm171, %v4668, 0
    %v4678 = vsel %vm171, %v4669, 0
    %4680 = vmatprep.subr.mxu0 0.0
    %4681 = vmatpush1.msra.mxu0 %v4670
    %4682 = vmatprep.subr.mxu0 0.0
    %4683 = vmatpush1.msra.mxu0 %v4671
    %4684 = vmatprep.subr.mxu0 0.0
    %4685 = vmatpush1.msra.mxu0 %v4672
    %4686 = vmatprep.subr.mxu0 0.0
    %4687 = vmatpush1.msra.mxu0 %v4673
    %4688 = vmatprep.subr.mxu0 0.0
    %4689 = vmatpush1.msra.mxu0 0.0
    %4690 = vmatprep.subr.mxu0 0.0
    %4691 = vmatpush1.msra.mxu0 0.0
    %4692 = vmatprep.subr.mxu0 0.0
    %4693 = vmatpush1.msra.mxu0 0.0
    %4694 = vmatprep.subr.mxu0 0.0
    %4695 = vmatpush1.msra.mxu0 0.0
    %4696 = vmatprep.subr.mxu0 0.0
    %4697 = vmatpush1.msra.mxu0 0.0
    %4698 = vmatprep.subr.mxu0 0.0
    %4699 = vmatpush1.msra.mxu0 0.0
    %4700 = vmatprep.subr.mxu0 0.0
    %4701 = vmatpush1.msra.mxu0 0.0
    %4702 = vmatprep.subr.mxu0 0.0
    %4703 = vmatpush1.msra.mxu0 0.0
    %4704 = vmatprep.subr.mxu0 0.0
    %4705 = vmatpush1.msra.mxu0 0.0
    %4706 = vmatprep.subr.mxu0 0.0
    %4707 = vmatpush1.msra.mxu0 0.0
    %4708 = vmatprep.subr.mxu0 0.0
    %4709 = vmatpush1.msra.mxu0 0.0
    %4710 = vmatprep.subr.mxu0 0.0
    %4711 = vmatpush1.msra.mxu0 0.0
    %4712 = vmatprep.subr.mxu0 0.0
    %4713 = vmatpush1.msra.mxu0 0.0
    %4714 = vmatprep.subr.mxu0 0.0
    %4715 = vmatpush1.msra.mxu0 0.0
    %4716 = vmatprep.subr.mxu0 0.0
    %4717 = vmatpush1.msra.mxu0 0.0
    %4718 = vmatprep.subr.mxu0 0.0
    %4719 = vmatpush1.msra.mxu0 0.0
    %4720 = vmatprep.subr.mxu0 0.0
    %4721 = vmatpush1.msra.mxu0 0.0
    %4722 = vmatprep.subr.mxu0 0.0
    %4723 = vmatpush1.msra.mxu0 0.0
    %4724 = vmatprep.subr.mxu0 0.0
    %4725 = vmatpush1.msra.mxu0 0.0
    %4726 = vmatprep.subr.mxu0 0.0
    %4727 = vmatpush1.msra.mxu0 0.0
    %4728 = vmatprep.subr.mxu0 0.0
    %4729 = vmatpush1.msra.mxu0 0.0
    %4730 = vmatprep.subr.mxu0 0.0
    %4731 = vmatpush1.msra.mxu0 0.0
    %4732 = vmatprep.subr.mxu0 0.0
    %4733 = vmatpush1.msra.mxu0 0.0
    %4734 = vmatprep.subr.mxu0 0.0
    %4735 = vmatpush1.msra.mxu0 0.0
    %4736 = vmatprep.subr.mxu0 0.0
    %4737 = vmatpush1.msra.mxu0 0.0
    %4738 = vmatprep.subr.mxu0 0.0
    %4739 = vmatpush1.msra.mxu0 0.0
    %4740 = vmatprep.subr.mxu0 0.0
    %4741 = vmatpush1.msra.mxu0 0.0
    %4742 = vmatprep.subr.mxu0 0.0
    %4743 = vmatpush1.msra.mxu0 0.0
    %4744 = vmatprep.mubr.f32.mxu0 0.0
    %4745 = vmatmul.mubr.f32.gmra.mrb[0].mxu0 %v4675
    %v4746 = vpop.f32.mrb[0].mxu0
    %v4747 = vadd.f32 0.0, %v4746
    %v4748 = vpop.f32.mrb[0].mxu0
    %4749 = vmatprep.mubr.f32.mxu0 0.0
    %4750 = vmatmul.mubr.f32.gmra.mrb[0].mxu0 %v4678
    %v4751 = vpop.f32.mrb[0].mxu0
    %v4752 = vadd.f32 0.0, %v4751
    %v4753 = vpop.f32.mrb[0].mxu0
    %4754 = vdwg.mxu0
    %vm4755 = vcmask 523264
    %4756 = vst.msk [vmem:[#allocation2] sm:$0xff] %vm4755, %v4747
    %4757 = vst.msk [vmem:[#allocation2 + $0x8] sm:$0xff] %vm4755, %v4752
    %vm4758 = vcmask 16384
    %4759 = vst.msk [vmem:[#allocation4] sm:$0x1] %vm4758, %v2680
    // Predicated region
    $region38: #{forward.1} parent=1 // pred_check
      _
    $region39: #{forward.1} parent=1 // pred_check_branch
      %4761 = sbr.rel (0) target = $region41
    $region40: #{forward.1} parent=1 // pred_region
      %s4763 = ssub.s32 256, 256
      %4764 = vsyncadd [#allocation3], %s4763
      %s4765 = sshll.u32 [#allocation2], 4
      %s4766 = int_to_ptr.vmem [resolvable:$true] %s4765
      %4771 = dma.vmem_to_hbm [thread:$0]  %s4766, 256, %s9, [#allocation3], 128, 128, 8
    $region41: #{forward.1} parent=1 // pred_fallthru
      _
    // Predicated region
    $region42: #{forward.1} parent=1 // pred_check
      _
    $region43: #{forward.1} parent=1 // pred_check_branch
      %4773 = sbr.rel (0) target = $region45
    $region44: #{forward.1} parent=1 // pred_region
      %s4775 = ssub.s32 16, 16
      %4776 = vsyncadd [#allocation5], %s4775
      %s4778 = sshll.u32 [#allocation4], 4
      %s4779 = int_to_ptr.vmem [resolvable:$true] %s4778
      %4781 = dma.vmem_to_hbm [thread:$0]  %s4779, 16, %s10, [#allocation5]
    $region45: #{forward.1} parent=1 // pred_fallthru
      _
    // Predicated region
    $region46: #{forward.1} parent=1 // pred_check
      _
    $region47: #{forward.1} parent=1 // pred_check_branch
      %4783 = sbr.rel (0) target = $region49
    $region48: #{forward.1} parent=1 // pred_region
      %4784 = dma.done [#allocation3], 256
    $region49: #{forward.1} parent=1 // pred_fallthru
      _
    // Predicated region
    $region50: #{forward.1} parent=1 // pred_check
      _
    $region51: #{forward.1} parent=1 // pred_check_branch
      %4786 = sbr.rel (0) target = $region53
    $region52: #{forward.1} parent=1 // pred_region
      %4787 = dma.done [#allocation5], 16
    $region53: #{forward.1} parent=1 // pred_fallthru
      _
    %4788 = vsyncpa [#allocation3], 1
    %4789 = vsyncpa [#allocation5], 1

</llo_original>
